<compile_context>
chip_gen: v5e
topology: v5e:2x2
jax: 0.10.0
libtpu: 0.0.40
codegen_flags: <defaults>
</compile_context>

<pallas_src>
import math
import jax
import jax.numpy as jnp
from jax.experimental import pallas as pl
from jax.experimental.pallas import tpu as pltpu


def vae_fwd_kernel(x_ref, w1_ref, b1_ref, w2_ref, b2_ref, eps_ref,
                   w3_ref, b3_ref, w4_ref, b4_ref,
                   recon_ref, mulv_ref):
    latent = eps_ref.shape[-1]

    # ---- encoder ----
    x = x_ref[...].astype(jnp.bfloat16)
    h1 = jnp.dot(x, w1_ref[...], preferred_element_type=jnp.float32) + b1_ref[...]
    h1 = jnp.maximum(h1, 0.0)                                    # relu(fc1(x))

    # single lane-dense fc2 pass -> [TB, 2*latent] (mu || log_var)
    mulv = jnp.dot(h1.astype(jnp.bfloat16), w2_ref[...],
                   preferred_element_type=jnp.float32) + b2_ref[...]
    mu = mulv[:, :latent]
    log_var = mulv[:, latent:]

    # ---- reparameterize: z = mu + eps * exp(0.5 * log_var)  (f32) ----
    std = jnp.exp(0.5 * log_var)
    z = mu + eps_ref[...] * std

    # ---- decoder ----
    h3 = jnp.dot(z.astype(jnp.bfloat16), w3_ref[...],
                 preferred_element_type=jnp.float32) + b3_ref[...]
    h3 = jnp.maximum(h3, 0.0)                                    # relu(fc3(z))

    logits = jnp.dot(h3.astype(jnp.bfloat16), w4_ref[...],
                     preferred_element_type=jnp.float32) + b4_ref[...]
    recon_ref[...] = jax.nn.sigmoid(logits)
    mulv_ref[...] = mulv


def vae_forward(x, params, eps, *, batch_block=128):
    """x: [B, input_size] f32. params: pre-transposed bf16 weights / f32 biases.
    eps: [B, latent] f32. Returns (reconstruction, mu, log_var)."""
    B, input_size = x.shape
    latent = eps.shape[1]
    hidden = params["w1_t"].shape[1]
    tb = min(batch_block, B)
    grid = (pl.cdiv(B, tb),)

    # Activations / eps / outputs are tiled over batch; weights & biases use a
    # constant index_map so they are fetched once and stay VMEM-resident.
    const = lambda i: (0, 0)
    batch_tile = lambda i: (i, 0)

    in_specs = [
        pl.BlockSpec((tb, input_size), batch_tile),          # x
        pl.BlockSpec((input_size, hidden), const),           # w1_t   (bf16)
        pl.BlockSpec((1, hidden), const),                    # b1     (f32)
        pl.BlockSpec((hidden, 2 * latent), const),           # w2_t   (bf16)
        pl.BlockSpec((1, 2 * latent), const),                # b2     (f32)
        pl.BlockSpec((tb, latent), batch_tile),              # eps
        pl.BlockSpec((latent, hidden), const),               # w3_t   (bf16)
        pl.BlockSpec((1, hidden), const),                    # b3     (f32)
        pl.BlockSpec((hidden, input_size), const),           # w4_t   (bf16)
        pl.BlockSpec((1, input_size), const),                # b4     (f32)
    ]
    out_specs = (
        pl.BlockSpec((tb, input_size), batch_tile),          # reconstruction
        pl.BlockSpec((tb, 2 * latent), batch_tile),          # mu || log_var
    )
    out_shapes = (
        jax.ShapeDtypeStruct((B, input_size), jnp.float32),
        jax.ShapeDtypeStruct((B, 2 * latent), jnp.float32),
    )

    recon, mulv = pl.pallas_call(
        vae_fwd_kernel,
        grid=grid,
        in_specs=in_specs,
        out_specs=out_specs,
        out_shape=out_shapes,
        compiler_params=pltpu.CompilerParams(
            dimension_semantics=("parallel",),
            vmem_limit_bytes=16 << 20,
        ),
    )(
        x,
        params["w1_t"], params["b1"],
        params["w2_t"], params["b2"],
        eps,
        params["w3_t"], params["b3"],
        params["w4_t"], params["b4"],
    )

    # torch-style chunk(2, dim=-1): free XLA slices outside the kernel.
    mu, log_var = mulv[:, :latent], mulv[:, latent:]
    return recon, mu, log_var


def init_params(key, input_size, latent_dim, hidden_size=512):
    """PyTorch-style uniform(+-1/sqrt(fan_in)) init, pre-transposed to [in, out].
    Weights are stored in bf16 (MXU inputs); biases stay f32."""
    def linear(k, fan_in, fan_out):
        kw, kb = jax.random.split(k)
        bound = 1.0 / math.sqrt(fan_in)
        w = jax.random.uniform(kw, (fan_out, fan_in), jnp.float32, -bound, bound)
        b = jax.random.uniform(kb, (fan_out,), jnp.float32, -bound, bound)
        return w, b

    k1, k2, k3, k4 = jax.random.split(key, 4)
    w1, b1 = linear(k1, input_size, hidden_size)          # fc1
    w2, b2 = linear(k2, hidden_size, latent_dim * 2)      # fc2 (mu || log_var)
    w3, b3 = linear(k3, latent_dim, hidden_size)          # fc3
    w4, b4 = linear(k4, hidden_size, input_size)          # fc4

    bf16 = jnp.bfloat16
    return {
        "w1_t": w1.T.astype(bf16), "b1": b1.reshape(1, -1),
        "w2_t": w2.T.astype(bf16), "b2": b2.reshape(1, -1),
        "w3_t": w3.T.astype(bf16), "b3": b3.reshape(1, -1),
        "w4_t": w4.T.astype(bf16), "b4": b4.reshape(1, -1),
    }


def vae_forward_ref(x, params, eps):
    """Plain-JAX reference using the same bf16-matmul / f32-accumulate recipe."""
    bf16 = jnp.bfloat16
    f32 = jnp.float32

    def mm(a, w):
        return jnp.dot(a.astype(bf16), w, preferred_element_type=f32)

    latent = eps.shape[1]
    h1 = jax.nn.relu(mm(x, params["w1_t"]) + params["b1"])
    mulv = mm(h1, params["w2_t"]) + params["b2"]
    mu, log_var = mulv[:, :latent], mulv[:, latent:]
    z = mu + eps * jnp.exp(0.5 * log_var)
    h3 = jax.nn.relu(mm(z, params["w3_t"]) + params["b3"])
    recon = jax.nn.sigmoid(mm(h3, params["w4_t"]) + params["b4"])
    return recon, mu, log_var


if __name__ == "__main__":
    # Small shapes consistent with the module (layers == 2 path).
    B = 256            # 2 grid steps of 128 rows -> exercises the batch grid
    input_size = 256
    latent_dim = 16

    root = jax.random.PRNGKey(0)
    kx, kp, keps = jax.random.split(root, 3)

    x = jax.random.uniform(kx, (B, input_size), jnp.float32)       # flattened images in [0,1)
    params = init_params(kp, input_size, latent_dim)
    # TODO(synk): eps is torch.randn_like(std) in the module; generated host-side here
    # for determinism instead of in-kernel pltpu PRNG.
    eps = jax.random.normal(keps, (B, latent_dim), jnp.float32)

    recon, mu, log_var = vae_forward(x, params, eps)
    jax.block_until_ready((recon, mu, log_var))

    # sanity check against a precision-matched plain-JAX reference
    r_ref, m_ref, lv_ref = vae_forward_ref(x, params, eps)
    assert jnp.allclose(recon, r_ref, atol=1e-3, rtol=1e-3)
    assert jnp.allclose(mu, m_ref, atol=1e-3, rtol=1e-3)
    assert jnp.allclose(log_var, lv_ref, atol=1e-3, rtol=1e-3)

    print("KERNEL_OK")
</pallas_src>

<mosaic_0001>
module attributes {stable_mosaic.version = 11 : i64} {
  func.func @vae_fwd_kernel(%arg0: i32, %arg1: memref<128x256xf32, #tpu.memory_space<vmem>>, %arg2: memref<256x512xbf16, #tpu.memory_space<vmem>>, %arg3: memref<1x512xf32, #tpu.memory_space<vmem>>, %arg4: memref<512x32xbf16, #tpu.memory_space<vmem>>, %arg5: memref<1x32xf32, #tpu.memory_space<vmem>>, %arg6: memref<128x16xf32, #tpu.memory_space<vmem>>, %arg7: memref<16x512xbf16, #tpu.memory_space<vmem>>, %arg8: memref<1x512xf32, #tpu.memory_space<vmem>>, %arg9: memref<512x256xbf16, #tpu.memory_space<vmem>>, %arg10: memref<1x256xf32, #tpu.memory_space<vmem>>, %arg11: memref<128x256xf32, #tpu.memory_space<vmem>>, %arg12: memref<128x32xf32, #tpu.memory_space<vmem>>) attributes {dimension_semantics = [#tpu.dimension_semantics<parallel>], iteration_bounds = array<i64: 2>, scalar_prefetch = 0 : i64, scratch_operands = 0 : i64, tpu.core_type = #tpu.core_type<tc>, window_params = [{transform_indices = @transform_0, window_bounds = array<i64: 128, 256>}, {pipeline_mode = #tpu.pipeline_mode<synchronous>, transform_indices = @transform_1, window_bounds = array<i64: 256, 512>}, {pipeline_mode = #tpu.pipeline_mode<synchronous>, transform_indices = @transform_2, window_bounds = array<i64: 1, 512>}, {pipeline_mode = #tpu.pipeline_mode<synchronous>, transform_indices = @transform_3, window_bounds = array<i64: 512, 32>}, {pipeline_mode = #tpu.pipeline_mode<synchronous>, transform_indices = @transform_4, window_bounds = array<i64: 1, 32>}, {transform_indices = @transform_5, window_bounds = array<i64: 128, 16>}, {pipeline_mode = #tpu.pipeline_mode<synchronous>, transform_indices = @transform_6, window_bounds = array<i64: 16, 512>}, {pipeline_mode = #tpu.pipeline_mode<synchronous>, transform_indices = @transform_7, window_bounds = array<i64: 1, 512>}, {pipeline_mode = #tpu.pipeline_mode<synchronous>, transform_indices = @transform_8, window_bounds = array<i64: 512, 256>}, {pipeline_mode = #tpu.pipeline_mode<synchronous>, transform_indices = @transform_9, window_bounds = array<i64: 1, 256>}, {transform_indices = @transform_10, window_bounds = array<i64: 128, 256>}, {transform_indices = @transform_11, window_bounds = array<i64: 128, 32>}]} {
    %c0 = arith.constant 0 : index
    %c0_0 = arith.constant 0 : index
    %0 = vector.load %arg1[%c0, %c0_0] : memref<128x256xf32, #tpu.memory_space<vmem>>, vector<128x256xf32>
    %1 = arith.truncf %0 : vector<128x256xf32> to vector<128x256xbf16>
    %c0_1 = arith.constant 0 : index
    %c0_2 = arith.constant 0 : index
    %2 = vector.load %arg2[%c0_1, %c0_2] : memref<256x512xbf16, #tpu.memory_space<vmem>>, vector<256x512xbf16>
    %cst = arith.constant dense<0.000000e+00> : vector<128x512xf32>
    %3 = tpu.matmul %1, %2, %cst {dimension_numbers = #tpu.dot_dimension_numbers<[1], [0], [0], [1], [0, 0, 1, 1], [], []>} : vector<128x256xbf16>, vector<256x512xbf16>, vector<128x512xf32> -> vector<128x512xf32>
    %c0_3 = arith.constant 0 : index
    %c0_4 = arith.constant 0 : index
    %4 = vector.load %arg3[%c0_3, %c0_4] : memref<1x512xf32, #tpu.memory_space<vmem>>, vector<1x512xf32>
    %5 = vector.broadcast %4 : vector<1x512xf32> to vector<128x512xf32>
    %6 = arith.addf %3, %5 : vector<128x512xf32>
    %cst_5 = arith.constant 0.000000e+00 : f32
    %7 = vector.broadcast %cst_5 : f32 to vector<128x512xf32>
    %8 = arith.maximumf %6, %7 : vector<128x512xf32>
    %9 = arith.truncf %8 : vector<128x512xf32> to vector<128x512xbf16>
    %c0_6 = arith.constant 0 : index
    %c0_7 = arith.constant 0 : index
    %10 = vector.load %arg4[%c0_6, %c0_7] : memref<512x32xbf16, #tpu.memory_space<vmem>>, vector<512x32xbf16>
    %cst_8 = arith.constant dense<0.000000e+00> : vector<128x32xf32>
    %11 = tpu.matmul %9, %10, %cst_8 {dimension_numbers = #tpu.dot_dimension_numbers<[1], [0], [0], [1], [0, 0, 1, 1], [], []>} : vector<128x512xbf16>, vector<512x32xbf16>, vector<128x32xf32> -> vector<128x32xf32>
    %c0_9 = arith.constant 0 : index
    %c0_10 = arith.constant 0 : index
    %12 = vector.load %arg5[%c0_9, %c0_10] : memref<1x32xf32, #tpu.memory_space<vmem>>, vector<1x32xf32>
    %13 = vector.broadcast %12 : vector<1x32xf32> to vector<128x32xf32>
    %14 = arith.addf %11, %13 : vector<128x32xf32>
    %15 = vector.extract_strided_slice %14 {offsets = [0, 0], sizes = [128, 16], strides = [1, 1]} : vector<128x32xf32> to vector<128x16xf32>
    %16 = vector.extract_strided_slice %14 {offsets = [0, 16], sizes = [128, 16], strides = [1, 1]} : vector<128x32xf32> to vector<128x16xf32>
    %cst_11 = arith.constant 5.000000e-01 : f32
    %17 = vector.broadcast %cst_11 : f32 to vector<128x16xf32>
    %18 = arith.mulf %17, %16 : vector<128x16xf32>
    %19 = math.exp %18 : vector<128x16xf32>
    %c0_12 = arith.constant 0 : index
    %c0_13 = arith.constant 0 : index
    %20 = vector.load %arg6[%c0_12, %c0_13] : memref<128x16xf32, #tpu.memory_space<vmem>>, vector<128x16xf32>
    %21 = arith.mulf %20, %19 : vector<128x16xf32>
    %22 = arith.addf %15, %21 : vector<128x16xf32>
    %23 = arith.truncf %22 : vector<128x16xf32> to vector<128x16xbf16>
    %c0_14 = arith.constant 0 : index
    %c0_15 = arith.constant 0 : index
    %24 = vector.load %arg7[%c0_14, %c0_15] : memref<16x512xbf16, #tpu.memory_space<vmem>>, vector<16x512xbf16>
    %cst_16 = arith.constant dense<0.000000e+00> : vector<128x512xf32>
    %25 = tpu.matmul %23, %24, %cst_16 {dimension_numbers = #tpu.dot_dimension_numbers<[1], [0], [0], [1], [0, 0, 1, 1], [], []>} : vector<128x16xbf16>, vector<16x512xbf16>, vector<128x512xf32> -> vector<128x512xf32>
    %c0_17 = arith.constant 0 : index
    %c0_18 = arith.constant 0 : index
    %26 = vector.load %arg8[%c0_17, %c0_18] : memref<1x512xf32, #tpu.memory_space<vmem>>, vector<1x512xf32>
    %27 = vector.broadcast %26 : vector<1x512xf32> to vector<128x512xf32>
    %28 = arith.addf %25, %27 : vector<128x512xf32>
    %cst_19 = arith.constant 0.000000e+00 : f32
    %29 = vector.broadcast %cst_19 : f32 to vector<128x512xf32>
    %30 = arith.maximumf %28, %29 : vector<128x512xf32>
    %31 = arith.truncf %30 : vector<128x512xf32> to vector<128x512xbf16>
    %c0_20 = arith.constant 0 : index
    %c0_21 = arith.constant 0 : index
    %32 = vector.load %arg9[%c0_20, %c0_21] : memref<512x256xbf16, #tpu.memory_space<vmem>>, vector<512x256xbf16>
    %cst_22 = arith.constant dense<0.000000e+00> : vector<128x256xf32>
    %33 = tpu.matmul %31, %32, %cst_22 {dimension_numbers = #tpu.dot_dimension_numbers<[1], [0], [0], [1], [0, 0, 1, 1], [], []>} : vector<128x512xbf16>, vector<512x256xbf16>, vector<128x256xf32> -> vector<128x256xf32>
    %c0_23 = arith.constant 0 : index
    %c0_24 = arith.constant 0 : index
    %34 = vector.load %arg10[%c0_23, %c0_24] : memref<1x256xf32, #tpu.memory_space<vmem>>, vector<1x256xf32>
    %35 = vector.broadcast %34 : vector<1x256xf32> to vector<128x256xf32>
    %36 = arith.addf %33, %35 : vector<128x256xf32>
    %37 = arith.negf %36 : vector<128x256xf32>
    %38 = math.exp %37 : vector<128x256xf32>
    %cst_25 = arith.constant 1.000000e+00 : f32
    %39 = vector.broadcast %cst_25 : f32 to vector<128x256xf32>
    %40 = arith.addf %39, %38 : vector<128x256xf32>
    %41 = arith.divf %39, %40 : vector<128x256xf32>
    %c0_26 = arith.constant 0 : index
    %c0_27 = arith.constant 0 : index
    %42 = vector.load %arg11[%c0_26, %c0_27] : memref<128x256xf32, #tpu.memory_space<vmem>>, vector<128x256xf32>
    tpu.vector_store %arg11[%c0_26, %c0_27], %41 {strides = array<i32>} : memref<128x256xf32, #tpu.memory_space<vmem>>, vector<128x256xf32>,
    %c0_28 = arith.constant 0 : index
    %c0_29 = arith.constant 0 : index
    %43 = vector.load %arg12[%c0_28, %c0_29] : memref<128x32xf32, #tpu.memory_space<vmem>>, vector<128x32xf32>
    tpu.vector_store %arg12[%c0_28, %c0_29], %14 {strides = array<i32>} : memref<128x32xf32, #tpu.memory_space<vmem>>, vector<128x32xf32>,
    return
  }
  func.func @transform_0(%arg0: i32) -> (i32, i32) {
    %c0_i32 = arith.constant 0 : i32
    %c0_i32_0 = arith.constant 0 : i32
    return %arg0, %c0_i32 : i32, i32
  }
  func.func @transform_1(%arg0: i32) -> (i32, i32) {
    %c0_i32 = arith.constant 0 : i32
    %c0_i32_0 = arith.constant 0 : i32
    %c0_i32_1 = arith.constant 0 : i32
    return %c0_i32, %c0_i32_0 : i32, i32
  }
  func.func @transform_2(%arg0: i32) -> (i32, i32) {
    %c0_i32 = arith.constant 0 : i32
    %c0_i32_0 = arith.constant 0 : i32
    %c0_i32_1 = arith.constant 0 : i32
    return %c0_i32, %c0_i32_0 : i32, i32
  }
  func.func @transform_3(%arg0: i32) -> (i32, i32) {
    %c0_i32 = arith.constant 0 : i32
    %c0_i32_0 = arith.constant 0 : i32
    %c0_i32_1 = arith.constant 0 : i32
    return %c0_i32, %c0_i32_0 : i32, i32
  }
  func.func @transform_4(%arg0: i32) -> (i32, i32) {
    %c0_i32 = arith.constant 0 : i32
    %c0_i32_0 = arith.constant 0 : i32
    %c0_i32_1 = arith.constant 0 : i32
    return %c0_i32, %c0_i32_0 : i32, i32
  }
  func.func @transform_5(%arg0: i32) -> (i32, i32) {
    %c0_i32 = arith.constant 0 : i32
    %c0_i32_0 = arith.constant 0 : i32
    return %arg0, %c0_i32 : i32, i32
  }
  func.func @transform_6(%arg0: i32) -> (i32, i32) {
    %c0_i32 = arith.constant 0 : i32
    %c0_i32_0 = arith.constant 0 : i32
    %c0_i32_1 = arith.constant 0 : i32
    return %c0_i32, %c0_i32_0 : i32, i32
  }
  func.func @transform_7(%arg0: i32) -> (i32, i32) {
    %c0_i32 = arith.constant 0 : i32
    %c0_i32_0 = arith.constant 0 : i32
    %c0_i32_1 = arith.constant 0 : i32
    return %c0_i32, %c0_i32_0 : i32, i32
  }
  func.func @transform_8(%arg0: i32) -> (i32, i32) {
    %c0_i32 = arith.constant 0 : i32
    %c0_i32_0 = arith.constant 0 : i32
    %c0_i32_1 = arith.constant 0 : i32
    return %c0_i32, %c0_i32_0 : i32, i32
  }
  func.func @transform_9(%arg0: i32) -> (i32, i32) {
    %c0_i32 = arith.constant 0 : i32
    %c0_i32_0 = arith.constant 0 : i32
    %c0_i32_1 = arith.constant 0 : i32
    return %c0_i32, %c0_i32_0 : i32, i32
  }
  func.func @transform_10(%arg0: i32) -> (i32, i32) {
    %c0_i32 = arith.constant 0 : i32
    %c0_i32_0 = arith.constant 0 : i32
    return %arg0, %c0_i32 : i32, i32
  }
  func.func @transform_11(%arg0: i32) -> (i32, i32) {
    %c0_i32 = arith.constant 0 : i32
    %c0_i32_0 = arith.constant 0 : i32
    return %arg0, %c0_i32 : i32, i32
  }
}

</mosaic_0001>

<llo_original>
// kernel: tpu_custom_call.1
$region0: #{tpu_custom_call.1}
  #allocation0 [shape = 'u32[]', space=smem, size = 0x4, offset = 0x4, fixed_abs, tag = 'smem constant byte address 0x4 - core index']
  #allocation1 [shape = 'u32[72,128]{1,0:T(1,128)}', space=vmem, size = 0x9000, scoped, tag = 'internal scratch']
  %s0 = inlined_call_operand.vmem [shape: f32[256,256], index: 0, kind: input, shape index: {}]
  %s1 = inlined_call_operand.hbm [shape: bf16[256,512], index: 1, kind: input, shape index: {}]
  %s2 = inlined_call_operand.vmem [shape: f32[1,512], index: 2, kind: input, shape index: {}]
  %s3 = inlined_call_operand.vmem [shape: bf16[512,32], index: 3, kind: input, shape index: {}]
  %s4 = inlined_call_operand.vmem [shape: f32[1,32], index: 4, kind: input, shape index: {}]
  %s5 = inlined_call_operand.vmem [shape: f32[256,16], index: 5, kind: input, shape index: {}]
  %s6 = inlined_call_operand.vmem [shape: bf16[16,512], index: 6, kind: input, shape index: {}]
  %s7 = inlined_call_operand.vmem [shape: f32[1,512], index: 7, kind: input, shape index: {}]
  %s8 = inlined_call_operand.hbm [shape: bf16[512,256], index: 8, kind: input, shape index: {}]
  %s9 = inlined_call_operand.vmem [shape: f32[1,256], index: 9, kind: input, shape index: {}]
  %s10 = inlined_call_operand.hbm [shape: f32[256,256], index: 10, kind: output, shape index: {0}]
  %s11 = inlined_call_operand.vmem [shape: f32[256,32], index: 11, kind: output, shape index: {1}]
  %12 = xla_tuple %s10, %s11
  %s13 = sld [smem:[#allocation0]]
  $region89: #{tpu_custom_call.1} parent=0
    _
  %s15 = ssub.s32 1, %s13
  %s16 = scalar_select 0, %s15, %s13
  $region1: #{tpu_custom_call.1} parent=0
    #allocation2 [shape = 'u8[262144]{0}', space=vmem, size = 0x40000, scoped, tag = 'input window, operand 1, single buffered']
    #allocation3 [shape = 's32[2]{0}', space=sflag, size = 0x8, scoped, tag = 'scoped memory for tpu_custom_call.1']
    #allocation4 [shape = 's32[2]{0}', space=sflag, size = 0x8, scoped, tag = 'scoped memory for tpu_custom_call.1']
    #allocation5 [shape = 'u8[262144]{0}', space=vmem, size = 0x40000, scoped, tag = 'input window, operand 8, single buffered']
    #allocation6 [shape = 's32[1]{0}', space=sflag, size = 0x4, scoped, tag = 'scoped memory for tpu_custom_call.1']
    #allocation7 [shape = 'u8[262144]{0}', space=vmem, size = 0x40000, scoped, tag = 'output window, operand 0']
    %17 = vsyncpa [#allocation3], 0
    %18 = vsyncpa [#allocation6], 0
    %19 = vsyncpa [#allocation4], 0
    %s20 = scalar_lea.sflag [#allocation4], 1
    %21 = vsyncpa %s20, 0
    loop: start=0, step=1, limit=4
    $region2: #{tpu_custom_call.1} parent=1 // loop_pre_header
      _
    $region3: #{tpu_custom_call.1} parent=1 // loop_header
      %s23 = sphi 0, %s27
      %p24 = scmp.ge.s32.totalorder %s23, 4
      %s33 = sphi 0, %s35
      %s36 = sphi 0, %s33
      %s37 = sphi 0, %s36
      %s53 = sphi 0, %s37
      %s57 = sphi 0, %s57
      %s59 = sphi 0, %s57
      %s60 = sphi 0, %s59
      %s74 = sphi 0, %s60
      %s78 = sphi 0, %s78
      %s80 = sphi 0, %s78
      %s81 = sphi 0, %s80
      %s95 = sphi 0, %s81
      %s99 = sphi 0, %s99
      %s101 = sphi 0, %s99
      %s102 = sphi 0, %s101
      %s116 = sphi 0, %s102
      %s120 = sphi 0, %s120
      %s122 = sphi 0, %s120
      %s123 = sphi 0, %s122
      %s137 = sphi 0, %s123
      %s143 = sphi 0, %s145
      %s146 = sphi 0, %s143
      %s147 = sphi 0, %s146
      %s163 = sphi 0, %s147
      %s167 = sphi 0, %s167
      %s169 = sphi 0, %s167
      %s170 = sphi 0, %s169
      %s184 = sphi 0, %s170
      %s188 = sphi 0, %s188
      %s190 = sphi 0, %s188
      %s191 = sphi 0, %s190
      %s205 = sphi 0, %s191
      %s209 = sphi 0, %s209
      %s211 = sphi 0, %s209
      %s212 = sphi 0, %s211
      %s226 = sphi 0, %s212
      %s230 = sphi 0, %s230
      %s232 = sphi 0, %s230
      %s233 = sphi 0, %s232
      %s247 = sphi 0, %s233
      %s253 = sphi 0, %s255
      %s256 = sphi 0, %s253
      %s257 = sphi 0, %s256
      %s273 = sphi 0, %s257
      %s279 = sphi 0, %s281
      %s282 = sphi 0, %s279
      %s283 = sphi 0, %s282
      %s299 = sphi 0, %s283
    $region4: #{tpu_custom_call.1} parent=1 // loop_header_branch
      %26 = sbr.rel (%p24) target = $region8
    $region5: #{tpu_custom_call.1} parent=1 // loop_body
      %s28 = ssub.s32 %s23, 1
      %s29 = ssub.s32 %s23, 2
      %s30 = sadd.s32 %s23, 1
      %s31 = ssub.s32 %s23, %s30
      %p32 = scmp.eq.s32.totalorder %s31, 0
      %s34 = sadd.s32 %s33, 1
      %s35 = scalar_select %p32, %s33, %s34
      %p38 = pneg %p32
      %p39 = scmp.eq.s32.totalorder %s23, 1
      %p40 = por %p38, %p39
      %p41 = scmp.ne.s32.totalorder %s33, %s36
      %p42 = scmp.eq.s32.totalorder %s23, 0
      %p43 = por %p41, %p42
      %p44 = scmp.ne.s32.totalorder %s33, %s36
      %p45 = scmp.eq.s32.totalorder %s28, 1
      %p46 = por %p44, %p45
      %p47 = scmp.ne.s32.totalorder %s36, %s37
      %p48 = scmp.eq.s32.totalorder %s28, 0
      %p49 = por %p47, %p48
      %p50 = scmp.ne.s32.totalorder %s36, %s37
      %p51 = scmp.eq.s32.totalorder %s29, 1
      %p52 = por %p50, %p51
      %p54 = scmp.ne.s32.totalorder %s37, %s53
      %p55 = scmp.eq.s32.totalorder %s29, 0
      %p56 = por %p54, %p55
      %s58 = sadd.s32 %s57, 1
      %p61 = scmp.eq.s32.totalorder %s23, 1
      %p62 = scmp.ne.s32.totalorder %s57, %s59
      %p63 = scmp.eq.s32.totalorder %s23, 0
      %p64 = por %p62, %p63
      %p65 = scmp.ne.s32.totalorder %s57, %s59
      %p66 = scmp.eq.s32.totalorder %s28, 1
      %p67 = por %p65, %p66
      %p68 = scmp.ne.s32.totalorder %s59, %s60
      %p69 = scmp.eq.s32.totalorder %s28, 0
      %p70 = por %p68, %p69
      %p71 = scmp.ne.s32.totalorder %s59, %s60
      %p72 = scmp.eq.s32.totalorder %s29, 1
      %p73 = por %p71, %p72
      %p75 = scmp.ne.s32.totalorder %s60, %s74
      %p76 = scmp.eq.s32.totalorder %s29, 0
      %p77 = por %p75, %p76
      %s79 = sadd.s32 %s78, 1
      %p82 = scmp.eq.s32.totalorder %s23, 1
      %p83 = scmp.ne.s32.totalorder %s78, %s80
      %p84 = scmp.eq.s32.totalorder %s23, 0
      %p85 = por %p83, %p84
      %p86 = scmp.ne.s32.totalorder %s78, %s80
      %p87 = scmp.eq.s32.totalorder %s28, 1
      %p88 = por %p86, %p87
      %p89 = scmp.ne.s32.totalorder %s80, %s81
      %p90 = scmp.eq.s32.totalorder %s28, 0
      %p91 = por %p89, %p90
      %p92 = scmp.ne.s32.totalorder %s80, %s81
      %p93 = scmp.eq.s32.totalorder %s29, 1
      %p94 = por %p92, %p93
      %p96 = scmp.ne.s32.totalorder %s81, %s95
      %p97 = scmp.eq.s32.totalorder %s29, 0
      %p98 = por %p96, %p97
      %s100 = sadd.s32 %s99, 1
      %p103 = scmp.eq.s32.totalorder %s23, 1
      %p104 = scmp.ne.s32.totalorder %s99, %s101
      %p105 = scmp.eq.s32.totalorder %s23, 0
      %p106 = por %p104, %p105
      %p107 = scmp.ne.s32.totalorder %s99, %s101
      %p108 = scmp.eq.s32.totalorder %s28, 1
      %p109 = por %p107, %p108
      %p110 = scmp.ne.s32.totalorder %s101, %s102
      %p111 = scmp.eq.s32.totalorder %s28, 0
      %p112 = por %p110, %p111
      %p113 = scmp.ne.s32.totalorder %s101, %s102
      %p114 = scmp.eq.s32.totalorder %s29, 1
      %p115 = por %p113, %p114
      %p117 = scmp.ne.s32.totalorder %s102, %s116
      %p118 = scmp.eq.s32.totalorder %s29, 0
      %p119 = por %p117, %p118
      %s121 = sadd.s32 %s120, 1
      %p124 = scmp.eq.s32.totalorder %s23, 1
      %p125 = scmp.ne.s32.totalorder %s120, %s122
      %p126 = scmp.eq.s32.totalorder %s23, 0
      %p127 = por %p125, %p126
      %p128 = scmp.ne.s32.totalorder %s120, %s122
      %p129 = scmp.eq.s32.totalorder %s28, 1
      %p130 = por %p128, %p129
      %p131 = scmp.ne.s32.totalorder %s122, %s123
      %p132 = scmp.eq.s32.totalorder %s28, 0
      %p133 = por %p131, %p132
      %p134 = scmp.ne.s32.totalorder %s122, %s123
      %p135 = scmp.eq.s32.totalorder %s29, 1
      %p136 = por %p134, %p135
      %p138 = scmp.ne.s32.totalorder %s123, %s137
      %p139 = scmp.eq.s32.totalorder %s29, 0
      %p140 = por %p138, %p139
      %s141 = ssub.s32 %s23, %s30
      %p142 = scmp.eq.s32.totalorder %s141, 0
      %s144 = sadd.s32 %s143, 1
      %s145 = scalar_select %p142, %s143, %s144
      %p148 = pneg %p142
      %p149 = scmp.eq.s32.totalorder %s23, 1
      %p150 = por %p148, %p149
      %p151 = scmp.ne.s32.totalorder %s143, %s146
      %p152 = scmp.eq.s32.totalorder %s23, 0
      %p153 = por %p151, %p152
      %p154 = scmp.ne.s32.totalorder %s143, %s146
      %p155 = scmp.eq.s32.totalorder %s28, 1
      %p156 = por %p154, %p155
      %p157 = scmp.ne.s32.totalorder %s146, %s147
      %p158 = scmp.eq.s32.totalorder %s28, 0
      %p159 = por %p157, %p158
      %p160 = scmp.ne.s32.totalorder %s146, %s147
      %p161 = scmp.eq.s32.totalorder %s29, 1
      %p162 = por %p160, %p161
      %p164 = scmp.ne.s32.totalorder %s147, %s163
      %p165 = scmp.eq.s32.totalorder %s29, 0
      %p166 = por %p164, %p165
      %s168 = sadd.s32 %s167, 1
      %p171 = scmp.eq.s32.totalorder %s23, 1
      %p172 = scmp.ne.s32.totalorder %s167, %s169
      %p173 = scmp.eq.s32.totalorder %s23, 0
      %p174 = por %p172, %p173
      %p175 = scmp.ne.s32.totalorder %s167, %s169
      %p176 = scmp.eq.s32.totalorder %s28, 1
      %p177 = por %p175, %p176
      %p178 = scmp.ne.s32.totalorder %s169, %s170
      %p179 = scmp.eq.s32.totalorder %s28, 0
      %p180 = por %p178, %p179
      %p181 = scmp.ne.s32.totalorder %s169, %s170
      %p182 = scmp.eq.s32.totalorder %s29, 1
      %p183 = por %p181, %p182
      %p185 = scmp.ne.s32.totalorder %s170, %s184
      %p186 = scmp.eq.s32.totalorder %s29, 0
      %p187 = por %p185, %p186
      %s189 = sadd.s32 %s188, 1
      %p192 = scmp.eq.s32.totalorder %s23, 1
      %p193 = scmp.ne.s32.totalorder %s188, %s190
      %p194 = scmp.eq.s32.totalorder %s23, 0
      %p195 = por %p193, %p194
      %p196 = scmp.ne.s32.totalorder %s188, %s190
      %p197 = scmp.eq.s32.totalorder %s28, 1
      %p198 = por %p196, %p197
      %p199 = scmp.ne.s32.totalorder %s190, %s191
      %p200 = scmp.eq.s32.totalorder %s28, 0
      %p201 = por %p199, %p200
      %p202 = scmp.ne.s32.totalorder %s190, %s191
      %p203 = scmp.eq.s32.totalorder %s29, 1
      %p204 = por %p202, %p203
      %p206 = scmp.ne.s32.totalorder %s191, %s205
      %p207 = scmp.eq.s32.totalorder %s29, 0
      %p208 = por %p206, %p207
      %s210 = sadd.s32 %s209, 1
      %p213 = scmp.eq.s32.totalorder %s23, 1
      %p214 = scmp.ne.s32.totalorder %s209, %s211
      %p215 = scmp.eq.s32.totalorder %s23, 0
      %p216 = por %p214, %p215
      %p217 = scmp.ne.s32.totalorder %s209, %s211
      %p218 = scmp.eq.s32.totalorder %s28, 1
      %p219 = por %p217, %p218
      %p220 = scmp.ne.s32.totalorder %s211, %s212
      %p221 = scmp.eq.s32.totalorder %s28, 0
      %p222 = por %p220, %p221
      %p223 = scmp.ne.s32.totalorder %s211, %s212
      %p224 = scmp.eq.s32.totalorder %s29, 1
      %p225 = por %p223, %p224
      %p227 = scmp.ne.s32.totalorder %s212, %s226
      %p228 = scmp.eq.s32.totalorder %s29, 0
      %p229 = por %p227, %p228
      %s231 = sadd.s32 %s230, 1
      %p234 = scmp.eq.s32.totalorder %s23, 1
      %p235 = scmp.ne.s32.totalorder %s230, %s232
      %p236 = scmp.eq.s32.totalorder %s23, 0
      %p237 = por %p235, %p236
      %p238 = scmp.ne.s32.totalorder %s230, %s232
      %p239 = scmp.eq.s32.totalorder %s28, 1
      %p240 = por %p238, %p239
      %p241 = scmp.ne.s32.totalorder %s232, %s233
      %p242 = scmp.eq.s32.totalorder %s28, 0
      %p243 = por %p241, %p242
      %p244 = scmp.ne.s32.totalorder %s232, %s233
      %p245 = scmp.eq.s32.totalorder %s29, 1
      %p246 = por %p244, %p245
      %p248 = scmp.ne.s32.totalorder %s233, %s247
      %p249 = scmp.eq.s32.totalorder %s29, 0
      %p250 = por %p248, %p249
      %s251 = ssub.s32 %s23, %s30
      %p252 = scmp.eq.s32.totalorder %s251, 0
      %s254 = sadd.s32 %s253, 1
      %s255 = scalar_select %p252, %s253, %s254
      %p258 = pneg %p252
      %p259 = scmp.eq.s32.totalorder %s23, 1
      %p260 = por %p258, %p259
      %p261 = scmp.ne.s32.totalorder %s253, %s256
      %p262 = scmp.eq.s32.totalorder %s23, 0
      %p263 = por %p261, %p262
      %p264 = scmp.ne.s32.totalorder %s253, %s256
      %p265 = scmp.eq.s32.totalorder %s28, 1
      %p266 = por %p264, %p265
      %p267 = scmp.ne.s32.totalorder %s256, %s257
      %p268 = scmp.eq.s32.totalorder %s28, 0
      %p269 = por %p267, %p268
      %p270 = scmp.ne.s32.totalorder %s256, %s257
      %p271 = scmp.eq.s32.totalorder %s29, 1
      %p272 = por %p270, %p271
      %p274 = scmp.ne.s32.totalorder %s257, %s273
      %p275 = scmp.eq.s32.totalorder %s29, 0
      %p276 = por %p274, %p275
      %s277 = ssub.s32 %s23, %s30
      %p278 = scmp.eq.s32.totalorder %s277, 0
      %s280 = sadd.s32 %s279, 1
      %s281 = scalar_select %p278, %s279, %s280
      %p284 = pneg %p278
      %p285 = scmp.eq.s32.totalorder %s23, 1
      %p286 = por %p284, %p285
      %p287 = scmp.ne.s32.totalorder %s279, %s282
      %p288 = scmp.eq.s32.totalorder %s23, 0
      %p289 = por %p287, %p288
      %p290 = scmp.ne.s32.totalorder %s279, %s282
      %p291 = scmp.eq.s32.totalorder %s28, 1
      %p292 = por %p290, %p291
      %p293 = scmp.ne.s32.totalorder %s282, %s283
      %p294 = scmp.eq.s32.totalorder %s28, 0
      %p295 = por %p293, %p294
      %p296 = scmp.ne.s32.totalorder %s282, %s283
      %p297 = scmp.eq.s32.totalorder %s29, 1
      %p298 = por %p296, %p297
      %p300 = scmp.ne.s32.totalorder %s283, %s299
      %p301 = scmp.eq.s32.totalorder %s29, 0
      %p302 = por %p300, %p301
      %p303 = scmp.le.s32.totalorder 1, %s23
      %p304 = scmp.lt.s32.totalorder %s23, 3
      %p305 = pnand %p303, %p304
      %p306 = pneg %p305
      // Predicated region
      $region9: #{tpu_custom_call.1} parent=5 // pred_check
        _
      $region10: #{tpu_custom_call.1} parent=5 // pred_check_branch
        %308 = sbr.rel (%p305) target = $region12
      $region11: #{tpu_custom_call.1} parent=5 // pred_region
        %s309 = ssub.s32 %s23, 1
        // Predicated region
        $region13: #{tpu_custom_call.1} parent=11 // pred_check
          %p310 = pneg %p70
        $region14: #{tpu_custom_call.1} parent=11 // pred_check_branch
          %312 = sbr.rel (%p310) target = $region16
        $region15: #{tpu_custom_call.1} parent=11 // pred_region
          %314 = vsyncadd [#allocation3], 0
          %s315 = sshll.u32 %s1, 4
          %s316 = int_to_ptr.hbm [resolvable:$true] %s315
          %s317 = sshll.u32 [#allocation2], 4
          %s318 = int_to_ptr.vmem [resolvable:$true] %s317
          %323 = dma.hbm_to_vmem [thread:$0]  %s316, 8192, %s318, [#allocation3], 256, 256, 16
        $region16: #{tpu_custom_call.1} parent=11 // pred_fallthru
          _
        // Predicated region
        $region17: #{tpu_custom_call.1} parent=11 // pred_check
          %p324 = pneg %p91
        $region18: #{tpu_custom_call.1} parent=11 // pred_check_branch
          %326 = sbr.rel (%p324) target = $region20
        $region19: #{tpu_custom_call.1} parent=11 // pred_region
          _
        $region20: #{tpu_custom_call.1} parent=11 // pred_fallthru
          _
        // Predicated region
        $region21: #{tpu_custom_call.1} parent=11 // pred_check
          %p327 = pneg %p112
        $region22: #{tpu_custom_call.1} parent=11 // pred_check_branch
          %329 = sbr.rel (%p327) target = $region24
        $region23: #{tpu_custom_call.1} parent=11 // pred_region
          _
        $region24: #{tpu_custom_call.1} parent=11 // pred_fallthru
          _
        // Predicated region
        $region25: #{tpu_custom_call.1} parent=11 // pred_check
          %p330 = pneg %p133
        $region26: #{tpu_custom_call.1} parent=11 // pred_check_branch
          %332 = sbr.rel (%p330) target = $region28
        $region27: #{tpu_custom_call.1} parent=11 // pred_region
          _
        $region28: #{tpu_custom_call.1} parent=11 // pred_fallthru
          _
        // Predicated region
        $region29: #{tpu_custom_call.1} parent=11 // pred_check
          %p333 = pneg %p180
        $region30: #{tpu_custom_call.1} parent=11 // pred_check_branch
          %335 = sbr.rel (%p333) target = $region32
        $region31: #{tpu_custom_call.1} parent=11 // pred_region
          _
        $region32: #{tpu_custom_call.1} parent=11 // pred_fallthru
          _
        // Predicated region
        $region33: #{tpu_custom_call.1} parent=11 // pred_check
          %p336 = pneg %p201
        $region34: #{tpu_custom_call.1} parent=11 // pred_check_branch
          %338 = sbr.rel (%p336) target = $region36
        $region35: #{tpu_custom_call.1} parent=11 // pred_region
          _
        $region36: #{tpu_custom_call.1} parent=11 // pred_fallthru
          _
        // Predicated region
        $region37: #{tpu_custom_call.1} parent=11 // pred_check
          %p339 = pneg %p222
        $region38: #{tpu_custom_call.1} parent=11 // pred_check_branch
          %341 = sbr.rel (%p339) target = $region40
        $region39: #{tpu_custom_call.1} parent=11 // pred_region
          %343 = vsyncadd [#allocation6], 0
          %s344 = sshll.u32 %s8, 4
          %s345 = int_to_ptr.hbm [resolvable:$true] %s344
          %s346 = sshll.u32 [#allocation5], 4
          %s347 = int_to_ptr.vmem [resolvable:$true] %s346
          %352 = dma.hbm_to_vmem [thread:$0]  %s345, 8192, %s347, [#allocation6], 128, 128, 8
        $region40: #{tpu_custom_call.1} parent=11 // pred_fallthru
          _
        // Predicated region
        $region41: #{tpu_custom_call.1} parent=11 // pred_check
          %p353 = pneg %p243
        $region42: #{tpu_custom_call.1} parent=11 // pred_check_branch
          %355 = sbr.rel (%p353) target = $region44
        $region43: #{tpu_custom_call.1} parent=11 // pred_region
          _
        $region44: #{tpu_custom_call.1} parent=11 // pred_fallthru
          _
      $region12: #{tpu_custom_call.1} parent=5 // pred_fallthru
        _
      %p356 = scmp.lt.s32.totalorder %s23, 2
      // Predicated region
      $region45: #{tpu_custom_call.1} parent=5 // pred_check
        %p357 = pneg %p356
      $region46: #{tpu_custom_call.1} parent=5 // pred_check_branch
        %359 = sbr.rel (%p357) target = $region48
      $region47: #{tpu_custom_call.1} parent=5 // pred_region
        // Predicated region
        $region49: #{tpu_custom_call.1} parent=47 // pred_check
          %p360 = pneg %p43
        $region50: #{tpu_custom_call.1} parent=47 // pred_check_branch
          %362 = sbr.rel (%p360) target = $region52
        $region51: #{tpu_custom_call.1} parent=47 // pred_region
          %s363 = smul.u32 16, %s23
          %p364 = scmp.lt.s32.totalorder %s363, 31
          %s365 = scalar_select %p364, %s363, 31
          %s366 = smul.addr %s365, 2
          %s367 = smul.addr %s366, 8
          %s368 = scalar_lea.vmem %s0, %s367
          %s369 = smul.u32 16, %s23
        $region52: #{tpu_custom_call.1} parent=47 // pred_fallthru
          _
        // Predicated region
        $region53: #{tpu_custom_call.1} parent=47 // pred_check
          %p370 = pneg %p153
        $region54: #{tpu_custom_call.1} parent=47 // pred_check_branch
          %372 = sbr.rel (%p370) target = $region56
        $region55: #{tpu_custom_call.1} parent=47 // pred_region
          %s373 = smul.u32 16, %s23
          %p374 = scmp.lt.s32.totalorder %s373, 31
          %s375 = scalar_select %p374, %s373, 31
          %s376 = smul.addr %s375, 8
          %s377 = scalar_lea.vmem %s5, %s376
          %s378 = smul.u32 16, %s23
        $region56: #{tpu_custom_call.1} parent=47 // pred_fallthru
          _
      $region48: #{tpu_custom_call.1} parent=5 // pred_fallthru
        _
      %p379 = scmp.le.s32.totalorder 1, %s23
      %p380 = scmp.lt.s32.totalorder %s23, 3
      %p381 = pnand %p379, %p380
      %p382 = pneg %p381
      // Predicated region
      $region57: #{tpu_custom_call.1} parent=5 // pred_check
        _
      $region58: #{tpu_custom_call.1} parent=5 // pred_check_branch
        %384 = sbr.rel (%p381) target = $region60
      $region59: #{tpu_custom_call.1} parent=5 // pred_region
        %s385 = ssub.s32 %s23, 1
        // Predicated region
        $region61: #{tpu_custom_call.1} parent=59 // pred_check
          %p386 = pneg %p70
        $region62: #{tpu_custom_call.1} parent=59 // pred_check_branch
          %388 = sbr.rel (%p386) target = $region64
        $region63: #{tpu_custom_call.1} parent=59 // pred_region
          %390 = dma.done [#allocation3], 8192
        $region64: #{tpu_custom_call.1} parent=59 // pred_fallthru
          _
        // Predicated region
        $region65: #{tpu_custom_call.1} parent=59 // pred_check
          %p391 = pneg %p222
        $region66: #{tpu_custom_call.1} parent=59 // pred_check_branch
          %393 = sbr.rel (%p391) target = $region68
        $region67: #{tpu_custom_call.1} parent=59 // pred_region
          %395 = dma.done [#allocation6], 8192
        $region68: #{tpu_custom_call.1} parent=59 // pred_fallthru
          _
        %s396 = smul.u32 16, %s28
        %p397 = scmp.lt.s32.totalorder %s396, 31
        %s398 = scalar_select %p397, %s396, 31
        %s399 = smul.addr %s398, 2
        %s400 = smul.addr %s399, 8
        %s401 = scalar_lea.vmem %s0, %s400
        %p402 = pneg %p49
        %p403 = pneg %p46
        %p404 = pneg %p70
        %p405 = pneg %p67
        %p406 = pneg %p91
        %p407 = pneg %p88
        %p408 = pneg %p112
        %p409 = pneg %p109
        %p410 = pneg %p133
        %p411 = pneg %p130
        %s412 = smul.u32 16, %s28
        %p413 = scmp.lt.s32.totalorder %s412, 31
        %s414 = scalar_select %p413, %s412, 31
        %s415 = smul.addr %s414, 8
        %s416 = scalar_lea.vmem %s5, %s415
        %p417 = pneg %p159
        %p418 = pneg %p156
        %p419 = pneg %p180
        %p420 = pneg %p177
        %p421 = pneg %p201
        %p422 = pneg %p198
        %p423 = pneg %p222
        %p424 = pneg %p219
        %p425 = pneg %p243
        %p426 = pneg %p240
        %p427 = pneg %p269
        %p428 = pneg %p266
        %s429 = sand.u32 %s256, 1
        %s430 = scalar_lea.sflag [#allocation4], %s429
        %s431 = sand.u32 %s256, 1
        %s432 = smul.addr %s431, 256
        %s433 = scalar_lea.vmem [#allocation7], %s432
        %p434 = pneg %p295
        %p435 = pneg %p292
        %s436 = smul.u32 16, %s28
        %p437 = scmp.lt.s32.totalorder %s436, 31
        %s438 = scalar_select %p437, %s436, 31
        %s439 = smul.addr %s438, 8
        %s440 = scalar_lea.vmem %s11, %s439
        %s441 = smul.u32 16, %s28
        %p442 = scmp.lt.s32.totalorder %s441, 31
        %s443 = scalar_select %p442, %s441, 31
        %s444 = smul.addr %s443, 2
        %s445 = smul.addr %s444, 8
        %s446 = scalar_lea.vmem %s0, %s445
        %s447 = smul.u32 16, %s28
        %s448 = smul.u32 16, %s28
        %p449 = scmp.lt.s32.totalorder %s448, 31
        %s450 = scalar_select %p449, %s448, 31
        %s451 = smul.addr %s450, 8
        %s452 = scalar_lea.vmem %s5, %s451
        %s453 = smul.u32 16, %s28
        %s454 = smul.u32 16, %s28
        %s455 = smul.u32 16, %s28
        %p456 = scmp.lt.s32.totalorder %s455, 31
        %s457 = scalar_select %p456, %s455, 31
        %s458 = smul.addr %s457, 8
        %s459 = scalar_lea.vmem %s11, %s458
        %s460 = smul.u32 16, %s28
        %v462 = vld [vmem:[%s446] sm:$0xff]
        %v463 = vld [vmem:[%s446 + $0x8] sm:$0xff]
        %v464 = vld [vmem:[%s446 + $0x10] sm:$0xff]
        %v465 = vld [vmem:[%s446 + $0x18] sm:$0xff]
        %v466 = vld [vmem:[%s446 + $0x20] sm:$0xff]
        %v467 = vld [vmem:[%s446 + $0x28] sm:$0xff]
        %v468 = vld [vmem:[%s446 + $0x30] sm:$0xff]
        %v469 = vld [vmem:[%s446 + $0x38] sm:$0xff]
        %v470 = vld [vmem:[%s446 + $0x40] sm:$0xff]
        %v471 = vld [vmem:[%s446 + $0x48] sm:$0xff]
        %v472 = vld [vmem:[%s446 + $0x50] sm:$0xff]
        %v473 = vld [vmem:[%s446 + $0x58] sm:$0xff]
        %v474 = vld [vmem:[%s446 + $0x60] sm:$0xff]
        %v475 = vld [vmem:[%s446 + $0x68] sm:$0xff]
        %v476 = vld [vmem:[%s446 + $0x70] sm:$0xff]
        %v477 = vld [vmem:[%s446 + $0x78] sm:$0xff]
        %v478 = vld [vmem:[%s446 + $0x80] sm:$0xff]
        %v479 = vld [vmem:[%s446 + $0x88] sm:$0xff]
        %v480 = vld [vmem:[%s446 + $0x90] sm:$0xff]
        %v481 = vld [vmem:[%s446 + $0x98] sm:$0xff]
        %v482 = vld [vmem:[%s446 + $0xa0] sm:$0xff]
        %v483 = vld [vmem:[%s446 + $0xa8] sm:$0xff]
        %v484 = vld [vmem:[%s446 + $0xb0] sm:$0xff]
        %v485 = vld [vmem:[%s446 + $0xb8] sm:$0xff]
        %v486 = vld [vmem:[%s446 + $0xc0] sm:$0xff]
        %v487 = vld [vmem:[%s446 + $0xc8] sm:$0xff]
        %v488 = vld [vmem:[%s446 + $0xd0] sm:$0xff]
        %v489 = vld [vmem:[%s446 + $0xd8] sm:$0xff]
        %v490 = vld [vmem:[%s446 + $0xe0] sm:$0xff]
        %v491 = vld [vmem:[%s446 + $0xe8] sm:$0xff]
        %v492 = vld [vmem:[%s446 + $0xf0] sm:$0xff]
        %v493 = vld [vmem:[%s446 + $0xf8] sm:$0xff]
        %v494 = vpack.c.bf16 %v464, %v462
        %v495 = vpack.c.bf16 %v465, %v463
        %v496 = vpack.c.bf16 %v468, %v466
        %v497 = vpack.c.bf16 %v469, %v467
        %v498 = vpack.c.bf16 %v472, %v470
        %v499 = vpack.c.bf16 %v473, %v471
        %v500 = vpack.c.bf16 %v476, %v474
        %v501 = vpack.c.bf16 %v477, %v475
        %v502 = vpack.c.bf16 %v480, %v478
        %v503 = vpack.c.bf16 %v481, %v479
        %v504 = vpack.c.bf16 %v484, %v482
        %v505 = vpack.c.bf16 %v485, %v483
        %v506 = vpack.c.bf16 %v488, %v486
        %v507 = vpack.c.bf16 %v489, %v487
        %v508 = vpack.c.bf16 %v492, %v490
        %v509 = vpack.c.bf16 %v493, %v491
        %v510 = vld [vmem:[#allocation2] sm:$0xff]
        %v511 = vld [vmem:[#allocation2 + $0x8] sm:$0xff]
        %v512 = vld [vmem:[#allocation2 + $0x10] sm:$0xff]
        %v513 = vld [vmem:[#allocation2 + $0x18] sm:$0xff]
        %v514 = vld [vmem:[#allocation2 + $0x20] sm:$0xff]
        %v515 = vld [vmem:[#allocation2 + $0x28] sm:$0xff]
        %v516 = vld [vmem:[#allocation2 + $0x30] sm:$0xff]
        %v517 = vld [vmem:[#allocation2 + $0x38] sm:$0xff]
        %v518 = vld [vmem:[#allocation2 + $0x40] sm:$0xff]
        %v519 = vld [vmem:[#allocation2 + $0x48] sm:$0xff]
        %v520 = vld [vmem:[#allocation2 + $0x50] sm:$0xff]
        %v521 = vld [vmem:[#allocation2 + $0x58] sm:$0xff]
        %v522 = vld [vmem:[#allocation2 + $0x60] sm:$0xff]
        %v523 = vld [vmem:[#allocation2 + $0x68] sm:$0xff]
        %v524 = vld [vmem:[#allocation2 + $0x70] sm:$0xff]
        %v525 = vld [vmem:[#allocation2 + $0x78] sm:$0xff]
        %v526 = vld [vmem:[#allocation2 + $0x80] sm:$0xff]
        %v527 = vld [vmem:[#allocation2 + $0x88] sm:$0xff]
        %v528 = vld [vmem:[#allocation2 + $0x90] sm:$0xff]
        %v529 = vld [vmem:[#allocation2 + $0x98] sm:$0xff]
        %v530 = vld [vmem:[#allocation2 + $0xa0] sm:$0xff]
        %v531 = vld [vmem:[#allocation2 + $0xa8] sm:$0xff]
        %v532 = vld [vmem:[#allocation2 + $0xb0] sm:$0xff]
        %v533 = vld [vmem:[#allocation2 + $0xb8] sm:$0xff]
        %v534 = vld [vmem:[#allocation2 + $0xc0] sm:$0xff]
        %v535 = vld [vmem:[#allocation2 + $0xc8] sm:$0xff]
        %v536 = vld [vmem:[#allocation2 + $0xd0] sm:$0xff]
        %v537 = vld [vmem:[#allocation2 + $0xd8] sm:$0xff]
        %v538 = vld [vmem:[#allocation2 + $0xe0] sm:$0xff]
        %v539 = vld [vmem:[#allocation2 + $0xe8] sm:$0xff]
        %v540 = vld [vmem:[#allocation2 + $0xf0] sm:$0xff]
        %v541 = vld [vmem:[#allocation2 + $0xf8] sm:$0xff]
        %v542 = vld [vmem:[#allocation2 + $0x100] sm:$0xff]
        %v543 = vld [vmem:[#allocation2 + $0x108] sm:$0xff]
        %v544 = vld [vmem:[#allocation2 + $0x110] sm:$0xff]
        %v545 = vld [vmem:[#allocation2 + $0x118] sm:$0xff]
        %v546 = vld [vmem:[#allocation2 + $0x120] sm:$0xff]
        %v547 = vld [vmem:[#allocation2 + $0x128] sm:$0xff]
        %v548 = vld [vmem:[#allocation2 + $0x130] sm:$0xff]
        %v549 = vld [vmem:[#allocation2 + $0x138] sm:$0xff]
        %v550 = vld [vmem:[#allocation2 + $0x140] sm:$0xff]
        %v551 = vld [vmem:[#allocation2 + $0x148] sm:$0xff]
        %v552 = vld [vmem:[#allocation2 + $0x150] sm:$0xff]
        %v553 = vld [vmem:[#allocation2 + $0x158] sm:$0xff]
        %v554 = vld [vmem:[#allocation2 + $0x160] sm:$0xff]
        %v555 = vld [vmem:[#allocation2 + $0x168] sm:$0xff]
        %v556 = vld [vmem:[#allocation2 + $0x170] sm:$0xff]
        %v557 = vld [vmem:[#allocation2 + $0x178] sm:$0xff]
        %v558 = vld [vmem:[#allocation2 + $0x180] sm:$0xff]
        %v559 = vld [vmem:[#allocation2 + $0x188] sm:$0xff]
        %v560 = vld [vmem:[#allocation2 + $0x190] sm:$0xff]
        %v561 = vld [vmem:[#allocation2 + $0x198] sm:$0xff]
        %v562 = vld [vmem:[#allocation2 + $0x1a0] sm:$0xff]
        %v563 = vld [vmem:[#allocation2 + $0x1a8] sm:$0xff]
        %v564 = vld [vmem:[#allocation2 + $0x1b0] sm:$0xff]
        %v565 = vld [vmem:[#allocation2 + $0x1b8] sm:$0xff]
        %v566 = vld [vmem:[#allocation2 + $0x1c0] sm:$0xff]
        %v567 = vld [vmem:[#allocation2 + $0x1c8] sm:$0xff]
        %v568 = vld [vmem:[#allocation2 + $0x1d0] sm:$0xff]
        %v569 = vld [vmem:[#allocation2 + $0x1d8] sm:$0xff]
        %v570 = vld [vmem:[#allocation2 + $0x1e0] sm:$0xff]
        %v571 = vld [vmem:[#allocation2 + $0x1e8] sm:$0xff]
        %v572 = vld [vmem:[#allocation2 + $0x1f0] sm:$0xff]
        %v573 = vld [vmem:[#allocation2 + $0x1f8] sm:$0xff]
        %v574 = vld [vmem:[%s2] sm:$0xf]
        %v576 = vperm.slane %v574, 0
        %v577 = vperm.slane %v574, 1
        %v578 = vperm.slane %v574, 2
        %v579 = vperm.slane %v574, 3
        %v648 = vunpack.c.l.b16 %v510
        %v649 = vunpack.c.h.b16 %v510
        %v650 = vunpack.c.l.b16 %v511
        %v651 = vunpack.c.h.b16 %v511
        %v652 = vunpack.c.l.b16 %v512
        %v653 = vunpack.c.h.b16 %v512
        %v654 = vunpack.c.l.b16 %v513
        %v655 = vunpack.c.h.b16 %v513
        %v656 = vunpack.c.l.b16 %v514
        %v657 = vunpack.c.h.b16 %v514
        %v658 = vunpack.c.l.b16 %v515
        %v659 = vunpack.c.h.b16 %v515
        %v660 = vunpack.c.l.b16 %v516
        %v661 = vunpack.c.h.b16 %v516
        %v662 = vunpack.c.l.b16 %v517
        %v663 = vunpack.c.h.b16 %v517
        %v664 = vunpack.c.l.b16 %v518
        %v665 = vunpack.c.h.b16 %v518
        %v666 = vunpack.c.l.b16 %v519
        %v667 = vunpack.c.h.b16 %v519
        %v668 = vunpack.c.l.b16 %v520
        %v669 = vunpack.c.h.b16 %v520
        %v670 = vunpack.c.l.b16 %v521
        %v671 = vunpack.c.h.b16 %v521
        %v672 = vunpack.c.l.b16 %v522
        %v673 = vunpack.c.h.b16 %v522
        %v674 = vunpack.c.l.b16 %v523
        %v675 = vunpack.c.h.b16 %v523
        %v676 = vunpack.c.l.b16 %v524
        %v677 = vunpack.c.h.b16 %v524
        %v678 = vunpack.c.l.b16 %v525
        %v679 = vunpack.c.h.b16 %v525
        %v680 = vunpack.c.l.b16 %v526
        %v681 = vunpack.c.h.b16 %v526
        %v682 = vunpack.c.l.b16 %v527
        %v683 = vunpack.c.h.b16 %v527
        %v684 = vunpack.c.l.b16 %v528
        %v685 = vunpack.c.h.b16 %v528
        %v686 = vunpack.c.l.b16 %v529
        %v687 = vunpack.c.h.b16 %v529
        %v688 = vunpack.c.l.b16 %v530
        %v689 = vunpack.c.h.b16 %v530
        %v690 = vunpack.c.l.b16 %v531
        %v691 = vunpack.c.h.b16 %v531
        %v692 = vunpack.c.l.b16 %v532
        %v693 = vunpack.c.h.b16 %v532
        %v694 = vunpack.c.l.b16 %v533
        %v695 = vunpack.c.h.b16 %v533
        %v696 = vunpack.c.l.b16 %v534
        %v697 = vunpack.c.h.b16 %v534
        %v698 = vunpack.c.l.b16 %v535
        %v699 = vunpack.c.h.b16 %v535
        %v700 = vunpack.c.l.b16 %v536
        %v701 = vunpack.c.h.b16 %v536
        %v702 = vunpack.c.l.b16 %v537
        %v703 = vunpack.c.h.b16 %v537
        %v704 = vunpack.c.l.b16 %v538
        %v705 = vunpack.c.h.b16 %v538
        %v706 = vunpack.c.l.b16 %v539
        %v707 = vunpack.c.h.b16 %v539
        %v708 = vunpack.c.l.b16 %v540
        %v709 = vunpack.c.h.b16 %v540
        %v710 = vunpack.c.l.b16 %v541
        %v711 = vunpack.c.h.b16 %v541
        %v712 = vunpack.c.l.b16 %v542
        %v713 = vunpack.c.h.b16 %v542
        %v714 = vunpack.c.l.b16 %v543
        %v715 = vunpack.c.h.b16 %v543
        %v716 = vunpack.c.l.b16 %v544
        %v717 = vunpack.c.h.b16 %v544
        %v718 = vunpack.c.l.b16 %v545
        %v719 = vunpack.c.h.b16 %v545
        %v720 = vunpack.c.l.b16 %v546
        %v721 = vunpack.c.h.b16 %v546
        %v722 = vunpack.c.l.b16 %v547
        %v723 = vunpack.c.h.b16 %v547
        %v724 = vunpack.c.l.b16 %v548
        %v725 = vunpack.c.h.b16 %v548
        %v726 = vunpack.c.l.b16 %v549
        %v727 = vunpack.c.h.b16 %v549
        %v728 = vunpack.c.l.b16 %v550
        %v729 = vunpack.c.h.b16 %v550
        %v730 = vunpack.c.l.b16 %v551
        %v731 = vunpack.c.h.b16 %v551
        %v732 = vunpack.c.l.b16 %v552
        %v733 = vunpack.c.h.b16 %v552
        %v734 = vunpack.c.l.b16 %v553
        %v735 = vunpack.c.h.b16 %v553
        %v736 = vunpack.c.l.b16 %v554
        %v737 = vunpack.c.h.b16 %v554
        %v738 = vunpack.c.l.b16 %v555
        %v739 = vunpack.c.h.b16 %v555
        %v740 = vunpack.c.l.b16 %v556
        %v741 = vunpack.c.h.b16 %v556
        %v742 = vunpack.c.l.b16 %v557
        %v743 = vunpack.c.h.b16 %v557
        %v744 = vunpack.c.l.b16 %v558
        %v745 = vunpack.c.h.b16 %v558
        %v746 = vunpack.c.l.b16 %v559
        %v747 = vunpack.c.h.b16 %v559
        %v748 = vunpack.c.l.b16 %v560
        %v749 = vunpack.c.h.b16 %v560
        %v750 = vunpack.c.l.b16 %v561
        %v751 = vunpack.c.h.b16 %v561
        %v752 = vunpack.c.l.b16 %v562
        %v753 = vunpack.c.h.b16 %v562
        %v754 = vunpack.c.l.b16 %v563
        %v755 = vunpack.c.h.b16 %v563
        %v756 = vunpack.c.l.b16 %v564
        %v757 = vunpack.c.h.b16 %v564
        %v758 = vunpack.c.l.b16 %v565
        %v759 = vunpack.c.h.b16 %v565
        %v760 = vunpack.c.l.b16 %v566
        %v761 = vunpack.c.h.b16 %v566
        %v762 = vunpack.c.l.b16 %v567
        %v763 = vunpack.c.h.b16 %v567
        %v764 = vunpack.c.l.b16 %v568
        %v765 = vunpack.c.h.b16 %v568
        %v766 = vunpack.c.l.b16 %v569
        %v767 = vunpack.c.h.b16 %v569
        %v768 = vunpack.c.l.b16 %v570
        %v769 = vunpack.c.h.b16 %v570
        %v770 = vunpack.c.l.b16 %v571
        %v771 = vunpack.c.h.b16 %v571
        %v772 = vunpack.c.l.b16 %v572
        %v773 = vunpack.c.h.b16 %v572
        %v774 = vunpack.c.l.b16 %v573
        %v775 = vunpack.c.h.b16 %v573
        %v776 = vpack.c.b16 %v652, %v648
        %v777 = vpack.c.b16 %v653, %v649
        %v778 = vpack.c.b16 %v654, %v650
        %v779 = vpack.c.b16 %v655, %v651
        %v780 = vpack.c.b16 %v660, %v656
        %v781 = vpack.c.b16 %v661, %v657
        %v782 = vpack.c.b16 %v662, %v658
        %v783 = vpack.c.b16 %v663, %v659
        %v784 = vpack.c.b16 %v668, %v664
        %v785 = vpack.c.b16 %v669, %v665
        %v786 = vpack.c.b16 %v670, %v666
        %v787 = vpack.c.b16 %v671, %v667
        %v788 = vpack.c.b16 %v676, %v672
        %v789 = vpack.c.b16 %v677, %v673
        %v790 = vpack.c.b16 %v678, %v674
        %v791 = vpack.c.b16 %v679, %v675
        %v792 = vpack.c.b16 %v684, %v680
        %v793 = vpack.c.b16 %v685, %v681
        %v794 = vpack.c.b16 %v686, %v682
        %v795 = vpack.c.b16 %v687, %v683
        %v796 = vpack.c.b16 %v692, %v688
        %v797 = vpack.c.b16 %v693, %v689
        %v798 = vpack.c.b16 %v694, %v690
        %v799 = vpack.c.b16 %v695, %v691
        %v800 = vpack.c.b16 %v700, %v696
        %v801 = vpack.c.b16 %v701, %v697
        %v802 = vpack.c.b16 %v702, %v698
        %v803 = vpack.c.b16 %v703, %v699
        %v804 = vpack.c.b16 %v708, %v704
        %v805 = vpack.c.b16 %v709, %v705
        %v806 = vpack.c.b16 %v710, %v706
        %v807 = vpack.c.b16 %v711, %v707
        %v808 = vpack.c.b16 %v716, %v712
        %v809 = vpack.c.b16 %v717, %v713
        %v810 = vpack.c.b16 %v718, %v714
        %v811 = vpack.c.b16 %v719, %v715
        %v812 = vpack.c.b16 %v724, %v720
        %v813 = vpack.c.b16 %v725, %v721
        %v814 = vpack.c.b16 %v726, %v722
        %v815 = vpack.c.b16 %v727, %v723
        %v816 = vpack.c.b16 %v732, %v728
        %v817 = vpack.c.b16 %v733, %v729
        %v818 = vpack.c.b16 %v734, %v730
        %v819 = vpack.c.b16 %v735, %v731
        %v820 = vpack.c.b16 %v740, %v736
        %v821 = vpack.c.b16 %v741, %v737
        %v822 = vpack.c.b16 %v742, %v738
        %v823 = vpack.c.b16 %v743, %v739
        %v824 = vpack.c.b16 %v748, %v744
        %v825 = vpack.c.b16 %v749, %v745
        %v826 = vpack.c.b16 %v750, %v746
        %v827 = vpack.c.b16 %v751, %v747
        %v828 = vpack.c.b16 %v756, %v752
        %v829 = vpack.c.b16 %v757, %v753
        %v830 = vpack.c.b16 %v758, %v754
        %v831 = vpack.c.b16 %v759, %v755
        %v832 = vpack.c.b16 %v764, %v760
        %v833 = vpack.c.b16 %v765, %v761
        %v834 = vpack.c.b16 %v766, %v762
        %v835 = vpack.c.b16 %v767, %v763
        %v836 = vpack.c.b16 %v772, %v768
        %v837 = vpack.c.b16 %v773, %v769
        %v838 = vpack.c.b16 %v774, %v770
        %v839 = vpack.c.b16 %v775, %v771
        %904 = vmatpush.bf16.msra.mxu0 %v804
        %905 = vmatpush.bf16.msra.mxu0 %v800
        %906 = vmatpush.bf16.msra.mxu0 %v796
        %907 = vmatpush.bf16.msra.mxu0 %v792
        %908 = vmatpush.bf16.msra.mxu0 %v788
        %909 = vmatpush.bf16.msra.mxu0 %v784
        %910 = vmatpush.bf16.msra.mxu0 %v780
        %911 = vmatpush.bf16.msra.mxu0 %v776
        %912 = vmatmul.bf16.gmra.mxu0 %v494
        %v913 = vpop.f32.mrf.mxu0
        %v914 = vadd.f32 %v576, %v913
        %v915 = vpop.f32.mrf.mxu0
        %v916 = vadd.f32 %v576, %v915
        %917 = vmatmul.bf16.gmra.mxu0 %v496
        %v918 = vpop.f32.mrf.mxu0
        %v919 = vadd.f32 %v576, %v918
        %v920 = vpop.f32.mrf.mxu0
        %v921 = vadd.f32 %v576, %v920
        %922 = vmatmul.bf16.gmra.mxu0 %v498
        %v923 = vpop.f32.mrf.mxu0
        %v924 = vadd.f32 %v576, %v923
        %v925 = vpop.f32.mrf.mxu0
        %v926 = vadd.f32 %v576, %v925
        %927 = vmatmul.bf16.gmra.mxu0 %v500
        %v928 = vpop.f32.mrf.mxu0
        %v929 = vadd.f32 %v576, %v928
        %v930 = vpop.f32.mrf.mxu0
        %v931 = vadd.f32 %v576, %v930
        %932 = vmatmul.bf16.gmra.mxu0 %v502
        %v933 = vpop.f32.mrf.mxu0
        %v934 = vadd.f32 %v576, %v933
        %v935 = vpop.f32.mrf.mxu0
        %v936 = vadd.f32 %v576, %v935
        %937 = vmatmul.bf16.gmra.mxu0 %v504
        %v938 = vpop.f32.mrf.mxu0
        %v939 = vadd.f32 %v576, %v938
        %v940 = vpop.f32.mrf.mxu0
        %v941 = vadd.f32 %v576, %v940
        %942 = vmatmul.bf16.gmra.mxu0 %v506
        %v943 = vpop.f32.mrf.mxu0
        %v944 = vadd.f32 %v576, %v943
        %v945 = vpop.f32.mrf.mxu0
        %v946 = vadd.f32 %v576, %v945
        %947 = vmatmul.bf16.gmra.mxu0 %v508
        %v948 = vpop.f32.mrf.mxu0
        %v949 = vadd.f32 %v576, %v948
        %v950 = vpop.f32.mrf.mxu0
        %v951 = vadd.f32 %v576, %v950
        %952 = vdwg.mxu0
        %953 = vmatpush.bf16.msra.mxu0 %v836
        %954 = vmatpush.bf16.msra.mxu0 %v832
        %955 = vmatpush.bf16.msra.mxu0 %v828
        %956 = vmatpush.bf16.msra.mxu0 %v824
        %957 = vmatpush.bf16.msra.mxu0 %v820
        %958 = vmatpush.bf16.msra.mxu0 %v816
        %959 = vmatpush.bf16.msra.mxu0 %v812
        %960 = vmatpush.bf16.msra.mxu0 %v808
        %961 = vmatmul.bf16.gmra.mxu0 %v495
        %v962 = vpop.f32.mrf.mxu0
        %v963 = vadd.f32 %v914, %v962
        %v964 = vpop.f32.mrf.mxu0
        %v965 = vadd.f32 %v916, %v964
        %966 = vmatmul.bf16.gmra.mxu0 %v497
        %v967 = vpop.f32.mrf.mxu0
        %v968 = vadd.f32 %v919, %v967
        %v969 = vpop.f32.mrf.mxu0
        %v970 = vadd.f32 %v921, %v969
        %971 = vmatmul.bf16.gmra.mxu0 %v499
        %v972 = vpop.f32.mrf.mxu0
        %v973 = vadd.f32 %v924, %v972
        %v974 = vpop.f32.mrf.mxu0
        %v975 = vadd.f32 %v926, %v974
        %976 = vmatmul.bf16.gmra.mxu0 %v501
        %v977 = vpop.f32.mrf.mxu0
        %v978 = vadd.f32 %v929, %v977
        %v979 = vpop.f32.mrf.mxu0
        %v980 = vadd.f32 %v931, %v979
        %981 = vmatmul.bf16.gmra.mxu0 %v503
        %v982 = vpop.f32.mrf.mxu0
        %v983 = vadd.f32 %v934, %v982
        %v984 = vpop.f32.mrf.mxu0
        %v985 = vadd.f32 %v936, %v984
        %986 = vmatmul.bf16.gmra.mxu0 %v505
        %v987 = vpop.f32.mrf.mxu0
        %v988 = vadd.f32 %v939, %v987
        %v989 = vpop.f32.mrf.mxu0
        %v990 = vadd.f32 %v941, %v989
        %991 = vmatmul.bf16.gmra.mxu0 %v507
        %v992 = vpop.f32.mrf.mxu0
        %v993 = vadd.f32 %v944, %v992
        %v994 = vpop.f32.mrf.mxu0
        %v995 = vadd.f32 %v946, %v994
        %996 = vmatmul.bf16.gmra.mxu0 %v509
        %v997 = vpop.f32.mrf.mxu0
        %v998 = vadd.f32 %v949, %v997
        %v999 = vpop.f32.mrf.mxu0
        %v1000 = vadd.f32 %v951, %v999
        %1001 = vdwg.mxu0
        %1002 = vmatpush.bf16.msra.mxu0 %v805
        %1003 = vmatpush.bf16.msra.mxu0 %v801
        %1004 = vmatpush.bf16.msra.mxu0 %v797
        %1005 = vmatpush.bf16.msra.mxu0 %v793
        %1006 = vmatpush.bf16.msra.mxu0 %v789
        %1007 = vmatpush.bf16.msra.mxu0 %v785
        %1008 = vmatpush.bf16.msra.mxu0 %v781
        %1009 = vmatpush.bf16.msra.mxu0 %v777
        %1010 = vmatmul.bf16.gmra.mxu0 %v494
        %v1011 = vpop.f32.mrf.mxu0
        %v1012 = vadd.f32 %v577, %v1011
        %v1013 = vpop.f32.mrf.mxu0
        %v1014 = vadd.f32 %v577, %v1013
        %1015 = vmatmul.bf16.gmra.mxu0 %v496
        %v1016 = vpop.f32.mrf.mxu0
        %v1017 = vadd.f32 %v577, %v1016
        %v1018 = vpop.f32.mrf.mxu0
        %v1019 = vadd.f32 %v577, %v1018
        %1020 = vmatmul.bf16.gmra.mxu0 %v498
        %v1021 = vpop.f32.mrf.mxu0
        %v1022 = vadd.f32 %v577, %v1021
        %v1023 = vpop.f32.mrf.mxu0
        %v1024 = vadd.f32 %v577, %v1023
        %1025 = vmatmul.bf16.gmra.mxu0 %v500
        %v1026 = vpop.f32.mrf.mxu0
        %v1027 = vadd.f32 %v577, %v1026
        %v1028 = vpop.f32.mrf.mxu0
        %v1029 = vadd.f32 %v577, %v1028
        %1030 = vmatmul.bf16.gmra.mxu0 %v502
        %v1031 = vpop.f32.mrf.mxu0
        %v1032 = vadd.f32 %v577, %v1031
        %v1033 = vpop.f32.mrf.mxu0
        %v1034 = vadd.f32 %v577, %v1033
        %1035 = vmatmul.bf16.gmra.mxu0 %v504
        %v1036 = vpop.f32.mrf.mxu0
        %v1037 = vadd.f32 %v577, %v1036
        %v1038 = vpop.f32.mrf.mxu0
        %v1039 = vadd.f32 %v577, %v1038
        %1040 = vmatmul.bf16.gmra.mxu0 %v506
        %v1041 = vpop.f32.mrf.mxu0
        %v1042 = vadd.f32 %v577, %v1041
        %v1043 = vpop.f32.mrf.mxu0
        %v1044 = vadd.f32 %v577, %v1043
        %1045 = vmatmul.bf16.gmra.mxu0 %v508
        %v1046 = vpop.f32.mrf.mxu0
        %v1047 = vadd.f32 %v577, %v1046
        %v1048 = vpop.f32.mrf.mxu0
        %v1049 = vadd.f32 %v577, %v1048
        %1050 = vdwg.mxu0
        %1051 = vmatpush.bf16.msra.mxu0 %v837
        %1052 = vmatpush.bf16.msra.mxu0 %v833
        %1053 = vmatpush.bf16.msra.mxu0 %v829
        %1054 = vmatpush.bf16.msra.mxu0 %v825
        %1055 = vmatpush.bf16.msra.mxu0 %v821
        %1056 = vmatpush.bf16.msra.mxu0 %v817
        %1057 = vmatpush.bf16.msra.mxu0 %v813
        %1058 = vmatpush.bf16.msra.mxu0 %v809
        %1059 = vmatmul.bf16.gmra.mxu0 %v495
        %v1060 = vpop.f32.mrf.mxu0
        %v1061 = vadd.f32 %v1012, %v1060
        %v1062 = vpop.f32.mrf.mxu0
        %v1063 = vadd.f32 %v1014, %v1062
        %1064 = vmatmul.bf16.gmra.mxu0 %v497
        %v1065 = vpop.f32.mrf.mxu0
        %v1066 = vadd.f32 %v1017, %v1065
        %v1067 = vpop.f32.mrf.mxu0
        %v1068 = vadd.f32 %v1019, %v1067
        %1069 = vmatmul.bf16.gmra.mxu0 %v499
        %v1070 = vpop.f32.mrf.mxu0
        %v1071 = vadd.f32 %v1022, %v1070
        %v1072 = vpop.f32.mrf.mxu0
        %v1073 = vadd.f32 %v1024, %v1072
        %1074 = vmatmul.bf16.gmra.mxu0 %v501
        %v1075 = vpop.f32.mrf.mxu0
        %v1076 = vadd.f32 %v1027, %v1075
        %v1077 = vpop.f32.mrf.mxu0
        %v1078 = vadd.f32 %v1029, %v1077
        %1079 = vmatmul.bf16.gmra.mxu0 %v503
        %v1080 = vpop.f32.mrf.mxu0
        %v1081 = vadd.f32 %v1032, %v1080
        %v1082 = vpop.f32.mrf.mxu0
        %v1083 = vadd.f32 %v1034, %v1082
        %1084 = vmatmul.bf16.gmra.mxu0 %v505
        %v1085 = vpop.f32.mrf.mxu0
        %v1086 = vadd.f32 %v1037, %v1085
        %v1087 = vpop.f32.mrf.mxu0
        %v1088 = vadd.f32 %v1039, %v1087
        %1089 = vmatmul.bf16.gmra.mxu0 %v507
        %v1090 = vpop.f32.mrf.mxu0
        %v1091 = vadd.f32 %v1042, %v1090
        %v1092 = vpop.f32.mrf.mxu0
        %v1093 = vadd.f32 %v1044, %v1092
        %1094 = vmatmul.bf16.gmra.mxu0 %v509
        %v1095 = vpop.f32.mrf.mxu0
        %v1096 = vadd.f32 %v1047, %v1095
        %v1097 = vpop.f32.mrf.mxu0
        %v1098 = vadd.f32 %v1049, %v1097
        %1099 = vdwg.mxu0
        %1100 = vmatpush.bf16.msra.mxu0 %v806
        %1101 = vmatpush.bf16.msra.mxu0 %v802
        %1102 = vmatpush.bf16.msra.mxu0 %v798
        %1103 = vmatpush.bf16.msra.mxu0 %v794
        %1104 = vmatpush.bf16.msra.mxu0 %v790
        %1105 = vmatpush.bf16.msra.mxu0 %v786
        %1106 = vmatpush.bf16.msra.mxu0 %v782
        %1107 = vmatpush.bf16.msra.mxu0 %v778
        %1108 = vmatmul.bf16.gmra.mxu0 %v494
        %v1109 = vpop.f32.mrf.mxu0
        %v1110 = vadd.f32 %v578, %v1109
        %v1111 = vpop.f32.mrf.mxu0
        %v1112 = vadd.f32 %v578, %v1111
        %1113 = vmatmul.bf16.gmra.mxu0 %v496
        %v1114 = vpop.f32.mrf.mxu0
        %v1115 = vadd.f32 %v578, %v1114
        %v1116 = vpop.f32.mrf.mxu0
        %v1117 = vadd.f32 %v578, %v1116
        %1118 = vmatmul.bf16.gmra.mxu0 %v498
        %v1119 = vpop.f32.mrf.mxu0
        %v1120 = vadd.f32 %v578, %v1119
        %v1121 = vpop.f32.mrf.mxu0
        %v1122 = vadd.f32 %v578, %v1121
        %1123 = vmatmul.bf16.gmra.mxu0 %v500
        %v1124 = vpop.f32.mrf.mxu0
        %v1125 = vadd.f32 %v578, %v1124
        %v1126 = vpop.f32.mrf.mxu0
        %v1127 = vadd.f32 %v578, %v1126
        %1128 = vmatmul.bf16.gmra.mxu0 %v502
        %v1129 = vpop.f32.mrf.mxu0
        %v1130 = vadd.f32 %v578, %v1129
        %v1131 = vpop.f32.mrf.mxu0
        %v1132 = vadd.f32 %v578, %v1131
        %1133 = vmatmul.bf16.gmra.mxu0 %v504
        %v1134 = vpop.f32.mrf.mxu0
        %v1135 = vadd.f32 %v578, %v1134
        %v1136 = vpop.f32.mrf.mxu0
        %v1137 = vadd.f32 %v578, %v1136
        %1138 = vmatmul.bf16.gmra.mxu0 %v506
        %v1139 = vpop.f32.mrf.mxu0
        %v1140 = vadd.f32 %v578, %v1139
        %v1141 = vpop.f32.mrf.mxu0
        %v1142 = vadd.f32 %v578, %v1141
        %1143 = vmatmul.bf16.gmra.mxu0 %v508
        %v1144 = vpop.f32.mrf.mxu0
        %v1145 = vadd.f32 %v578, %v1144
        %v1146 = vpop.f32.mrf.mxu0
        %v1147 = vadd.f32 %v578, %v1146
        %1148 = vdwg.mxu0
        %1149 = vmatpush.bf16.msra.mxu0 %v838
        %1150 = vmatpush.bf16.msra.mxu0 %v834
        %1151 = vmatpush.bf16.msra.mxu0 %v830
        %1152 = vmatpush.bf16.msra.mxu0 %v826
        %1153 = vmatpush.bf16.msra.mxu0 %v822
        %1154 = vmatpush.bf16.msra.mxu0 %v818
        %1155 = vmatpush.bf16.msra.mxu0 %v814
        %1156 = vmatpush.bf16.msra.mxu0 %v810
        %1157 = vmatmul.bf16.gmra.mxu0 %v495
        %v1158 = vpop.f32.mrf.mxu0
        %v1159 = vadd.f32 %v1110, %v1158
        %v1160 = vpop.f32.mrf.mxu0
        %v1161 = vadd.f32 %v1112, %v1160
        %1162 = vmatmul.bf16.gmra.mxu0 %v497
        %v1163 = vpop.f32.mrf.mxu0
        %v1164 = vadd.f32 %v1115, %v1163
        %v1165 = vpop.f32.mrf.mxu0
        %v1166 = vadd.f32 %v1117, %v1165
        %1167 = vmatmul.bf16.gmra.mxu0 %v499
        %v1168 = vpop.f32.mrf.mxu0
        %v1169 = vadd.f32 %v1120, %v1168
        %v1170 = vpop.f32.mrf.mxu0
        %v1171 = vadd.f32 %v1122, %v1170
        %1172 = vmatmul.bf16.gmra.mxu0 %v501
        %v1173 = vpop.f32.mrf.mxu0
        %v1174 = vadd.f32 %v1125, %v1173
        %v1175 = vpop.f32.mrf.mxu0
        %v1176 = vadd.f32 %v1127, %v1175
        %1177 = vmatmul.bf16.gmra.mxu0 %v503
        %v1178 = vpop.f32.mrf.mxu0
        %v1179 = vadd.f32 %v1130, %v1178
        %v1180 = vpop.f32.mrf.mxu0
        %v1181 = vadd.f32 %v1132, %v1180
        %1182 = vmatmul.bf16.gmra.mxu0 %v505
        %v1183 = vpop.f32.mrf.mxu0
        %v1184 = vadd.f32 %v1135, %v1183
        %v1185 = vpop.f32.mrf.mxu0
        %v1186 = vadd.f32 %v1137, %v1185
        %1187 = vmatmul.bf16.gmra.mxu0 %v507
        %v1188 = vpop.f32.mrf.mxu0
        %v1189 = vadd.f32 %v1140, %v1188
        %v1190 = vpop.f32.mrf.mxu0
        %v1191 = vadd.f32 %v1142, %v1190
        %1192 = vmatmul.bf16.gmra.mxu0 %v509
        %v1193 = vpop.f32.mrf.mxu0
        %v1194 = vadd.f32 %v1145, %v1193
        %v1195 = vpop.f32.mrf.mxu0
        %v1196 = vadd.f32 %v1147, %v1195
        %1197 = vdwg.mxu0
        %1198 = vmatpush.bf16.msra.mxu0 %v807
        %1199 = vmatpush.bf16.msra.mxu0 %v803
        %1200 = vmatpush.bf16.msra.mxu0 %v799
        %1201 = vmatpush.bf16.msra.mxu0 %v795
        %1202 = vmatpush.bf16.msra.mxu0 %v791
        %1203 = vmatpush.bf16.msra.mxu0 %v787
        %1204 = vmatpush.bf16.msra.mxu0 %v783
        %1205 = vmatpush.bf16.msra.mxu0 %v779
        %1206 = vmatmul.bf16.gmra.mxu0 %v494
        %v1207 = vpop.f32.mrf.mxu0
        %v1208 = vadd.f32 %v579, %v1207
        %v1209 = vpop.f32.mrf.mxu0
        %v1210 = vadd.f32 %v579, %v1209
        %1211 = vmatmul.bf16.gmra.mxu0 %v496
        %v1212 = vpop.f32.mrf.mxu0
        %v1213 = vadd.f32 %v579, %v1212
        %v1214 = vpop.f32.mrf.mxu0
        %v1215 = vadd.f32 %v579, %v1214
        %1216 = vmatmul.bf16.gmra.mxu0 %v498
        %v1217 = vpop.f32.mrf.mxu0
        %v1218 = vadd.f32 %v579, %v1217
        %v1219 = vpop.f32.mrf.mxu0
        %v1220 = vadd.f32 %v579, %v1219
        %1221 = vmatmul.bf16.gmra.mxu0 %v500
        %v1222 = vpop.f32.mrf.mxu0
        %v1223 = vadd.f32 %v579, %v1222
        %v1224 = vpop.f32.mrf.mxu0
        %v1225 = vadd.f32 %v579, %v1224
        %1226 = vmatmul.bf16.gmra.mxu0 %v502
        %v1227 = vpop.f32.mrf.mxu0
        %v1228 = vadd.f32 %v579, %v1227
        %v1229 = vpop.f32.mrf.mxu0
        %v1230 = vadd.f32 %v579, %v1229
        %1231 = vmatmul.bf16.gmra.mxu0 %v504
        %v1232 = vpop.f32.mrf.mxu0
        %v1233 = vadd.f32 %v579, %v1232
        %v1234 = vpop.f32.mrf.mxu0
        %v1235 = vadd.f32 %v579, %v1234
        %1236 = vmatmul.bf16.gmra.mxu0 %v506
        %v1237 = vpop.f32.mrf.mxu0
        %v1238 = vadd.f32 %v579, %v1237
        %v1239 = vpop.f32.mrf.mxu0
        %v1240 = vadd.f32 %v579, %v1239
        %1241 = vmatmul.bf16.gmra.mxu0 %v508
        %v1242 = vpop.f32.mrf.mxu0
        %v1243 = vadd.f32 %v579, %v1242
        %v1244 = vpop.f32.mrf.mxu0
        %v1245 = vadd.f32 %v579, %v1244
        %1246 = vdwg.mxu0
        %1247 = vmatpush.bf16.msra.mxu0 %v839
        %1248 = vmatpush.bf16.msra.mxu0 %v835
        %1249 = vmatpush.bf16.msra.mxu0 %v831
        %1250 = vmatpush.bf16.msra.mxu0 %v827
        %1251 = vmatpush.bf16.msra.mxu0 %v823
        %1252 = vmatpush.bf16.msra.mxu0 %v819
        %1253 = vmatpush.bf16.msra.mxu0 %v815
        %1254 = vmatpush.bf16.msra.mxu0 %v811
        %1255 = vmatmul.bf16.gmra.mxu0 %v495
        %v1256 = vpop.f32.mrf.mxu0
        %v1257 = vadd.f32 %v1208, %v1256
        %v1258 = vpop.f32.mrf.mxu0
        %v1259 = vadd.f32 %v1210, %v1258
        %1260 = vmatmul.bf16.gmra.mxu0 %v497
        %v1261 = vpop.f32.mrf.mxu0
        %v1262 = vadd.f32 %v1213, %v1261
        %v1263 = vpop.f32.mrf.mxu0
        %v1264 = vadd.f32 %v1215, %v1263
        %1265 = vmatmul.bf16.gmra.mxu0 %v499
        %v1266 = vpop.f32.mrf.mxu0
        %v1267 = vadd.f32 %v1218, %v1266
        %v1268 = vpop.f32.mrf.mxu0
        %v1269 = vadd.f32 %v1220, %v1268
        %1270 = vmatmul.bf16.gmra.mxu0 %v501
        %v1271 = vpop.f32.mrf.mxu0
        %v1272 = vadd.f32 %v1223, %v1271
        %v1273 = vpop.f32.mrf.mxu0
        %v1274 = vadd.f32 %v1225, %v1273
        %1275 = vmatmul.bf16.gmra.mxu0 %v503
        %v1276 = vpop.f32.mrf.mxu0
        %v1277 = vadd.f32 %v1228, %v1276
        %v1278 = vpop.f32.mrf.mxu0
        %v1279 = vadd.f32 %v1230, %v1278
        %1280 = vmatmul.bf16.gmra.mxu0 %v505
        %v1281 = vpop.f32.mrf.mxu0
        %v1282 = vadd.f32 %v1233, %v1281
        %v1283 = vpop.f32.mrf.mxu0
        %v1284 = vadd.f32 %v1235, %v1283
        %1285 = vmatmul.bf16.gmra.mxu0 %v507
        %v1286 = vpop.f32.mrf.mxu0
        %v1287 = vadd.f32 %v1238, %v1286
        %v1288 = vpop.f32.mrf.mxu0
        %v1289 = vadd.f32 %v1240, %v1288
        %1290 = vmatmul.bf16.gmra.mxu0 %v509
        %v1291 = vpop.f32.mrf.mxu0
        %v1292 = vadd.f32 %v1243, %v1291
        %v1293 = vpop.f32.mrf.mxu0
        %v1294 = vadd.f32 %v1245, %v1293
        %1295 = vdwg.mxu0
        %v1296 = vmax.f32 %v963, 0.0
        %v1297 = vmax.f32 %v1061, 0.0
        %v1298 = vmax.f32 %v1159, 0.0
        %v1299 = vmax.f32 %v1257, 0.0
        %v1300 = vmax.f32 %v965, 0.0
        %v1301 = vmax.f32 %v1063, 0.0
        %v1302 = vmax.f32 %v1161, 0.0
        %v1303 = vmax.f32 %v1259, 0.0
        %v1304 = vmax.f32 %v968, 0.0
        %v1305 = vmax.f32 %v1066, 0.0
        %v1306 = vmax.f32 %v1164, 0.0
        %v1307 = vmax.f32 %v1262, 0.0
        %v1308 = vmax.f32 %v970, 0.0
        %v1309 = vmax.f32 %v1068, 0.0
        %v1310 = vmax.f32 %v1166, 0.0
        %v1311 = vmax.f32 %v1264, 0.0
        %v1312 = vmax.f32 %v973, 0.0
        %v1313 = vmax.f32 %v1071, 0.0
        %v1314 = vmax.f32 %v1169, 0.0
        %v1315 = vmax.f32 %v1267, 0.0
        %v1316 = vmax.f32 %v975, 0.0
        %v1317 = vmax.f32 %v1073, 0.0
        %v1318 = vmax.f32 %v1171, 0.0
        %v1319 = vmax.f32 %v1269, 0.0
        %v1320 = vmax.f32 %v978, 0.0
        %v1321 = vmax.f32 %v1076, 0.0
        %v1322 = vmax.f32 %v1174, 0.0
        %v1323 = vmax.f32 %v1272, 0.0
        %v1324 = vmax.f32 %v980, 0.0
        %v1325 = vmax.f32 %v1078, 0.0
        %v1326 = vmax.f32 %v1176, 0.0
        %v1327 = vmax.f32 %v1274, 0.0
        %v1328 = vmax.f32 %v983, 0.0
        %v1329 = vmax.f32 %v1081, 0.0
        %v1330 = vmax.f32 %v1179, 0.0
        %v1331 = vmax.f32 %v1277, 0.0
        %v1332 = vmax.f32 %v985, 0.0
        %v1333 = vmax.f32 %v1083, 0.0
        %v1334 = vmax.f32 %v1181, 0.0
        %v1335 = vmax.f32 %v1279, 0.0
        %v1336 = vmax.f32 %v988, 0.0
        %v1337 = vmax.f32 %v1086, 0.0
        %v1338 = vmax.f32 %v1184, 0.0
        %v1339 = vmax.f32 %v1282, 0.0
        %v1340 = vmax.f32 %v990, 0.0
        %v1341 = vmax.f32 %v1088, 0.0
        %v1342 = vmax.f32 %v1186, 0.0
        %v1343 = vmax.f32 %v1284, 0.0
        %v1344 = vmax.f32 %v993, 0.0
        %v1345 = vmax.f32 %v1091, 0.0
        %v1346 = vmax.f32 %v1189, 0.0
        %v1347 = vmax.f32 %v1287, 0.0
        %v1348 = vmax.f32 %v995, 0.0
        %v1349 = vmax.f32 %v1093, 0.0
        %v1350 = vmax.f32 %v1191, 0.0
        %v1351 = vmax.f32 %v1289, 0.0
        %v1352 = vmax.f32 %v998, 0.0
        %v1353 = vmax.f32 %v1096, 0.0
        %v1354 = vmax.f32 %v1194, 0.0
        %v1355 = vmax.f32 %v1292, 0.0
        %v1356 = vmax.f32 %v1000, 0.0
        %v1357 = vmax.f32 %v1098, 0.0
        %v1358 = vmax.f32 %v1196, 0.0
        %v1359 = vmax.f32 %v1294, 0.0
        %v1360 = vpack.c.bf16 %v1300, %v1296
        %v1361 = vpack.c.bf16 %v1301, %v1297
        %v1362 = vpack.c.bf16 %v1302, %v1298
        %v1363 = vpack.c.bf16 %v1303, %v1299
        %v1364 = vpack.c.bf16 %v1308, %v1304
        %v1365 = vpack.c.bf16 %v1309, %v1305
        %v1366 = vpack.c.bf16 %v1310, %v1306
        %v1367 = vpack.c.bf16 %v1311, %v1307
        %v1368 = vpack.c.bf16 %v1316, %v1312
        %v1369 = vpack.c.bf16 %v1317, %v1313
        %v1370 = vpack.c.bf16 %v1318, %v1314
        %v1371 = vpack.c.bf16 %v1319, %v1315
        %v1372 = vpack.c.bf16 %v1324, %v1320
        %v1373 = vpack.c.bf16 %v1325, %v1321
        %v1374 = vpack.c.bf16 %v1326, %v1322
        %v1375 = vpack.c.bf16 %v1327, %v1323
        %v1376 = vpack.c.bf16 %v1332, %v1328
        %v1377 = vpack.c.bf16 %v1333, %v1329
        %v1378 = vpack.c.bf16 %v1334, %v1330
        %v1379 = vpack.c.bf16 %v1335, %v1331
        %v1380 = vpack.c.bf16 %v1340, %v1336
        %v1381 = vpack.c.bf16 %v1341, %v1337
        %v1382 = vpack.c.bf16 %v1342, %v1338
        %v1383 = vpack.c.bf16 %v1343, %v1339
        %v1384 = vpack.c.bf16 %v1348, %v1344
        %v1385 = vpack.c.bf16 %v1349, %v1345
        %v1386 = vpack.c.bf16 %v1350, %v1346
        %v1387 = vpack.c.bf16 %v1351, %v1347
        %v1388 = vpack.c.bf16 %v1356, %v1352
        %v1389 = vpack.c.bf16 %v1357, %v1353
        %v1390 = vpack.c.bf16 %v1358, %v1354
        %v1391 = vpack.c.bf16 %v1359, %v1355
        %v1392 = vld [vmem:[%s3] sm:$0xf]
        %v1393 = vld [vmem:[%s3 + $0x4] sm:$0xf]
        %v1394 = vld [vmem:[%s3 + $0x8] sm:$0xf]
        %v1395 = vld [vmem:[%s3 + $0xc] sm:$0xf]
        %v1396 = vld [vmem:[%s3 + $0x10] sm:$0xf]
        %v1397 = vld [vmem:[%s3 + $0x14] sm:$0xf]
        %v1398 = vld [vmem:[%s3 + $0x18] sm:$0xf]
        %v1399 = vld [vmem:[%s3 + $0x1c] sm:$0xf]
        %v1400 = vld [vmem:[%s3 + $0x20] sm:$0xf]
        %v1401 = vld [vmem:[%s3 + $0x24] sm:$0xf]
        %v1402 = vld [vmem:[%s3 + $0x28] sm:$0xf]
        %v1403 = vld [vmem:[%s3 + $0x2c] sm:$0xf]
        %v1404 = vld [vmem:[%s3 + $0x30] sm:$0xf]
        %v1405 = vld [vmem:[%s3 + $0x34] sm:$0xf]
        %v1406 = vld [vmem:[%s3 + $0x38] sm:$0xf]
        %v1407 = vld [vmem:[%s3 + $0x3c] sm:$0xf]
        %v1408 = vld [vmem:[%s3 + $0x40] sm:$0xf]
        %v1409 = vld [vmem:[%s3 + $0x44] sm:$0xf]
        %v1410 = vld [vmem:[%s3 + $0x48] sm:$0xf]
        %v1411 = vld [vmem:[%s3 + $0x4c] sm:$0xf]
        %v1412 = vld [vmem:[%s3 + $0x50] sm:$0xf]
        %v1413 = vld [vmem:[%s3 + $0x54] sm:$0xf]
        %v1414 = vld [vmem:[%s3 + $0x58] sm:$0xf]
        %v1415 = vld [vmem:[%s3 + $0x5c] sm:$0xf]
        %v1416 = vld [vmem:[%s3 + $0x60] sm:$0xf]
        %v1417 = vld [vmem:[%s3 + $0x64] sm:$0xf]
        %v1418 = vld [vmem:[%s3 + $0x68] sm:$0xf]
        %v1419 = vld [vmem:[%s3 + $0x6c] sm:$0xf]
        %v1420 = vld [vmem:[%s3 + $0x70] sm:$0xf]
        %v1421 = vld [vmem:[%s3 + $0x74] sm:$0xf]
        %v1422 = vld [vmem:[%s3 + $0x78] sm:$0xf]
        %v1423 = vld [vmem:[%s3 + $0x7c] sm:$0xf]
        %v1424 = vld [vmem:[%s3 + $0x80] sm:$0xf]
        %v1425 = vld [vmem:[%s3 + $0x84] sm:$0xf]
        %v1426 = vld [vmem:[%s3 + $0x88] sm:$0xf]
        %v1427 = vld [vmem:[%s3 + $0x8c] sm:$0xf]
        %v1428 = vld [vmem:[%s3 + $0x90] sm:$0xf]
        %v1429 = vld [vmem:[%s3 + $0x94] sm:$0xf]
        %v1430 = vld [vmem:[%s3 + $0x98] sm:$0xf]
        %v1431 = vld [vmem:[%s3 + $0x9c] sm:$0xf]
        %v1432 = vld [vmem:[%s3 + $0xa0] sm:$0xf]
        %v1433 = vld [vmem:[%s3 + $0xa4] sm:$0xf]
        %v1434 = vld [vmem:[%s3 + $0xa8] sm:$0xf]
        %v1435 = vld [vmem:[%s3 + $0xac] sm:$0xf]
        %v1436 = vld [vmem:[%s3 + $0xb0] sm:$0xf]
        %v1437 = vld [vmem:[%s3 + $0xb4] sm:$0xf]
        %v1438 = vld [vmem:[%s3 + $0xb8] sm:$0xf]
        %v1439 = vld [vmem:[%s3 + $0xbc] sm:$0xf]
        %v1440 = vld [vmem:[%s3 + $0xc0] sm:$0xf]
        %v1441 = vld [vmem:[%s3 + $0xc4] sm:$0xf]
        %v1442 = vld [vmem:[%s3 + $0xc8] sm:$0xf]
        %v1443 = vld [vmem:[%s3 + $0xcc] sm:$0xf]
        %v1444 = vld [vmem:[%s3 + $0xd0] sm:$0xf]
        %v1445 = vld [vmem:[%s3 + $0xd4] sm:$0xf]
        %v1446 = vld [vmem:[%s3 + $0xd8] sm:$0xf]
        %v1447 = vld [vmem:[%s3 + $0xdc] sm:$0xf]
        %v1448 = vld [vmem:[%s3 + $0xe0] sm:$0xf]
        %v1449 = vld [vmem:[%s3 + $0xe4] sm:$0xf]
        %v1450 = vld [vmem:[%s3 + $0xe8] sm:$0xf]
        %v1451 = vld [vmem:[%s3 + $0xec] sm:$0xf]
        %v1452 = vld [vmem:[%s3 + $0xf0] sm:$0xf]
        %v1453 = vld [vmem:[%s3 + $0xf4] sm:$0xf]
        %v1454 = vld [vmem:[%s3 + $0xf8] sm:$0xf]
        %v1455 = vld [vmem:[%s3 + $0xfc] sm:$0xf]
        %v1456 = vld [vmem:[%s4] sm:$0x1]
        %v1458 = vperm.slane %v1456, 0
        %v1524 = vunpack.c.l.b16 %v1392
        %v1525 = vunpack.c.l.b16 %v1393
        %v1526 = vunpack.c.l.b16 %v1394
        %v1527 = vunpack.c.l.b16 %v1395
        %v1528 = vunpack.c.l.b16 %v1396
        %v1529 = vunpack.c.l.b16 %v1397
        %v1530 = vunpack.c.l.b16 %v1398
        %v1531 = vunpack.c.l.b16 %v1399
        %v1532 = vunpack.c.l.b16 %v1400
        %v1533 = vunpack.c.l.b16 %v1401
        %v1534 = vunpack.c.l.b16 %v1402
        %v1535 = vunpack.c.l.b16 %v1403
        %v1536 = vunpack.c.l.b16 %v1404
        %v1537 = vunpack.c.l.b16 %v1405
        %v1538 = vunpack.c.l.b16 %v1406
        %v1539 = vunpack.c.l.b16 %v1407
        %v1540 = vunpack.c.l.b16 %v1408
        %v1541 = vunpack.c.l.b16 %v1409
        %v1542 = vunpack.c.l.b16 %v1410
        %v1543 = vunpack.c.l.b16 %v1411
        %v1544 = vunpack.c.l.b16 %v1412
        %v1545 = vunpack.c.l.b16 %v1413
        %v1546 = vunpack.c.l.b16 %v1414
        %v1547 = vunpack.c.l.b16 %v1415
        %v1548 = vunpack.c.l.b16 %v1416
        %v1549 = vunpack.c.l.b16 %v1417
        %v1550 = vunpack.c.l.b16 %v1418
        %v1551 = vunpack.c.l.b16 %v1419
        %v1552 = vunpack.c.l.b16 %v1420
        %v1553 = vunpack.c.l.b16 %v1421
        %v1554 = vunpack.c.l.b16 %v1422
        %v1555 = vunpack.c.l.b16 %v1423
        %v1556 = vunpack.c.l.b16 %v1424
        %v1557 = vunpack.c.l.b16 %v1425
        %v1558 = vunpack.c.l.b16 %v1426
        %v1559 = vunpack.c.l.b16 %v1427
        %v1560 = vunpack.c.l.b16 %v1428
        %v1561 = vunpack.c.l.b16 %v1429
        %v1562 = vunpack.c.l.b16 %v1430
        %v1563 = vunpack.c.l.b16 %v1431
        %v1564 = vunpack.c.l.b16 %v1432
        %v1565 = vunpack.c.l.b16 %v1433
        %v1566 = vunpack.c.l.b16 %v1434
        %v1567 = vunpack.c.l.b16 %v1435
        %v1568 = vunpack.c.l.b16 %v1436
        %v1569 = vunpack.c.l.b16 %v1437
        %v1570 = vunpack.c.l.b16 %v1438
        %v1571 = vunpack.c.l.b16 %v1439
        %v1572 = vunpack.c.l.b16 %v1440
        %v1573 = vunpack.c.l.b16 %v1441
        %v1574 = vunpack.c.l.b16 %v1442
        %v1575 = vunpack.c.l.b16 %v1443
        %v1576 = vunpack.c.l.b16 %v1444
        %v1577 = vunpack.c.l.b16 %v1445
        %v1578 = vunpack.c.l.b16 %v1446
        %v1579 = vunpack.c.l.b16 %v1447
        %v1580 = vunpack.c.l.b16 %v1448
        %v1581 = vunpack.c.l.b16 %v1449
        %v1582 = vunpack.c.l.b16 %v1450
        %v1583 = vunpack.c.l.b16 %v1451
        %v1584 = vunpack.c.l.b16 %v1452
        %v1585 = vunpack.c.l.b16 %v1453
        %v1586 = vunpack.c.l.b16 %v1454
        %v1587 = vunpack.c.l.b16 %v1455
        %v1588 = vpack.c.b16 %v1525, %v1524
        %v1589 = vpack.c.b16 %v1527, %v1526
        %v1590 = vpack.c.b16 %v1529, %v1528
        %v1591 = vpack.c.b16 %v1531, %v1530
        %v1592 = vpack.c.b16 %v1533, %v1532
        %v1593 = vpack.c.b16 %v1535, %v1534
        %v1594 = vpack.c.b16 %v1537, %v1536
        %v1595 = vpack.c.b16 %v1539, %v1538
        %v1596 = vpack.c.b16 %v1541, %v1540
        %v1597 = vpack.c.b16 %v1543, %v1542
        %v1598 = vpack.c.b16 %v1545, %v1544
        %v1599 = vpack.c.b16 %v1547, %v1546
        %v1600 = vpack.c.b16 %v1549, %v1548
        %v1601 = vpack.c.b16 %v1551, %v1550
        %v1602 = vpack.c.b16 %v1553, %v1552
        %v1603 = vpack.c.b16 %v1555, %v1554
        %v1604 = vpack.c.b16 %v1557, %v1556
        %v1605 = vpack.c.b16 %v1559, %v1558
        %v1606 = vpack.c.b16 %v1561, %v1560
        %v1607 = vpack.c.b16 %v1563, %v1562
        %v1608 = vpack.c.b16 %v1565, %v1564
        %v1609 = vpack.c.b16 %v1567, %v1566
        %v1610 = vpack.c.b16 %v1569, %v1568
        %v1611 = vpack.c.b16 %v1571, %v1570
        %v1612 = vpack.c.b16 %v1573, %v1572
        %v1613 = vpack.c.b16 %v1575, %v1574
        %v1614 = vpack.c.b16 %v1577, %v1576
        %v1615 = vpack.c.b16 %v1579, %v1578
        %v1616 = vpack.c.b16 %v1581, %v1580
        %v1617 = vpack.c.b16 %v1583, %v1582
        %v1618 = vpack.c.b16 %v1585, %v1584
        %v1619 = vpack.c.b16 %v1587, %v1586
        %1652 = vmatpush.bf16.msra.mxu0 %v1595
        %1653 = vmatpush.bf16.msra.mxu0 %v1594
        %1654 = vmatpush.bf16.msra.mxu0 %v1593
        %1655 = vmatpush.bf16.msra.mxu0 %v1592
        %1656 = vmatpush.bf16.msra.mxu0 %v1591
        %1657 = vmatpush.bf16.msra.mxu0 %v1590
        %1658 = vmatpush.bf16.msra.mxu0 %v1589
        %1659 = vmatpush.bf16.msra.mxu0 %v1588
        %1660 = vmatmul.bf16.gmra.mxu0 %v1360
        %v1661 = vpop.f32.mrf.mxu0
        %v1662 = vadd.f32 %v1458, %v1661
        %v1663 = vpop.f32.mrf.mxu0
        %v1664 = vadd.f32 %v1458, %v1663
        %1665 = vmatmul.bf16.gmra.mxu0 %v1364
        %v1666 = vpop.f32.mrf.mxu0
        %v1667 = vadd.f32 %v1458, %v1666
        %v1668 = vpop.f32.mrf.mxu0
        %v1669 = vadd.f32 %v1458, %v1668
        %1670 = vmatmul.bf16.gmra.mxu0 %v1368
        %v1671 = vpop.f32.mrf.mxu0
        %v1672 = vadd.f32 %v1458, %v1671
        %v1673 = vpop.f32.mrf.mxu0
        %v1674 = vadd.f32 %v1458, %v1673
        %1675 = vmatmul.bf16.gmra.mxu0 %v1372
        %v1676 = vpop.f32.mrf.mxu0
        %v1677 = vadd.f32 %v1458, %v1676
        %v1678 = vpop.f32.mrf.mxu0
        %v1679 = vadd.f32 %v1458, %v1678
        %1680 = vmatmul.bf16.gmra.mxu0 %v1376
        %v1681 = vpop.f32.mrf.mxu0
        %v1682 = vadd.f32 %v1458, %v1681
        %v1683 = vpop.f32.mrf.mxu0
        %v1684 = vadd.f32 %v1458, %v1683
        %1685 = vmatmul.bf16.gmra.mxu0 %v1380
        %v1686 = vpop.f32.mrf.mxu0
        %v1687 = vadd.f32 %v1458, %v1686
        %v1688 = vpop.f32.mrf.mxu0
        %v1689 = vadd.f32 %v1458, %v1688
        %1690 = vmatmul.bf16.gmra.mxu0 %v1384
        %v1691 = vpop.f32.mrf.mxu0
        %v1692 = vadd.f32 %v1458, %v1691
        %v1693 = vpop.f32.mrf.mxu0
        %v1694 = vadd.f32 %v1458, %v1693
        %1695 = vmatmul.bf16.gmra.mxu0 %v1388
        %v1696 = vpop.f32.mrf.mxu0
        %v1697 = vadd.f32 %v1458, %v1696
        %v1698 = vpop.f32.mrf.mxu0
        %v1699 = vadd.f32 %v1458, %v1698
        %1700 = vdwg.mxu0
        %1701 = vmatpush.bf16.msra.mxu0 %v1603
        %1702 = vmatpush.bf16.msra.mxu0 %v1602
        %1703 = vmatpush.bf16.msra.mxu0 %v1601
        %1704 = vmatpush.bf16.msra.mxu0 %v1600
        %1705 = vmatpush.bf16.msra.mxu0 %v1599
        %1706 = vmatpush.bf16.msra.mxu0 %v1598
        %1707 = vmatpush.bf16.msra.mxu0 %v1597
        %1708 = vmatpush.bf16.msra.mxu0 %v1596
        %1709 = vmatmul.bf16.gmra.mxu0 %v1361
        %v1710 = vpop.f32.mrf.mxu0
        %v1711 = vadd.f32 %v1662, %v1710
        %v1712 = vpop.f32.mrf.mxu0
        %v1713 = vadd.f32 %v1664, %v1712
        %1714 = vmatmul.bf16.gmra.mxu0 %v1365
        %v1715 = vpop.f32.mrf.mxu0
        %v1716 = vadd.f32 %v1667, %v1715
        %v1717 = vpop.f32.mrf.mxu0
        %v1718 = vadd.f32 %v1669, %v1717
        %1719 = vmatmul.bf16.gmra.mxu0 %v1369
        %v1720 = vpop.f32.mrf.mxu0
        %v1721 = vadd.f32 %v1672, %v1720
        %v1722 = vpop.f32.mrf.mxu0
        %v1723 = vadd.f32 %v1674, %v1722
        %1724 = vmatmul.bf16.gmra.mxu0 %v1373
        %v1725 = vpop.f32.mrf.mxu0
        %v1726 = vadd.f32 %v1677, %v1725
        %v1727 = vpop.f32.mrf.mxu0
        %v1728 = vadd.f32 %v1679, %v1727
        %1729 = vmatmul.bf16.gmra.mxu0 %v1377
        %v1730 = vpop.f32.mrf.mxu0
        %v1731 = vadd.f32 %v1682, %v1730
        %v1732 = vpop.f32.mrf.mxu0
        %v1733 = vadd.f32 %v1684, %v1732
        %1734 = vmatmul.bf16.gmra.mxu0 %v1381
        %v1735 = vpop.f32.mrf.mxu0
        %v1736 = vadd.f32 %v1687, %v1735
        %v1737 = vpop.f32.mrf.mxu0
        %v1738 = vadd.f32 %v1689, %v1737
        %1739 = vmatmul.bf16.gmra.mxu0 %v1385
        %v1740 = vpop.f32.mrf.mxu0
        %v1741 = vadd.f32 %v1692, %v1740
        %v1742 = vpop.f32.mrf.mxu0
        %v1743 = vadd.f32 %v1694, %v1742
        %1744 = vmatmul.bf16.gmra.mxu0 %v1389
        %v1745 = vpop.f32.mrf.mxu0
        %v1746 = vadd.f32 %v1697, %v1745
        %v1747 = vpop.f32.mrf.mxu0
        %v1748 = vadd.f32 %v1699, %v1747
        %1749 = vdwg.mxu0
        %1750 = vmatpush.bf16.msra.mxu0 %v1611
        %1751 = vmatpush.bf16.msra.mxu0 %v1610
        %1752 = vmatpush.bf16.msra.mxu0 %v1609
        %1753 = vmatpush.bf16.msra.mxu0 %v1608
        %1754 = vmatpush.bf16.msra.mxu0 %v1607
        %1755 = vmatpush.bf16.msra.mxu0 %v1606
        %1756 = vmatpush.bf16.msra.mxu0 %v1605
        %1757 = vmatpush.bf16.msra.mxu0 %v1604
        %1758 = vmatmul.bf16.gmra.mxu0 %v1362
        %v1759 = vpop.f32.mrf.mxu0
        %v1760 = vadd.f32 %v1711, %v1759
        %v1761 = vpop.f32.mrf.mxu0
        %v1762 = vadd.f32 %v1713, %v1761
        %1763 = vmatmul.bf16.gmra.mxu0 %v1366
        %v1764 = vpop.f32.mrf.mxu0
        %v1765 = vadd.f32 %v1716, %v1764
        %v1766 = vpop.f32.mrf.mxu0
        %v1767 = vadd.f32 %v1718, %v1766
        %1768 = vmatmul.bf16.gmra.mxu0 %v1370
        %v1769 = vpop.f32.mrf.mxu0
        %v1770 = vadd.f32 %v1721, %v1769
        %v1771 = vpop.f32.mrf.mxu0
        %v1772 = vadd.f32 %v1723, %v1771
        %1773 = vmatmul.bf16.gmra.mxu0 %v1374
        %v1774 = vpop.f32.mrf.mxu0
        %v1775 = vadd.f32 %v1726, %v1774
        %v1776 = vpop.f32.mrf.mxu0
        %v1777 = vadd.f32 %v1728, %v1776
        %1778 = vmatmul.bf16.gmra.mxu0 %v1378
        %v1779 = vpop.f32.mrf.mxu0
        %v1780 = vadd.f32 %v1731, %v1779
        %v1781 = vpop.f32.mrf.mxu0
        %v1782 = vadd.f32 %v1733, %v1781
        %1783 = vmatmul.bf16.gmra.mxu0 %v1382
        %v1784 = vpop.f32.mrf.mxu0
        %v1785 = vadd.f32 %v1736, %v1784
        %v1786 = vpop.f32.mrf.mxu0
        %v1787 = vadd.f32 %v1738, %v1786
        %1788 = vmatmul.bf16.gmra.mxu0 %v1386
        %v1789 = vpop.f32.mrf.mxu0
        %v1790 = vadd.f32 %v1741, %v1789
        %v1791 = vpop.f32.mrf.mxu0
        %v1792 = vadd.f32 %v1743, %v1791
        %1793 = vmatmul.bf16.gmra.mxu0 %v1390
        %v1794 = vpop.f32.mrf.mxu0
        %v1795 = vadd.f32 %v1746, %v1794
        %v1796 = vpop.f32.mrf.mxu0
        %v1797 = vadd.f32 %v1748, %v1796
        %1798 = vdwg.mxu0
        %1799 = vmatpush.bf16.msra.mxu0 %v1619
        %1800 = vmatpush.bf16.msra.mxu0 %v1618
        %1801 = vmatpush.bf16.msra.mxu0 %v1617
        %1802 = vmatpush.bf16.msra.mxu0 %v1616
        %1803 = vmatpush.bf16.msra.mxu0 %v1615
        %1804 = vmatpush.bf16.msra.mxu0 %v1614
        %1805 = vmatpush.bf16.msra.mxu0 %v1613
        %1806 = vmatpush.bf16.msra.mxu0 %v1612
        %1807 = vmatmul.bf16.gmra.mxu0 %v1363
        %v1808 = vpop.f32.mrf.mxu0
        %v1809 = vadd.f32 %v1760, %v1808
        %v1810 = vpop.f32.mrf.mxu0
        %v1811 = vadd.f32 %v1762, %v1810
        %1812 = vmatmul.bf16.gmra.mxu0 %v1367
        %v1813 = vpop.f32.mrf.mxu0
        %v1814 = vadd.f32 %v1765, %v1813
        %v1815 = vpop.f32.mrf.mxu0
        %v1816 = vadd.f32 %v1767, %v1815
        %1817 = vmatmul.bf16.gmra.mxu0 %v1371
        %v1818 = vpop.f32.mrf.mxu0
        %v1819 = vadd.f32 %v1770, %v1818
        %v1820 = vpop.f32.mrf.mxu0
        %v1821 = vadd.f32 %v1772, %v1820
        %1822 = vmatmul.bf16.gmra.mxu0 %v1375
        %v1823 = vpop.f32.mrf.mxu0
        %v1824 = vadd.f32 %v1775, %v1823
        %v1825 = vpop.f32.mrf.mxu0
        %v1826 = vadd.f32 %v1777, %v1825
        %1827 = vmatmul.bf16.gmra.mxu0 %v1379
        %v1828 = vpop.f32.mrf.mxu0
        %v1829 = vadd.f32 %v1780, %v1828
        %v1830 = vpop.f32.mrf.mxu0
        %v1831 = vadd.f32 %v1782, %v1830
        %1832 = vmatmul.bf16.gmra.mxu0 %v1383
        %v1833 = vpop.f32.mrf.mxu0
        %v1834 = vadd.f32 %v1785, %v1833
        %v1835 = vpop.f32.mrf.mxu0
        %v1836 = vadd.f32 %v1787, %v1835
        %1837 = vmatmul.bf16.gmra.mxu0 %v1387
        %v1838 = vpop.f32.mrf.mxu0
        %v1839 = vadd.f32 %v1790, %v1838
        %v1840 = vpop.f32.mrf.mxu0
        %v1841 = vadd.f32 %v1792, %v1840
        %1842 = vmatmul.bf16.gmra.mxu0 %v1391
        %v1843 = vpop.f32.mrf.mxu0
        %v1844 = vadd.f32 %v1795, %v1843
        %v1845 = vpop.f32.mrf.mxu0
        %v1846 = vadd.f32 %v1797, %v1845
        %1847 = vdwg.mxu0
        %v1848 = vmul.f32 %v1809, 0.5
        %v1849 = vmul.f32 %v1811, 0.5
        %v1850 = vmul.f32 %v1814, 0.5
        %v1851 = vmul.f32 %v1816, 0.5
        %v1852 = vmul.f32 %v1819, 0.5
        %v1853 = vmul.f32 %v1821, 0.5
        %v1854 = vmul.f32 %v1824, 0.5
        %v1855 = vmul.f32 %v1826, 0.5
        %v1856 = vmul.f32 %v1829, 0.5
        %v1857 = vmul.f32 %v1831, 0.5
        %v1858 = vmul.f32 %v1834, 0.5
        %v1859 = vmul.f32 %v1836, 0.5
        %v1860 = vmul.f32 %v1839, 0.5
        %v1861 = vmul.f32 %v1841, 0.5
        %v1862 = vmul.f32 %v1844, 0.5
        %v1863 = vmul.f32 %v1846, 0.5
        %v1864 = vmul.f32 %v1848, 1.442695
        %v1865 = vpow.pop %v1864
        %v1866 = vmul.f32 %v1849, 1.442695
        %v1867 = vpow.pop %v1866
        %v1868 = vmul.f32 %v1850, 1.442695
        %v1869 = vpow.pop %v1868
        %v1870 = vmul.f32 %v1851, 1.442695
        %v1871 = vpow.pop %v1870
        %v1872 = vmul.f32 %v1852, 1.442695
        %v1873 = vpow.pop %v1872
        %v1874 = vmul.f32 %v1853, 1.442695
        %v1875 = vpow.pop %v1874
        %v1876 = vmul.f32 %v1854, 1.442695
        %v1877 = vpow.pop %v1876
        %v1878 = vmul.f32 %v1855, 1.442695
        %v1879 = vpow.pop %v1878
        %v1880 = vmul.f32 %v1856, 1.442695
        %v1881 = vpow.pop %v1880
        %v1882 = vmul.f32 %v1857, 1.442695
        %v1883 = vpow.pop %v1882
        %v1884 = vmul.f32 %v1858, 1.442695
        %v1885 = vpow.pop %v1884
        %v1886 = vmul.f32 %v1859, 1.442695
        %v1887 = vpow.pop %v1886
        %v1888 = vmul.f32 %v1860, 1.442695
        %v1889 = vpow.pop %v1888
        %v1890 = vmul.f32 %v1861, 1.442695
        %v1891 = vpow.pop %v1890
        %v1892 = vmul.f32 %v1862, 1.442695
        %v1893 = vpow.pop %v1892
        %v1894 = vmul.f32 %v1863, 1.442695
        %v1895 = vpow.pop %v1894
        %v1896 = vld [vmem:[%s452] sm:$0xff]
        %v1897 = vld [vmem:[%s452 + $0x8] sm:$0xff]
        %v1898 = vld [vmem:[%s452 + $0x10] sm:$0xff]
        %v1899 = vld [vmem:[%s452 + $0x18] sm:$0xff]
        %v1900 = vld [vmem:[%s452 + $0x20] sm:$0xff]
        %v1901 = vld [vmem:[%s452 + $0x28] sm:$0xff]
        %v1902 = vld [vmem:[%s452 + $0x30] sm:$0xff]
        %v1903 = vld [vmem:[%s452 + $0x38] sm:$0xff]
        %v1904 = vld [vmem:[%s452 + $0x40] sm:$0xff]
        %v1905 = vld [vmem:[%s452 + $0x48] sm:$0xff]
        %v1906 = vld [vmem:[%s452 + $0x50] sm:$0xff]
        %v1907 = vld [vmem:[%s452 + $0x58] sm:$0xff]
        %v1908 = vld [vmem:[%s452 + $0x60] sm:$0xff]
        %v1909 = vld [vmem:[%s452 + $0x68] sm:$0xff]
        %v1910 = vld [vmem:[%s452 + $0x70] sm:$0xff]
        %v1911 = vld [vmem:[%s452 + $0x78] sm:$0xff]
        %1928 = vrot.lane.b32.xlu0 %v1865, 112
        %v1929 = vpop.permute.xlu0 %1928
        %1930 = vrot.lane.b32.xlu0 %v1867, 112
        %v1931 = vpop.permute.xlu0 %1930
        %1932 = vrot.lane.b32.xlu0 %v1869, 112
        %v1933 = vpop.permute.xlu0 %1932
        %1934 = vrot.lane.b32.xlu0 %v1871, 112
        %v1935 = vpop.permute.xlu0 %1934
        %1936 = vrot.lane.b32.xlu0 %v1873, 112
        %v1937 = vpop.permute.xlu0 %1936
        %1938 = vrot.lane.b32.xlu0 %v1875, 112
        %v1939 = vpop.permute.xlu0 %1938
        %1940 = vrot.lane.b32.xlu0 %v1877, 112
        %v1941 = vpop.permute.xlu0 %1940
        %1942 = vrot.lane.b32.xlu0 %v1879, 112
        %v1943 = vpop.permute.xlu0 %1942
        %1944 = vrot.lane.b32.xlu0 %v1881, 112
        %v1945 = vpop.permute.xlu0 %1944
        %1946 = vrot.lane.b32.xlu0 %v1883, 112
        %v1947 = vpop.permute.xlu0 %1946
        %1948 = vrot.lane.b32.xlu0 %v1885, 112
        %v1949 = vpop.permute.xlu0 %1948
        %1950 = vrot.lane.b32.xlu0 %v1887, 112
        %v1951 = vpop.permute.xlu0 %1950
        %1952 = vrot.lane.b32.xlu0 %v1889, 112
        %v1953 = vpop.permute.xlu0 %1952
        %1954 = vrot.lane.b32.xlu0 %v1891, 112
        %v1955 = vpop.permute.xlu0 %1954
        %1956 = vrot.lane.b32.xlu0 %v1893, 112
        %v1957 = vpop.permute.xlu0 %1956
        %1958 = vrot.lane.b32.xlu0 %v1895, 112
        %v1959 = vpop.permute.xlu0 %1958
        %v1976 = vmul.f32 %v1896, %v1929
        %v1977 = vmul.f32 %v1897, %v1931
        %v1978 = vmul.f32 %v1898, %v1933
        %v1979 = vmul.f32 %v1899, %v1935
        %v1980 = vmul.f32 %v1900, %v1937
        %v1981 = vmul.f32 %v1901, %v1939
        %v1982 = vmul.f32 %v1902, %v1941
        %v1983 = vmul.f32 %v1903, %v1943
        %v1984 = vmul.f32 %v1904, %v1945
        %v1985 = vmul.f32 %v1905, %v1947
        %v1986 = vmul.f32 %v1906, %v1949
        %v1987 = vmul.f32 %v1907, %v1951
        %v1988 = vmul.f32 %v1908, %v1953
        %v1989 = vmul.f32 %v1909, %v1955
        %v1990 = vmul.f32 %v1910, %v1957
        %v1991 = vmul.f32 %v1911, %v1959
        %v1992 = vadd.f32 %v1809, %v1976
        %v1993 = vadd.f32 %v1811, %v1977
        %v1994 = vadd.f32 %v1814, %v1978
        %v1995 = vadd.f32 %v1816, %v1979
        %v1996 = vadd.f32 %v1819, %v1980
        %v1997 = vadd.f32 %v1821, %v1981
        %v1998 = vadd.f32 %v1824, %v1982
        %v1999 = vadd.f32 %v1826, %v1983
        %v2000 = vadd.f32 %v1829, %v1984
        %v2001 = vadd.f32 %v1831, %v1985
        %v2002 = vadd.f32 %v1834, %v1986
        %v2003 = vadd.f32 %v1836, %v1987
        %v2004 = vadd.f32 %v1839, %v1988
        %v2005 = vadd.f32 %v1841, %v1989
        %v2006 = vadd.f32 %v1844, %v1990
        %v2007 = vadd.f32 %v1846, %v1991
        %v2008 = vpack.c.bf16 %v1993, %v1992
        %v2009 = vpack.c.bf16 %v1995, %v1994
        %v2010 = vpack.c.bf16 %v1997, %v1996
        %v2011 = vpack.c.bf16 %v1999, %v1998
        %v2012 = vpack.c.bf16 %v2001, %v2000
        %v2013 = vpack.c.bf16 %v2003, %v2002
        %v2014 = vpack.c.bf16 %v2005, %v2004
        %v2015 = vpack.c.bf16 %v2007, %v2006
        %v2016 = vld [vmem:[%s6] sm:$0xff]
        %v2017 = vld [vmem:[%s6 + $0x8] sm:$0xff]
        %v2018 = vld [vmem:[%s6 + $0x10] sm:$0xff]
        %v2019 = vld [vmem:[%s6 + $0x18] sm:$0xff]
        %v2020 = vld [vmem:[%s7] sm:$0xf]
        %v2022 = vperm.slane %v2020, 0
        %v2023 = vperm.slane %v2020, 1
        %v2024 = vperm.slane %v2020, 2
        %v2025 = vperm.slane %v2020, 3
        %v2034 = vunpack.c.l.b16 %v2016
        %v2035 = vunpack.c.h.b16 %v2016
        %v2036 = vunpack.c.l.b16 %v2017
        %v2037 = vunpack.c.h.b16 %v2017
        %v2038 = vunpack.c.l.b16 %v2018
        %v2039 = vunpack.c.h.b16 %v2018
        %v2040 = vunpack.c.l.b16 %v2019
        %v2041 = vunpack.c.h.b16 %v2019
        %v2042 = vpack.c.b16 %v2038, %v2034
        %v2043 = vpack.c.b16 %v2039, %v2035
        %v2044 = vpack.c.b16 %v2040, %v2036
        %v2045 = vpack.c.b16 %v2041, %v2037
        %vm2050 = vcmask 130048
        %v2052 = vsel %vm2050, %v2008, 0
        %v2055 = vsel %vm2050, %v2009, 0
        %v2058 = vsel %vm2050, %v2010, 0
        %v2061 = vsel %vm2050, %v2011, 0
        %v2064 = vsel %vm2050, %v2012, 0
        %v2067 = vsel %vm2050, %v2013, 0
        %v2070 = vsel %vm2050, %v2014, 0
        %v2073 = vsel %vm2050, %v2015, 0
        %2075 = vmatpush.bf16.msra.mxu0 0
        %2076 = vmatpush.bf16.msra.mxu0 0
        %2077 = vmatpush.bf16.msra.mxu0 0
        %2078 = vmatpush.bf16.msra.mxu0 0
        %2079 = vmatpush.bf16.msra.mxu0 0
        %2080 = vmatpush.bf16.msra.mxu0 0
        %2081 = vmatpush.bf16.msra.mxu0 0
        %2082 = vmatpush.bf16.msra.mxu0 %v2042
        %2083 = vmatmul.bf16.gmra.mxu0 %v2052
        %v2084 = vpop.f32.mrf.mxu0
        %v2085 = vadd.f32 %v2022, %v2084
        %v2086 = vpop.f32.mrf.mxu0
        %v2087 = vadd.f32 %v2022, %v2086
        %2088 = vmatmul.bf16.gmra.mxu0 %v2055
        %v2089 = vpop.f32.mrf.mxu0
        %v2090 = vadd.f32 %v2022, %v2089
        %v2091 = vpop.f32.mrf.mxu0
        %v2092 = vadd.f32 %v2022, %v2091
        %2093 = vmatmul.bf16.gmra.mxu0 %v2058
        %v2094 = vpop.f32.mrf.mxu0
        %v2095 = vadd.f32 %v2022, %v2094
        %v2096 = vpop.f32.mrf.mxu0
        %v2097 = vadd.f32 %v2022, %v2096
        %2098 = vmatmul.bf16.gmra.mxu0 %v2061
        %v2099 = vpop.f32.mrf.mxu0
        %v2100 = vadd.f32 %v2022, %v2099
        %v2101 = vpop.f32.mrf.mxu0
        %v2102 = vadd.f32 %v2022, %v2101
        %2103 = vmatmul.bf16.gmra.mxu0 %v2064
        %v2104 = vpop.f32.mrf.mxu0
        %v2105 = vadd.f32 %v2022, %v2104
        %v2106 = vpop.f32.mrf.mxu0
        %v2107 = vadd.f32 %v2022, %v2106
        %2108 = vmatmul.bf16.gmra.mxu0 %v2067
        %v2109 = vpop.f32.mrf.mxu0
        %v2110 = vadd.f32 %v2022, %v2109
        %v2111 = vpop.f32.mrf.mxu0
        %v2112 = vadd.f32 %v2022, %v2111
        %2113 = vmatmul.bf16.gmra.mxu0 %v2070
        %v2114 = vpop.f32.mrf.mxu0
        %v2115 = vadd.f32 %v2022, %v2114
        %v2116 = vpop.f32.mrf.mxu0
        %v2117 = vadd.f32 %v2022, %v2116
        %2118 = vmatmul.bf16.gmra.mxu0 %v2073
        %v2119 = vpop.f32.mrf.mxu0
        %v2120 = vadd.f32 %v2022, %v2119
        %v2121 = vpop.f32.mrf.mxu0
        %v2122 = vadd.f32 %v2022, %v2121
        %2123 = vdwg.mxu0
        %2124 = vmatpush.bf16.msra.mxu0 0
        %2125 = vmatpush.bf16.msra.mxu0 0
        %2126 = vmatpush.bf16.msra.mxu0 0
        %2127 = vmatpush.bf16.msra.mxu0 0
        %2128 = vmatpush.bf16.msra.mxu0 0
        %2129 = vmatpush.bf16.msra.mxu0 0
        %2130 = vmatpush.bf16.msra.mxu0 0
        %2131 = vmatpush.bf16.msra.mxu0 %v2043
        %2132 = vmatmul.bf16.gmra.mxu0 %v2052
        %v2133 = vpop.f32.mrf.mxu0
        %v2134 = vadd.f32 %v2023, %v2133
        %v2135 = vpop.f32.mrf.mxu0
        %v2136 = vadd.f32 %v2023, %v2135
        %2137 = vmatmul.bf16.gmra.mxu0 %v2055
        %v2138 = vpop.f32.mrf.mxu0
        %v2139 = vadd.f32 %v2023, %v2138
        %v2140 = vpop.f32.mrf.mxu0
        %v2141 = vadd.f32 %v2023, %v2140
        %2142 = vmatmul.bf16.gmra.mxu0 %v2058
        %v2143 = vpop.f32.mrf.mxu0
        %v2144 = vadd.f32 %v2023, %v2143
        %v2145 = vpop.f32.mrf.mxu0
        %v2146 = vadd.f32 %v2023, %v2145
        %2147 = vmatmul.bf16.gmra.mxu0 %v2061
        %v2148 = vpop.f32.mrf.mxu0
        %v2149 = vadd.f32 %v2023, %v2148
        %v2150 = vpop.f32.mrf.mxu0
        %v2151 = vadd.f32 %v2023, %v2150
        %2152 = vmatmul.bf16.gmra.mxu0 %v2064
        %v2153 = vpop.f32.mrf.mxu0
        %v2154 = vadd.f32 %v2023, %v2153
        %v2155 = vpop.f32.mrf.mxu0
        %v2156 = vadd.f32 %v2023, %v2155
        %2157 = vmatmul.bf16.gmra.mxu0 %v2067
        %v2158 = vpop.f32.mrf.mxu0
        %v2159 = vadd.f32 %v2023, %v2158
        %v2160 = vpop.f32.mrf.mxu0
        %v2161 = vadd.f32 %v2023, %v2160
        %2162 = vmatmul.bf16.gmra.mxu0 %v2070
        %v2163 = vpop.f32.mrf.mxu0
        %v2164 = vadd.f32 %v2023, %v2163
        %v2165 = vpop.f32.mrf.mxu0
        %v2166 = vadd.f32 %v2023, %v2165
        %2167 = vmatmul.bf16.gmra.mxu0 %v2073
        %v2168 = vpop.f32.mrf.mxu0
        %v2169 = vadd.f32 %v2023, %v2168
        %v2170 = vpop.f32.mrf.mxu0
        %v2171 = vadd.f32 %v2023, %v2170
        %2172 = vdwg.mxu0
        %2173 = vmatpush.bf16.msra.mxu0 0
        %2174 = vmatpush.bf16.msra.mxu0 0
        %2175 = vmatpush.bf16.msra.mxu0 0
        %2176 = vmatpush.bf16.msra.mxu0 0
        %2177 = vmatpush.bf16.msra.mxu0 0
        %2178 = vmatpush.bf16.msra.mxu0 0
        %2179 = vmatpush.bf16.msra.mxu0 0
        %2180 = vmatpush.bf16.msra.mxu0 %v2044
        %2181 = vmatmul.bf16.gmra.mxu0 %v2052
        %v2182 = vpop.f32.mrf.mxu0
        %v2183 = vadd.f32 %v2024, %v2182
        %v2184 = vpop.f32.mrf.mxu0
        %v2185 = vadd.f32 %v2024, %v2184
        %2186 = vmatmul.bf16.gmra.mxu0 %v2055
        %v2187 = vpop.f32.mrf.mxu0
        %v2188 = vadd.f32 %v2024, %v2187
        %v2189 = vpop.f32.mrf.mxu0
        %v2190 = vadd.f32 %v2024, %v2189
        %2191 = vmatmul.bf16.gmra.mxu0 %v2058
        %v2192 = vpop.f32.mrf.mxu0
        %v2193 = vadd.f32 %v2024, %v2192
        %v2194 = vpop.f32.mrf.mxu0
        %v2195 = vadd.f32 %v2024, %v2194
        %2196 = vmatmul.bf16.gmra.mxu0 %v2061
        %v2197 = vpop.f32.mrf.mxu0
        %v2198 = vadd.f32 %v2024, %v2197
        %v2199 = vpop.f32.mrf.mxu0
        %v2200 = vadd.f32 %v2024, %v2199
        %2201 = vmatmul.bf16.gmra.mxu0 %v2064
        %v2202 = vpop.f32.mrf.mxu0
        %v2203 = vadd.f32 %v2024, %v2202
        %v2204 = vpop.f32.mrf.mxu0
        %v2205 = vadd.f32 %v2024, %v2204
        %2206 = vmatmul.bf16.gmra.mxu0 %v2067
        %v2207 = vpop.f32.mrf.mxu0
        %v2208 = vadd.f32 %v2024, %v2207
        %v2209 = vpop.f32.mrf.mxu0
        %v2210 = vadd.f32 %v2024, %v2209
        %2211 = vmatmul.bf16.gmra.mxu0 %v2070
        %v2212 = vpop.f32.mrf.mxu0
        %v2213 = vadd.f32 %v2024, %v2212
        %v2214 = vpop.f32.mrf.mxu0
        %v2215 = vadd.f32 %v2024, %v2214
        %2216 = vmatmul.bf16.gmra.mxu0 %v2073
        %v2217 = vpop.f32.mrf.mxu0
        %v2218 = vadd.f32 %v2024, %v2217
        %v2219 = vpop.f32.mrf.mxu0
        %v2220 = vadd.f32 %v2024, %v2219
        %2221 = vdwg.mxu0
        %2222 = vmatpush.bf16.msra.mxu0 0
        %2223 = vmatpush.bf16.msra.mxu0 0
        %2224 = vmatpush.bf16.msra.mxu0 0
        %2225 = vmatpush.bf16.msra.mxu0 0
        %2226 = vmatpush.bf16.msra.mxu0 0
        %2227 = vmatpush.bf16.msra.mxu0 0
        %2228 = vmatpush.bf16.msra.mxu0 0
        %2229 = vmatpush.bf16.msra.mxu0 %v2045
        %2230 = vmatmul.bf16.gmra.mxu0 %v2052
        %v2231 = vpop.f32.mrf.mxu0
        %v2232 = vadd.f32 %v2025, %v2231
        %v2233 = vpop.f32.mrf.mxu0
        %v2234 = vadd.f32 %v2025, %v2233
        %2235 = vmatmul.bf16.gmra.mxu0 %v2055
        %v2236 = vpop.f32.mrf.mxu0
        %v2237 = vadd.f32 %v2025, %v2236
        %v2238 = vpop.f32.mrf.mxu0
        %v2239 = vadd.f32 %v2025, %v2238
        %2240 = vmatmul.bf16.gmra.mxu0 %v2058
        %v2241 = vpop.f32.mrf.mxu0
        %v2242 = vadd.f32 %v2025, %v2241
        %v2243 = vpop.f32.mrf.mxu0
        %v2244 = vadd.f32 %v2025, %v2243
        %2245 = vmatmul.bf16.gmra.mxu0 %v2061
        %v2246 = vpop.f32.mrf.mxu0
        %v2247 = vadd.f32 %v2025, %v2246
        %v2248 = vpop.f32.mrf.mxu0
        %v2249 = vadd.f32 %v2025, %v2248
        %2250 = vmatmul.bf16.gmra.mxu0 %v2064
        %v2251 = vpop.f32.mrf.mxu0
        %v2252 = vadd.f32 %v2025, %v2251
        %v2253 = vpop.f32.mrf.mxu0
        %v2254 = vadd.f32 %v2025, %v2253
        %2255 = vmatmul.bf16.gmra.mxu0 %v2067
        %v2256 = vpop.f32.mrf.mxu0
        %v2257 = vadd.f32 %v2025, %v2256
        %v2258 = vpop.f32.mrf.mxu0
        %v2259 = vadd.f32 %v2025, %v2258
        %2260 = vmatmul.bf16.gmra.mxu0 %v2070
        %v2261 = vpop.f32.mrf.mxu0
        %v2262 = vadd.f32 %v2025, %v2261
        %v2263 = vpop.f32.mrf.mxu0
        %v2264 = vadd.f32 %v2025, %v2263
        %2265 = vmatmul.bf16.gmra.mxu0 %v2073
        %v2266 = vpop.f32.mrf.mxu0
        %v2267 = vadd.f32 %v2025, %v2266
        %v2268 = vpop.f32.mrf.mxu0
        %v2269 = vadd.f32 %v2025, %v2268
        %2270 = vdwg.mxu0
        %v2271 = vmax.f32 %v2085, 0.0
        %v2272 = vmax.f32 %v2134, 0.0
        %v2273 = vmax.f32 %v2183, 0.0
        %v2274 = vmax.f32 %v2232, 0.0
        %v2275 = vmax.f32 %v2087, 0.0
        %v2276 = vmax.f32 %v2136, 0.0
        %v2277 = vmax.f32 %v2185, 0.0
        %v2278 = vmax.f32 %v2234, 0.0
        %v2279 = vmax.f32 %v2090, 0.0
        %v2280 = vmax.f32 %v2139, 0.0
        %v2281 = vmax.f32 %v2188, 0.0
        %v2282 = vmax.f32 %v2237, 0.0
        %v2283 = vmax.f32 %v2092, 0.0
        %v2284 = vmax.f32 %v2141, 0.0
        %v2285 = vmax.f32 %v2190, 0.0
        %v2286 = vmax.f32 %v2239, 0.0
        %v2287 = vmax.f32 %v2095, 0.0
        %v2288 = vmax.f32 %v2144, 0.0
        %v2289 = vmax.f32 %v2193, 0.0
        %v2290 = vmax.f32 %v2242, 0.0
        %v2291 = vmax.f32 %v2097, 0.0
        %v2292 = vmax.f32 %v2146, 0.0
        %v2293 = vmax.f32 %v2195, 0.0
        %v2294 = vmax.f32 %v2244, 0.0
        %v2295 = vmax.f32 %v2100, 0.0
        %v2296 = vmax.f32 %v2149, 0.0
        %v2297 = vmax.f32 %v2198, 0.0
        %v2298 = vmax.f32 %v2247, 0.0
        %v2299 = vmax.f32 %v2102, 0.0
        %v2300 = vmax.f32 %v2151, 0.0
        %v2301 = vmax.f32 %v2200, 0.0
        %v2302 = vmax.f32 %v2249, 0.0
        %v2303 = vmax.f32 %v2105, 0.0
        %v2304 = vmax.f32 %v2154, 0.0
        %v2305 = vmax.f32 %v2203, 0.0
        %v2306 = vmax.f32 %v2252, 0.0
        %v2307 = vmax.f32 %v2107, 0.0
        %v2308 = vmax.f32 %v2156, 0.0
        %v2309 = vmax.f32 %v2205, 0.0
        %v2310 = vmax.f32 %v2254, 0.0
        %v2311 = vmax.f32 %v2110, 0.0
        %v2312 = vmax.f32 %v2159, 0.0
        %v2313 = vmax.f32 %v2208, 0.0
        %v2314 = vmax.f32 %v2257, 0.0
        %v2315 = vmax.f32 %v2112, 0.0
        %v2316 = vmax.f32 %v2161, 0.0
        %v2317 = vmax.f32 %v2210, 0.0
        %v2318 = vmax.f32 %v2259, 0.0
        %v2319 = vmax.f32 %v2115, 0.0
        %v2320 = vmax.f32 %v2164, 0.0
        %v2321 = vmax.f32 %v2213, 0.0
        %v2322 = vmax.f32 %v2262, 0.0
        %v2323 = vmax.f32 %v2117, 0.0
        %v2324 = vmax.f32 %v2166, 0.0
        %v2325 = vmax.f32 %v2215, 0.0
        %v2326 = vmax.f32 %v2264, 0.0
        %v2327 = vmax.f32 %v2120, 0.0
        %v2328 = vmax.f32 %v2169, 0.0
        %v2329 = vmax.f32 %v2218, 0.0
        %v2330 = vmax.f32 %v2267, 0.0
        %v2331 = vmax.f32 %v2122, 0.0
        %v2332 = vmax.f32 %v2171, 0.0
        %v2333 = vmax.f32 %v2220, 0.0
        %v2334 = vmax.f32 %v2269, 0.0
        %v2335 = vpack.c.bf16 %v2275, %v2271
        %v2336 = vpack.c.bf16 %v2276, %v2272
        %v2337 = vpack.c.bf16 %v2277, %v2273
        %v2338 = vpack.c.bf16 %v2278, %v2274
        %v2339 = vpack.c.bf16 %v2283, %v2279
        %v2340 = vpack.c.bf16 %v2284, %v2280
        %v2341 = vpack.c.bf16 %v2285, %v2281
        %v2342 = vpack.c.bf16 %v2286, %v2282
        %v2343 = vpack.c.bf16 %v2291, %v2287
        %v2344 = vpack.c.bf16 %v2292, %v2288
        %v2345 = vpack.c.bf16 %v2293, %v2289
        %v2346 = vpack.c.bf16 %v2294, %v2290
        %v2347 = vpack.c.bf16 %v2299, %v2295
        %v2348 = vpack.c.bf16 %v2300, %v2296
        %v2349 = vpack.c.bf16 %v2301, %v2297
        %v2350 = vpack.c.bf16 %v2302, %v2298
        %v2351 = vpack.c.bf16 %v2307, %v2303
        %v2352 = vpack.c.bf16 %v2308, %v2304
        %v2353 = vpack.c.bf16 %v2309, %v2305
        %v2354 = vpack.c.bf16 %v2310, %v2306
        %v2355 = vpack.c.bf16 %v2315, %v2311
        %v2356 = vpack.c.bf16 %v2316, %v2312
        %v2357 = vpack.c.bf16 %v2317, %v2313
        %v2358 = vpack.c.bf16 %v2318, %v2314
        %v2359 = vpack.c.bf16 %v2323, %v2319
        %v2360 = vpack.c.bf16 %v2324, %v2320
        %v2361 = vpack.c.bf16 %v2325, %v2321
        %v2362 = vpack.c.bf16 %v2326, %v2322
        %v2363 = vpack.c.bf16 %v2331, %v2327
        %v2364 = vpack.c.bf16 %v2332, %v2328
        %v2365 = vpack.c.bf16 %v2333, %v2329
        %v2366 = vpack.c.bf16 %v2334, %v2330
        %v2367 = vld [vmem:[#allocation5] sm:$0xff]
        %v2368 = vld [vmem:[#allocation5 + $0x8] sm:$0xff]
        %v2369 = vld [vmem:[#allocation5 + $0x10] sm:$0xff]
        %v2370 = vld [vmem:[#allocation5 + $0x18] sm:$0xff]
        %v2371 = vld [vmem:[#allocation5 + $0x20] sm:$0xff]
        %v2372 = vld [vmem:[#allocation5 + $0x28] sm:$0xff]
        %v2373 = vld [vmem:[#allocation5 + $0x30] sm:$0xff]
        %v2374 = vld [vmem:[#allocation5 + $0x38] sm:$0xff]
        %v2375 = vld [vmem:[#allocation5 + $0x40] sm:$0xff]
        %v2376 = vld [vmem:[#allocation5 + $0x48] sm:$0xff]
        %v2377 = vld [vmem:[#allocation5 + $0x50] sm:$0xff]
        %v2378 = vld [vmem:[#allocation5 + $0x58] sm:$0xff]
        %v2379 = vld [vmem:[#allocation5 + $0x60] sm:$0xff]
        %v2380 = vld [vmem:[#allocation5 + $0x68] sm:$0xff]
        %v2381 = vld [vmem:[#allocation5 + $0x70] sm:$0xff]
        %v2382 = vld [vmem:[#allocation5 + $0x78] sm:$0xff]
        %v2383 = vld [vmem:[#allocation5 + $0x80] sm:$0xff]
        %v2384 = vld [vmem:[#allocation5 + $0x88] sm:$0xff]
        %v2385 = vld [vmem:[#allocation5 + $0x90] sm:$0xff]
        %v2386 = vld [vmem:[#allocation5 + $0x98] sm:$0xff]
        %v2387 = vld [vmem:[#allocation5 + $0xa0] sm:$0xff]
        %v2388 = vld [vmem:[#allocation5 + $0xa8] sm:$0xff]
        %v2389 = vld [vmem:[#allocation5 + $0xb0] sm:$0xff]
        %v2390 = vld [vmem:[#allocation5 + $0xb8] sm:$0xff]
        %v2391 = vld [vmem:[#allocation5 + $0xc0] sm:$0xff]
        %v2392 = vld [vmem:[#allocation5 + $0xc8] sm:$0xff]
        %v2393 = vld [vmem:[#allocation5 + $0xd0] sm:$0xff]
        %v2394 = vld [vmem:[#allocation5 + $0xd8] sm:$0xff]
        %v2395 = vld [vmem:[#allocation5 + $0xe0] sm:$0xff]
        %v2396 = vld [vmem:[#allocation5 + $0xe8] sm:$0xff]
        %v2397 = vld [vmem:[#allocation5 + $0xf0] sm:$0xff]
        %v2398 = vld [vmem:[#allocation5 + $0xf8] sm:$0xff]
        %v2399 = vld [vmem:[#allocation5 + $0x100] sm:$0xff]
        %v2400 = vld [vmem:[#allocation5 + $0x108] sm:$0xff]
        %v2401 = vld [vmem:[#allocation5 + $0x110] sm:$0xff]
        %v2402 = vld [vmem:[#allocation5 + $0x118] sm:$0xff]
        %v2403 = vld [vmem:[#allocation5 + $0x120] sm:$0xff]
        %v2404 = vld [vmem:[#allocation5 + $0x128] sm:$0xff]
        %v2405 = vld [vmem:[#allocation5 + $0x130] sm:$0xff]
        %v2406 = vld [vmem:[#allocation5 + $0x138] sm:$0xff]
        %v2407 = vld [vmem:[#allocation5 + $0x140] sm:$0xff]
        %v2408 = vld [vmem:[#allocation5 + $0x148] sm:$0xff]
        %v2409 = vld [vmem:[#allocation5 + $0x150] sm:$0xff]
        %v2410 = vld [vmem:[#allocation5 + $0x158] sm:$0xff]
        %v2411 = vld [vmem:[#allocation5 + $0x160] sm:$0xff]
        %v2412 = vld [vmem:[#allocation5 + $0x168] sm:$0xff]
        %v2413 = vld [vmem:[#allocation5 + $0x170] sm:$0xff]
        %v2414 = vld [vmem:[#allocation5 + $0x178] sm:$0xff]
        %v2415 = vld [vmem:[#allocation5 + $0x180] sm:$0xff]
        %v2416 = vld [vmem:[#allocation5 + $0x188] sm:$0xff]
        %v2417 = vld [vmem:[#allocation5 + $0x190] sm:$0xff]
        %v2418 = vld [vmem:[#allocation5 + $0x198] sm:$0xff]
        %v2419 = vld [vmem:[#allocation5 + $0x1a0] sm:$0xff]
        %v2420 = vld [vmem:[#allocation5 + $0x1a8] sm:$0xff]
        %v2421 = vld [vmem:[#allocation5 + $0x1b0] sm:$0xff]
        %v2422 = vld [vmem:[#allocation5 + $0x1b8] sm:$0xff]
        %v2423 = vld [vmem:[#allocation5 + $0x1c0] sm:$0xff]
        %v2424 = vld [vmem:[#allocation5 + $0x1c8] sm:$0xff]
        %v2425 = vld [vmem:[#allocation5 + $0x1d0] sm:$0xff]
        %v2426 = vld [vmem:[#allocation5 + $0x1d8] sm:$0xff]
        %v2427 = vld [vmem:[#allocation5 + $0x1e0] sm:$0xff]
        %v2428 = vld [vmem:[#allocation5 + $0x1e8] sm:$0xff]
        %v2429 = vld [vmem:[#allocation5 + $0x1f0] sm:$0xff]
        %v2430 = vld [vmem:[#allocation5 + $0x1f8] sm:$0xff]
        %v2431 = vld [vmem:[%s9] sm:$0x3]
        %v2433 = vperm.slane %v2431, 0
        %v2434 = vperm.slane %v2431, 1
        %v2501 = vunpack.c.l.b16 %v2367
        %v2502 = vunpack.c.h.b16 %v2367
        %v2503 = vunpack.c.l.b16 %v2368
        %v2504 = vunpack.c.h.b16 %v2368
        %v2505 = vunpack.c.l.b16 %v2369
        %v2506 = vunpack.c.h.b16 %v2369
        %v2507 = vunpack.c.l.b16 %v2370
        %v2508 = vunpack.c.h.b16 %v2370
        %v2509 = vunpack.c.l.b16 %v2371
        %v2510 = vunpack.c.h.b16 %v2371
        %v2511 = vunpack.c.l.b16 %v2372
        %v2512 = vunpack.c.h.b16 %v2372
        %v2513 = vunpack.c.l.b16 %v2373
        %v2514 = vunpack.c.h.b16 %v2373
        %v2515 = vunpack.c.l.b16 %v2374
        %v2516 = vunpack.c.h.b16 %v2374
        %v2517 = vunpack.c.l.b16 %v2375
        %v2518 = vunpack.c.h.b16 %v2375
        %v2519 = vunpack.c.l.b16 %v2376
        %v2520 = vunpack.c.h.b16 %v2376
        %v2521 = vunpack.c.l.b16 %v2377
        %v2522 = vunpack.c.h.b16 %v2377
        %v2523 = vunpack.c.l.b16 %v2378
        %v2524 = vunpack.c.h.b16 %v2378
        %v2525 = vunpack.c.l.b16 %v2379
        %v2526 = vunpack.c.h.b16 %v2379
        %v2527 = vunpack.c.l.b16 %v2380
        %v2528 = vunpack.c.h.b16 %v2380
        %v2529 = vunpack.c.l.b16 %v2381
        %v2530 = vunpack.c.h.b16 %v2381
        %v2531 = vunpack.c.l.b16 %v2382
        %v2532 = vunpack.c.h.b16 %v2382
        %v2533 = vunpack.c.l.b16 %v2383
        %v2534 = vunpack.c.h.b16 %v2383
        %v2535 = vunpack.c.l.b16 %v2384
        %v2536 = vunpack.c.h.b16 %v2384
        %v2537 = vunpack.c.l.b16 %v2385
        %v2538 = vunpack.c.h.b16 %v2385
        %v2539 = vunpack.c.l.b16 %v2386
        %v2540 = vunpack.c.h.b16 %v2386
        %v2541 = vunpack.c.l.b16 %v2387
        %v2542 = vunpack.c.h.b16 %v2387
        %v2543 = vunpack.c.l.b16 %v2388
        %v2544 = vunpack.c.h.b16 %v2388
        %v2545 = vunpack.c.l.b16 %v2389
        %v2546 = vunpack.c.h.b16 %v2389
        %v2547 = vunpack.c.l.b16 %v2390
        %v2548 = vunpack.c.h.b16 %v2390
        %v2549 = vunpack.c.l.b16 %v2391
        %v2550 = vunpack.c.h.b16 %v2391
        %v2551 = vunpack.c.l.b16 %v2392
        %v2552 = vunpack.c.h.b16 %v2392
        %v2553 = vunpack.c.l.b16 %v2393
        %v2554 = vunpack.c.h.b16 %v2393
        %v2555 = vunpack.c.l.b16 %v2394
        %v2556 = vunpack.c.h.b16 %v2394
        %v2557 = vunpack.c.l.b16 %v2395
        %v2558 = vunpack.c.h.b16 %v2395
        %v2559 = vunpack.c.l.b16 %v2396
        %v2560 = vunpack.c.h.b16 %v2396
        %v2561 = vunpack.c.l.b16 %v2397
        %v2562 = vunpack.c.h.b16 %v2397
        %v2563 = vunpack.c.l.b16 %v2398
        %v2564 = vunpack.c.h.b16 %v2398
        %v2565 = vunpack.c.l.b16 %v2399
        %v2566 = vunpack.c.h.b16 %v2399
        %v2567 = vunpack.c.l.b16 %v2400
        %v2568 = vunpack.c.h.b16 %v2400
        %v2569 = vunpack.c.l.b16 %v2401
        %v2570 = vunpack.c.h.b16 %v2401
        %v2571 = vunpack.c.l.b16 %v2402
        %v2572 = vunpack.c.h.b16 %v2402
        %v2573 = vunpack.c.l.b16 %v2403
        %v2574 = vunpack.c.h.b16 %v2403
        %v2575 = vunpack.c.l.b16 %v2404
        %v2576 = vunpack.c.h.b16 %v2404
        %v2577 = vunpack.c.l.b16 %v2405
        %v2578 = vunpack.c.h.b16 %v2405
        %v2579 = vunpack.c.l.b16 %v2406
        %v2580 = vunpack.c.h.b16 %v2406
        %v2581 = vunpack.c.l.b16 %v2407
        %v2582 = vunpack.c.h.b16 %v2407
        %v2583 = vunpack.c.l.b16 %v2408
        %v2584 = vunpack.c.h.b16 %v2408
        %v2585 = vunpack.c.l.b16 %v2409
        %v2586 = vunpack.c.h.b16 %v2409
        %v2587 = vunpack.c.l.b16 %v2410
        %v2588 = vunpack.c.h.b16 %v2410
        %v2589 = vunpack.c.l.b16 %v2411
        %v2590 = vunpack.c.h.b16 %v2411
        %v2591 = vunpack.c.l.b16 %v2412
        %v2592 = vunpack.c.h.b16 %v2412
        %v2593 = vunpack.c.l.b16 %v2413
        %v2594 = vunpack.c.h.b16 %v2413
        %v2595 = vunpack.c.l.b16 %v2414
        %v2596 = vunpack.c.h.b16 %v2414
        %v2597 = vunpack.c.l.b16 %v2415
        %v2598 = vunpack.c.h.b16 %v2415
        %v2599 = vunpack.c.l.b16 %v2416
        %v2600 = vunpack.c.h.b16 %v2416
        %v2601 = vunpack.c.l.b16 %v2417
        %v2602 = vunpack.c.h.b16 %v2417
        %v2603 = vunpack.c.l.b16 %v2418
        %v2604 = vunpack.c.h.b16 %v2418
        %v2605 = vunpack.c.l.b16 %v2419
        %v2606 = vunpack.c.h.b16 %v2419
        %v2607 = vunpack.c.l.b16 %v2420
        %v2608 = vunpack.c.h.b16 %v2420
        %v2609 = vunpack.c.l.b16 %v2421
        %v2610 = vunpack.c.h.b16 %v2421
        %v2611 = vunpack.c.l.b16 %v2422
        %v2612 = vunpack.c.h.b16 %v2422
        %v2613 = vunpack.c.l.b16 %v2423
        %v2614 = vunpack.c.h.b16 %v2423
        %v2615 = vunpack.c.l.b16 %v2424
        %v2616 = vunpack.c.h.b16 %v2424
        %v2617 = vunpack.c.l.b16 %v2425
        %v2618 = vunpack.c.h.b16 %v2425
        %v2619 = vunpack.c.l.b16 %v2426
        %v2620 = vunpack.c.h.b16 %v2426
        %v2621 = vunpack.c.l.b16 %v2427
        %v2622 = vunpack.c.h.b16 %v2427
        %v2623 = vunpack.c.l.b16 %v2428
        %v2624 = vunpack.c.h.b16 %v2428
        %v2625 = vunpack.c.l.b16 %v2429
        %v2626 = vunpack.c.h.b16 %v2429
        %v2627 = vunpack.c.l.b16 %v2430
        %v2628 = vunpack.c.h.b16 %v2430
        %v2629 = vpack.c.b16 %v2503, %v2501
        %v2630 = vpack.c.b16 %v2504, %v2502
        %v2631 = vpack.c.b16 %v2507, %v2505
        %v2632 = vpack.c.b16 %v2508, %v2506
        %v2633 = vpack.c.b16 %v2511, %v2509
        %v2634 = vpack.c.b16 %v2512, %v2510
        %v2635 = vpack.c.b16 %v2515, %v2513
        %v2636 = vpack.c.b16 %v2516, %v2514
        %v2637 = vpack.c.b16 %v2519, %v2517
        %v2638 = vpack.c.b16 %v2520, %v2518
        %v2639 = vpack.c.b16 %v2523, %v2521
        %v2640 = vpack.c.b16 %v2524, %v2522
        %v2641 = vpack.c.b16 %v2527, %v2525
        %v2642 = vpack.c.b16 %v2528, %v2526
        %v2643 = vpack.c.b16 %v2531, %v2529
        %v2644 = vpack.c.b16 %v2532, %v2530
        %v2645 = vpack.c.b16 %v2535, %v2533
        %v2646 = vpack.c.b16 %v2536, %v2534
        %v2647 = vpack.c.b16 %v2539, %v2537
        %v2648 = vpack.c.b16 %v2540, %v2538
        %v2649 = vpack.c.b16 %v2543, %v2541
        %v2650 = vpack.c.b16 %v2544, %v2542
        %v2651 = vpack.c.b16 %v2547, %v2545
        %v2652 = vpack.c.b16 %v2548, %v2546
        %v2653 = vpack.c.b16 %v2551, %v2549
        %v2654 = vpack.c.b16 %v2552, %v2550
        %v2655 = vpack.c.b16 %v2555, %v2553
        %v2656 = vpack.c.b16 %v2556, %v2554
        %v2657 = vpack.c.b16 %v2559, %v2557
        %v2658 = vpack.c.b16 %v2560, %v2558
        %v2659 = vpack.c.b16 %v2563, %v2561
        %v2660 = vpack.c.b16 %v2564, %v2562
        %v2661 = vpack.c.b16 %v2567, %v2565
        %v2662 = vpack.c.b16 %v2568, %v2566
        %v2663 = vpack.c.b16 %v2571, %v2569
        %v2664 = vpack.c.b16 %v2572, %v2570
        %v2665 = vpack.c.b16 %v2575, %v2573
        %v2666 = vpack.c.b16 %v2576, %v2574
        %v2667 = vpack.c.b16 %v2579, %v2577
        %v2668 = vpack.c.b16 %v2580, %v2578
        %v2669 = vpack.c.b16 %v2583, %v2581
        %v2670 = vpack.c.b16 %v2584, %v2582
        %v2671 = vpack.c.b16 %v2587, %v2585
        %v2672 = vpack.c.b16 %v2588, %v2586
        %v2673 = vpack.c.b16 %v2591, %v2589
        %v2674 = vpack.c.b16 %v2592, %v2590
        %v2675 = vpack.c.b16 %v2595, %v2593
        %v2676 = vpack.c.b16 %v2596, %v2594
        %v2677 = vpack.c.b16 %v2599, %v2597
        %v2678 = vpack.c.b16 %v2600, %v2598
        %v2679 = vpack.c.b16 %v2603, %v2601
        %v2680 = vpack.c.b16 %v2604, %v2602
        %v2681 = vpack.c.b16 %v2607, %v2605
        %v2682 = vpack.c.b16 %v2608, %v2606
        %v2683 = vpack.c.b16 %v2611, %v2609
        %v2684 = vpack.c.b16 %v2612, %v2610
        %v2685 = vpack.c.b16 %v2615, %v2613
        %v2686 = vpack.c.b16 %v2616, %v2614
        %v2687 = vpack.c.b16 %v2619, %v2617
        %v2688 = vpack.c.b16 %v2620, %v2618
        %v2689 = vpack.c.b16 %v2623, %v2621
        %v2690 = vpack.c.b16 %v2624, %v2622
        %v2691 = vpack.c.b16 %v2627, %v2625
        %v2692 = vpack.c.b16 %v2628, %v2626
        %2757 = vmatpush.bf16.msra.mxu0 %v2643
        %2758 = vmatpush.bf16.msra.mxu0 %v2641
        %2759 = vmatpush.bf16.msra.mxu0 %v2639
        %2760 = vmatpush.bf16.msra.mxu0 %v2637
        %2761 = vmatpush.bf16.msra.mxu0 %v2635
        %2762 = vmatpush.bf16.msra.mxu0 %v2633
        %2763 = vmatpush.bf16.msra.mxu0 %v2631
        %2764 = vmatpush.bf16.msra.mxu0 %v2629
        %2765 = vmatmul.bf16.gmra.mxu0 %v2335
        %v2766 = vpop.f32.mrf.mxu0
        %v2767 = vadd.f32 %v2433, %v2766
        %v2768 = vpop.f32.mrf.mxu0
        %v2769 = vadd.f32 %v2433, %v2768
        %2770 = vmatmul.bf16.gmra.mxu0 %v2339
        %v2771 = vpop.f32.mrf.mxu0
        %v2772 = vadd.f32 %v2433, %v2771
        %v2773 = vpop.f32.mrf.mxu0
        %v2774 = vadd.f32 %v2433, %v2773
        %2775 = vmatmul.bf16.gmra.mxu0 %v2343
        %v2776 = vpop.f32.mrf.mxu0
        %v2777 = vadd.f32 %v2433, %v2776
        %v2778 = vpop.f32.mrf.mxu0
        %v2779 = vadd.f32 %v2433, %v2778
        %2780 = vmatmul.bf16.gmra.mxu0 %v2347
        %v2781 = vpop.f32.mrf.mxu0
        %v2782 = vadd.f32 %v2433, %v2781
        %v2783 = vpop.f32.mrf.mxu0
        %v2784 = vadd.f32 %v2433, %v2783
        %2785 = vmatmul.bf16.gmra.mxu0 %v2351
        %v2786 = vpop.f32.mrf.mxu0
        %v2787 = vadd.f32 %v2433, %v2786
        %v2788 = vpop.f32.mrf.mxu0
        %v2789 = vadd.f32 %v2433, %v2788
        %2790 = vmatmul.bf16.gmra.mxu0 %v2355
        %v2791 = vpop.f32.mrf.mxu0
        %v2792 = vadd.f32 %v2433, %v2791
        %v2793 = vpop.f32.mrf.mxu0
        %v2794 = vadd.f32 %v2433, %v2793
        %2795 = vmatmul.bf16.gmra.mxu0 %v2359
        %v2796 = vpop.f32.mrf.mxu0
        %v2797 = vadd.f32 %v2433, %v2796
        %v2798 = vpop.f32.mrf.mxu0
        %v2799 = vadd.f32 %v2433, %v2798
        %2800 = vmatmul.bf16.gmra.mxu0 %v2363
        %v2801 = vpop.f32.mrf.mxu0
        %v2802 = vadd.f32 %v2433, %v2801
        %v2803 = vpop.f32.mrf.mxu0
        %v2804 = vadd.f32 %v2433, %v2803
        %2805 = vdwg.mxu0
        %2806 = vmatpush.bf16.msra.mxu0 %v2659
        %2807 = vmatpush.bf16.msra.mxu0 %v2657
        %2808 = vmatpush.bf16.msra.mxu0 %v2655
        %2809 = vmatpush.bf16.msra.mxu0 %v2653
        %2810 = vmatpush.bf16.msra.mxu0 %v2651
        %2811 = vmatpush.bf16.msra.mxu0 %v2649
        %2812 = vmatpush.bf16.msra.mxu0 %v2647
        %2813 = vmatpush.bf16.msra.mxu0 %v2645
        %2814 = vmatmul.bf16.gmra.mxu0 %v2336
        %v2815 = vpop.f32.mrf.mxu0
        %v2816 = vadd.f32 %v2767, %v2815
        %v2817 = vpop.f32.mrf.mxu0
        %v2818 = vadd.f32 %v2769, %v2817
        %2819 = vmatmul.bf16.gmra.mxu0 %v2340
        %v2820 = vpop.f32.mrf.mxu0
        %v2821 = vadd.f32 %v2772, %v2820
        %v2822 = vpop.f32.mrf.mxu0
        %v2823 = vadd.f32 %v2774, %v2822
        %2824 = vmatmul.bf16.gmra.mxu0 %v2344
        %v2825 = vpop.f32.mrf.mxu0
        %v2826 = vadd.f32 %v2777, %v2825
        %v2827 = vpop.f32.mrf.mxu0
        %v2828 = vadd.f32 %v2779, %v2827
        %2829 = vmatmul.bf16.gmra.mxu0 %v2348
        %v2830 = vpop.f32.mrf.mxu0
        %v2831 = vadd.f32 %v2782, %v2830
        %v2832 = vpop.f32.mrf.mxu0
        %v2833 = vadd.f32 %v2784, %v2832
        %2834 = vmatmul.bf16.gmra.mxu0 %v2352
        %v2835 = vpop.f32.mrf.mxu0
        %v2836 = vadd.f32 %v2787, %v2835
        %v2837 = vpop.f32.mrf.mxu0
        %v2838 = vadd.f32 %v2789, %v2837
        %2839 = vmatmul.bf16.gmra.mxu0 %v2356
        %v2840 = vpop.f32.mrf.mxu0
        %v2841 = vadd.f32 %v2792, %v2840
        %v2842 = vpop.f32.mrf.mxu0
        %v2843 = vadd.f32 %v2794, %v2842
        %2844 = vmatmul.bf16.gmra.mxu0 %v2360
        %v2845 = vpop.f32.mrf.mxu0
        %v2846 = vadd.f32 %v2797, %v2845
        %v2847 = vpop.f32.mrf.mxu0
        %v2848 = vadd.f32 %v2799, %v2847
        %2849 = vmatmul.bf16.gmra.mxu0 %v2364
        %v2850 = vpop.f32.mrf.mxu0
        %v2851 = vadd.f32 %v2802, %v2850
        %v2852 = vpop.f32.mrf.mxu0
        %v2853 = vadd.f32 %v2804, %v2852
        %2854 = vdwg.mxu0
        %2855 = vmatpush.bf16.msra.mxu0 %v2675
        %2856 = vmatpush.bf16.msra.mxu0 %v2673
        %2857 = vmatpush.bf16.msra.mxu0 %v2671
        %2858 = vmatpush.bf16.msra.mxu0 %v2669
        %2859 = vmatpush.bf16.msra.mxu0 %v2667
        %2860 = vmatpush.bf16.msra.mxu0 %v2665
        %2861 = vmatpush.bf16.msra.mxu0 %v2663
        %2862 = vmatpush.bf16.msra.mxu0 %v2661
        %2863 = vmatmul.bf16.gmra.mxu0 %v2337
        %v2864 = vpop.f32.mrf.mxu0
        %v2865 = vadd.f32 %v2816, %v2864
        %v2866 = vpop.f32.mrf.mxu0
        %v2867 = vadd.f32 %v2818, %v2866
        %2868 = vmatmul.bf16.gmra.mxu0 %v2341
        %v2869 = vpop.f32.mrf.mxu0
        %v2870 = vadd.f32 %v2821, %v2869
        %v2871 = vpop.f32.mrf.mxu0
        %v2872 = vadd.f32 %v2823, %v2871
        %2873 = vmatmul.bf16.gmra.mxu0 %v2345
        %v2874 = vpop.f32.mrf.mxu0
        %v2875 = vadd.f32 %v2826, %v2874
        %v2876 = vpop.f32.mrf.mxu0
        %v2877 = vadd.f32 %v2828, %v2876
        %2878 = vmatmul.bf16.gmra.mxu0 %v2349
        %v2879 = vpop.f32.mrf.mxu0
        %v2880 = vadd.f32 %v2831, %v2879
        %v2881 = vpop.f32.mrf.mxu0
        %v2882 = vadd.f32 %v2833, %v2881
        %2883 = vmatmul.bf16.gmra.mxu0 %v2353
        %v2884 = vpop.f32.mrf.mxu0
        %v2885 = vadd.f32 %v2836, %v2884
        %v2886 = vpop.f32.mrf.mxu0
        %v2887 = vadd.f32 %v2838, %v2886
        %2888 = vmatmul.bf16.gmra.mxu0 %v2357
        %v2889 = vpop.f32.mrf.mxu0
        %v2890 = vadd.f32 %v2841, %v2889
        %v2891 = vpop.f32.mrf.mxu0
        %v2892 = vadd.f32 %v2843, %v2891
        %2893 = vmatmul.bf16.gmra.mxu0 %v2361
        %v2894 = vpop.f32.mrf.mxu0
        %v2895 = vadd.f32 %v2846, %v2894
        %v2896 = vpop.f32.mrf.mxu0
        %v2897 = vadd.f32 %v2848, %v2896
        %2898 = vmatmul.bf16.gmra.mxu0 %v2365
        %v2899 = vpop.f32.mrf.mxu0
        %v2900 = vadd.f32 %v2851, %v2899
        %v2901 = vpop.f32.mrf.mxu0
        %v2902 = vadd.f32 %v2853, %v2901
        %2903 = vdwg.mxu0
        %2904 = vmatpush.bf16.msra.mxu0 %v2691
        %2905 = vmatpush.bf16.msra.mxu0 %v2689
        %2906 = vmatpush.bf16.msra.mxu0 %v2687
        %2907 = vmatpush.bf16.msra.mxu0 %v2685
        %2908 = vmatpush.bf16.msra.mxu0 %v2683
        %2909 = vmatpush.bf16.msra.mxu0 %v2681
        %2910 = vmatpush.bf16.msra.mxu0 %v2679
        %2911 = vmatpush.bf16.msra.mxu0 %v2677
        %2912 = vmatmul.bf16.gmra.mxu0 %v2338
        %v2913 = vpop.f32.mrf.mxu0
        %v2914 = vadd.f32 %v2865, %v2913
        %v2915 = vpop.f32.mrf.mxu0
        %v2916 = vadd.f32 %v2867, %v2915
        %2917 = vmatmul.bf16.gmra.mxu0 %v2342
        %v2918 = vpop.f32.mrf.mxu0
        %v2919 = vadd.f32 %v2870, %v2918
        %v2920 = vpop.f32.mrf.mxu0
        %v2921 = vadd.f32 %v2872, %v2920
        %2922 = vmatmul.bf16.gmra.mxu0 %v2346
        %v2923 = vpop.f32.mrf.mxu0
        %v2924 = vadd.f32 %v2875, %v2923
        %v2925 = vpop.f32.mrf.mxu0
        %v2926 = vadd.f32 %v2877, %v2925
        %2927 = vmatmul.bf16.gmra.mxu0 %v2350
        %v2928 = vpop.f32.mrf.mxu0
        %v2929 = vadd.f32 %v2880, %v2928
        %v2930 = vpop.f32.mrf.mxu0
        %v2931 = vadd.f32 %v2882, %v2930
        %2932 = vmatmul.bf16.gmra.mxu0 %v2354
        %v2933 = vpop.f32.mrf.mxu0
        %v2934 = vadd.f32 %v2885, %v2933
        %v2935 = vpop.f32.mrf.mxu0
        %v2936 = vadd.f32 %v2887, %v2935
        %2937 = vmatmul.bf16.gmra.mxu0 %v2358
        %v2938 = vpop.f32.mrf.mxu0
        %v2939 = vadd.f32 %v2890, %v2938
        %v2940 = vpop.f32.mrf.mxu0
        %v2941 = vadd.f32 %v2892, %v2940
        %2942 = vmatmul.bf16.gmra.mxu0 %v2362
        %v2943 = vpop.f32.mrf.mxu0
        %v2944 = vadd.f32 %v2895, %v2943
        %v2945 = vpop.f32.mrf.mxu0
        %v2946 = vadd.f32 %v2897, %v2945
        %2947 = vmatmul.bf16.gmra.mxu0 %v2366
        %v2948 = vpop.f32.mrf.mxu0
        %v2949 = vadd.f32 %v2900, %v2948
        %v2950 = vpop.f32.mrf.mxu0
        %v2951 = vadd.f32 %v2902, %v2950
        %2952 = vdwg.mxu0
        %2953 = vmatpush.bf16.msra.mxu0 %v2644
        %2954 = vmatpush.bf16.msra.mxu0 %v2642
        %2955 = vmatpush.bf16.msra.mxu0 %v2640
        %2956 = vmatpush.bf16.msra.mxu0 %v2638
        %2957 = vmatpush.bf16.msra.mxu0 %v2636
        %2958 = vmatpush.bf16.msra.mxu0 %v2634
        %2959 = vmatpush.bf16.msra.mxu0 %v2632
        %2960 = vmatpush.bf16.msra.mxu0 %v2630
        %2961 = vmatmul.bf16.gmra.mxu0 %v2335
        %v2962 = vpop.f32.mrf.mxu0
        %v2963 = vadd.f32 %v2434, %v2962
        %v2964 = vpop.f32.mrf.mxu0
        %v2965 = vadd.f32 %v2434, %v2964
        %2966 = vmatmul.bf16.gmra.mxu0 %v2339
        %v2967 = vpop.f32.mrf.mxu0
        %v2968 = vadd.f32 %v2434, %v2967
        %v2969 = vpop.f32.mrf.mxu0
        %v2970 = vadd.f32 %v2434, %v2969
        %2971 = vmatmul.bf16.gmra.mxu0 %v2343
        %v2972 = vpop.f32.mrf.mxu0
        %v2973 = vadd.f32 %v2434, %v2972
        %v2974 = vpop.f32.mrf.mxu0
        %v2975 = vadd.f32 %v2434, %v2974
        %2976 = vmatmul.bf16.gmra.mxu0 %v2347
        %v2977 = vpop.f32.mrf.mxu0
        %v2978 = vadd.f32 %v2434, %v2977
        %v2979 = vpop.f32.mrf.mxu0
        %v2980 = vadd.f32 %v2434, %v2979
        %2981 = vmatmul.bf16.gmra.mxu0 %v2351
        %v2982 = vpop.f32.mrf.mxu0
        %v2983 = vadd.f32 %v2434, %v2982
        %v2984 = vpop.f32.mrf.mxu0
        %v2985 = vadd.f32 %v2434, %v2984
        %2986 = vmatmul.bf16.gmra.mxu0 %v2355
        %v2987 = vpop.f32.mrf.mxu0
        %v2988 = vadd.f32 %v2434, %v2987
        %v2989 = vpop.f32.mrf.mxu0
        %v2990 = vadd.f32 %v2434, %v2989
        %2991 = vmatmul.bf16.gmra.mxu0 %v2359
        %v2992 = vpop.f32.mrf.mxu0
        %v2993 = vadd.f32 %v2434, %v2992
        %v2994 = vpop.f32.mrf.mxu0
        %v2995 = vadd.f32 %v2434, %v2994
        %2996 = vmatmul.bf16.gmra.mxu0 %v2363
        %v2997 = vpop.f32.mrf.mxu0
        %v2998 = vadd.f32 %v2434, %v2997
        %v2999 = vpop.f32.mrf.mxu0
        %v3000 = vadd.f32 %v2434, %v2999
        %3001 = vdwg.mxu0
        %3002 = vmatpush.bf16.msra.mxu0 %v2660
        %3003 = vmatpush.bf16.msra.mxu0 %v2658
        %3004 = vmatpush.bf16.msra.mxu0 %v2656
        %3005 = vmatpush.bf16.msra.mxu0 %v2654
        %3006 = vmatpush.bf16.msra.mxu0 %v2652
        %3007 = vmatpush.bf16.msra.mxu0 %v2650
        %3008 = vmatpush.bf16.msra.mxu0 %v2648
        %3009 = vmatpush.bf16.msra.mxu0 %v2646
        %3010 = vmatmul.bf16.gmra.mxu0 %v2336
        %v3011 = vpop.f32.mrf.mxu0
        %v3012 = vadd.f32 %v2963, %v3011
        %v3013 = vpop.f32.mrf.mxu0
        %v3014 = vadd.f32 %v2965, %v3013
        %3015 = vmatmul.bf16.gmra.mxu0 %v2340
        %v3016 = vpop.f32.mrf.mxu0
        %v3017 = vadd.f32 %v2968, %v3016
        %v3018 = vpop.f32.mrf.mxu0
        %v3019 = vadd.f32 %v2970, %v3018
        %3020 = vmatmul.bf16.gmra.mxu0 %v2344
        %v3021 = vpop.f32.mrf.mxu0
        %v3022 = vadd.f32 %v2973, %v3021
        %v3023 = vpop.f32.mrf.mxu0
        %v3024 = vadd.f32 %v2975, %v3023
        %3025 = vmatmul.bf16.gmra.mxu0 %v2348
        %v3026 = vpop.f32.mrf.mxu0
        %v3027 = vadd.f32 %v2978, %v3026
        %v3028 = vpop.f32.mrf.mxu0
        %v3029 = vadd.f32 %v2980, %v3028
        %3030 = vmatmul.bf16.gmra.mxu0 %v2352
        %v3031 = vpop.f32.mrf.mxu0
        %v3032 = vadd.f32 %v2983, %v3031
        %v3033 = vpop.f32.mrf.mxu0
        %v3034 = vadd.f32 %v2985, %v3033
        %3035 = vmatmul.bf16.gmra.mxu0 %v2356
        %v3036 = vpop.f32.mrf.mxu0
        %v3037 = vadd.f32 %v2988, %v3036
        %v3038 = vpop.f32.mrf.mxu0
        %v3039 = vadd.f32 %v2990, %v3038
        %3040 = vmatmul.bf16.gmra.mxu0 %v2360
        %v3041 = vpop.f32.mrf.mxu0
        %v3042 = vadd.f32 %v2993, %v3041
        %v3043 = vpop.f32.mrf.mxu0
        %v3044 = vadd.f32 %v2995, %v3043
        %3045 = vmatmul.bf16.gmra.mxu0 %v2364
        %v3046 = vpop.f32.mrf.mxu0
        %v3047 = vadd.f32 %v2998, %v3046
        %v3048 = vpop.f32.mrf.mxu0
        %v3049 = vadd.f32 %v3000, %v3048
        %3050 = vdwg.mxu0
        %3051 = vmatpush.bf16.msra.mxu0 %v2676
        %3052 = vmatpush.bf16.msra.mxu0 %v2674
        %3053 = vmatpush.bf16.msra.mxu0 %v2672
        %3054 = vmatpush.bf16.msra.mxu0 %v2670
        %3055 = vmatpush.bf16.msra.mxu0 %v2668
        %3056 = vmatpush.bf16.msra.mxu0 %v2666
        %3057 = vmatpush.bf16.msra.mxu0 %v2664
        %3058 = vmatpush.bf16.msra.mxu0 %v2662
        %3059 = vmatmul.bf16.gmra.mxu0 %v2337
        %v3060 = vpop.f32.mrf.mxu0
        %v3061 = vadd.f32 %v3012, %v3060
        %v3062 = vpop.f32.mrf.mxu0
        %v3063 = vadd.f32 %v3014, %v3062
        %3064 = vmatmul.bf16.gmra.mxu0 %v2341
        %v3065 = vpop.f32.mrf.mxu0
        %v3066 = vadd.f32 %v3017, %v3065
        %v3067 = vpop.f32.mrf.mxu0
        %v3068 = vadd.f32 %v3019, %v3067
        %3069 = vmatmul.bf16.gmra.mxu0 %v2345
        %v3070 = vpop.f32.mrf.mxu0
        %v3071 = vadd.f32 %v3022, %v3070
        %v3072 = vpop.f32.mrf.mxu0
        %v3073 = vadd.f32 %v3024, %v3072
        %3074 = vmatmul.bf16.gmra.mxu0 %v2349
        %v3075 = vpop.f32.mrf.mxu0
        %v3076 = vadd.f32 %v3027, %v3075
        %v3077 = vpop.f32.mrf.mxu0
        %v3078 = vadd.f32 %v3029, %v3077
        %3079 = vmatmul.bf16.gmra.mxu0 %v2353
        %v3080 = vpop.f32.mrf.mxu0
        %v3081 = vadd.f32 %v3032, %v3080
        %v3082 = vpop.f32.mrf.mxu0
        %v3083 = vadd.f32 %v3034, %v3082
        %3084 = vmatmul.bf16.gmra.mxu0 %v2357
        %v3085 = vpop.f32.mrf.mxu0
        %v3086 = vadd.f32 %v3037, %v3085
        %v3087 = vpop.f32.mrf.mxu0
        %v3088 = vadd.f32 %v3039, %v3087
        %3089 = vmatmul.bf16.gmra.mxu0 %v2361
        %v3090 = vpop.f32.mrf.mxu0
        %v3091 = vadd.f32 %v3042, %v3090
        %v3092 = vpop.f32.mrf.mxu0
        %v3093 = vadd.f32 %v3044, %v3092
        %3094 = vmatmul.bf16.gmra.mxu0 %v2365
        %v3095 = vpop.f32.mrf.mxu0
        %v3096 = vadd.f32 %v3047, %v3095
        %v3097 = vpop.f32.mrf.mxu0
        %v3098 = vadd.f32 %v3049, %v3097
        %3099 = vdwg.mxu0
        %3100 = vmatpush.bf16.msra.mxu0 %v2692
        %3101 = vmatpush.bf16.msra.mxu0 %v2690
        %3102 = vmatpush.bf16.msra.mxu0 %v2688
        %3103 = vmatpush.bf16.msra.mxu0 %v2686
        %3104 = vmatpush.bf16.msra.mxu0 %v2684
        %3105 = vmatpush.bf16.msra.mxu0 %v2682
        %3106 = vmatpush.bf16.msra.mxu0 %v2680
        %3107 = vmatpush.bf16.msra.mxu0 %v2678
        %3108 = vmatmul.bf16.gmra.mxu0 %v2338
        %v3109 = vpop.f32.mrf.mxu0
        %v3110 = vadd.f32 %v3061, %v3109
        %v3111 = vpop.f32.mrf.mxu0
        %v3112 = vadd.f32 %v3063, %v3111
        %3113 = vmatmul.bf16.gmra.mxu0 %v2342
        %v3114 = vpop.f32.mrf.mxu0
        %v3115 = vadd.f32 %v3066, %v3114
        %v3116 = vpop.f32.mrf.mxu0
        %v3117 = vadd.f32 %v3068, %v3116
        %3118 = vmatmul.bf16.gmra.mxu0 %v2346
        %v3119 = vpop.f32.mrf.mxu0
        %v3120 = vadd.f32 %v3071, %v3119
        %v3121 = vpop.f32.mrf.mxu0
        %v3122 = vadd.f32 %v3073, %v3121
        %3123 = vmatmul.bf16.gmra.mxu0 %v2350
        %v3124 = vpop.f32.mrf.mxu0
        %v3125 = vadd.f32 %v3076, %v3124
        %v3126 = vpop.f32.mrf.mxu0
        %v3127 = vadd.f32 %v3078, %v3126
        %3128 = vmatmul.bf16.gmra.mxu0 %v2354
        %v3129 = vpop.f32.mrf.mxu0
        %v3130 = vadd.f32 %v3081, %v3129
        %v3131 = vpop.f32.mrf.mxu0
        %v3132 = vadd.f32 %v3083, %v3131
        %3133 = vmatmul.bf16.gmra.mxu0 %v2358
        %v3134 = vpop.f32.mrf.mxu0
        %v3135 = vadd.f32 %v3086, %v3134
        %v3136 = vpop.f32.mrf.mxu0
        %v3137 = vadd.f32 %v3088, %v3136
        %3138 = vmatmul.bf16.gmra.mxu0 %v2362
        %v3139 = vpop.f32.mrf.mxu0
        %v3140 = vadd.f32 %v3091, %v3139
        %v3141 = vpop.f32.mrf.mxu0
        %v3142 = vadd.f32 %v3093, %v3141
        %3143 = vmatmul.bf16.gmra.mxu0 %v2366
        %v3144 = vpop.f32.mrf.mxu0
        %v3145 = vadd.f32 %v3096, %v3144
        %v3146 = vpop.f32.mrf.mxu0
        %v3147 = vadd.f32 %v3098, %v3146
        %3148 = vdwg.mxu0
        %v3149 = vxor.u32 %v2914, 2147483648
        %v3150 = vxor.u32 %v3110, 2147483648
        %v3151 = vxor.u32 %v2916, 2147483648
        %v3152 = vxor.u32 %v3112, 2147483648
        %v3153 = vxor.u32 %v2919, 2147483648
        %v3154 = vxor.u32 %v3115, 2147483648
        %v3155 = vxor.u32 %v2921, 2147483648
        %v3156 = vxor.u32 %v3117, 2147483648
        %v3157 = vxor.u32 %v2924, 2147483648
        %v3158 = vxor.u32 %v3120, 2147483648
        %v3159 = vxor.u32 %v2926, 2147483648
        %v3160 = vxor.u32 %v3122, 2147483648
        %v3161 = vxor.u32 %v2929, 2147483648
        %v3162 = vxor.u32 %v3125, 2147483648
        %v3163 = vxor.u32 %v2931, 2147483648
        %v3164 = vxor.u32 %v3127, 2147483648
        %v3165 = vxor.u32 %v2934, 2147483648
        %v3166 = vxor.u32 %v3130, 2147483648
        %v3167 = vxor.u32 %v2936, 2147483648
        %v3168 = vxor.u32 %v3132, 2147483648
        %v3169 = vxor.u32 %v2939, 2147483648
        %v3170 = vxor.u32 %v3135, 2147483648
        %v3171 = vxor.u32 %v2941, 2147483648
        %v3172 = vxor.u32 %v3137, 2147483648
        %v3173 = vxor.u32 %v2944, 2147483648
        %v3174 = vxor.u32 %v3140, 2147483648
        %v3175 = vxor.u32 %v2946, 2147483648
        %v3176 = vxor.u32 %v3142, 2147483648
        %v3177 = vxor.u32 %v2949, 2147483648
        %v3178 = vxor.u32 %v3145, 2147483648
        %v3179 = vxor.u32 %v2951, 2147483648
        %v3180 = vxor.u32 %v3147, 2147483648
        %v3181 = vmul.f32 %v3149, 1.442695
        %v3182 = vpow.pop %v3181
        %v3183 = vmul.f32 %v3150, 1.442695
        %v3184 = vpow.pop %v3183
        %v3185 = vmul.f32 %v3151, 1.442695
        %v3186 = vpow.pop %v3185
        %v3187 = vmul.f32 %v3152, 1.442695
        %v3188 = vpow.pop %v3187
        %v3189 = vmul.f32 %v3153, 1.442695
        %v3190 = vpow.pop %v3189
        %v3191 = vmul.f32 %v3154, 1.442695
        %v3192 = vpow.pop %v3191
        %v3193 = vmul.f32 %v3155, 1.442695
        %v3194 = vpow.pop %v3193
        %v3195 = vmul.f32 %v3156, 1.442695
        %v3196 = vpow.pop %v3195
        %v3197 = vmul.f32 %v3157, 1.442695
        %v3198 = vpow.pop %v3197
        %v3199 = vmul.f32 %v3158, 1.442695
        %v3200 = vpow.pop %v3199
        %v3201 = vmul.f32 %v3159, 1.442695
        %v3202 = vpow.pop %v3201
        %v3203 = vmul.f32 %v3160, 1.442695
        %v3204 = vpow.pop %v3203
        %v3205 = vmul.f32 %v3161, 1.442695
        %v3206 = vpow.pop %v3205
        %v3207 = vmul.f32 %v3162, 1.442695
        %v3208 = vpow.pop %v3207
        %v3209 = vmul.f32 %v3163, 1.442695
        %v3210 = vpow.pop %v3209
        %v3211 = vmul.f32 %v3164, 1.442695
        %v3212 = vpow.pop %v3211
        %v3213 = vmul.f32 %v3165, 1.442695
        %v3214 = vpow.pop %v3213
        %v3215 = vmul.f32 %v3166, 1.442695
        %v3216 = vpow.pop %v3215
        %v3217 = vmul.f32 %v3167, 1.442695
        %v3218 = vpow.pop %v3217
        %v3219 = vmul.f32 %v3168, 1.442695
        %v3220 = vpow.pop %v3219
        %v3221 = vmul.f32 %v3169, 1.442695
        %v3222 = vpow.pop %v3221
        %v3223 = vmul.f32 %v3170, 1.442695
        %v3224 = vpow.pop %v3223
        %v3225 = vmul.f32 %v3171, 1.442695
        %v3226 = vpow.pop %v3225
        %v3227 = vmul.f32 %v3172, 1.442695
        %v3228 = vpow.pop %v3227
        %v3229 = vmul.f32 %v3173, 1.442695
        %v3230 = vpow.pop %v3229
        %v3231 = vmul.f32 %v3174, 1.442695
        %v3232 = vpow.pop %v3231
        %v3233 = vmul.f32 %v3175, 1.442695
        %v3234 = vpow.pop %v3233
        %v3235 = vmul.f32 %v3176, 1.442695
        %v3236 = vpow.pop %v3235
        %v3237 = vmul.f32 %v3177, 1.442695
        %v3238 = vpow.pop %v3237
        %v3239 = vmul.f32 %v3178, 1.442695
        %v3240 = vpow.pop %v3239
        %v3241 = vmul.f32 %v3179, 1.442695
        %v3242 = vpow.pop %v3241
        %v3243 = vmul.f32 %v3180, 1.442695
        %v3244 = vpow.pop %v3243
        %v3245 = vadd.f32 %v3182, 1.0
        %v3246 = vadd.f32 %v3184, 1.0
        %v3247 = vadd.f32 %v3186, 1.0
        %v3248 = vadd.f32 %v3188, 1.0
        %v3249 = vadd.f32 %v3190, 1.0
        %v3250 = vadd.f32 %v3192, 1.0
        %v3251 = vadd.f32 %v3194, 1.0
        %v3252 = vadd.f32 %v3196, 1.0
        %v3253 = vadd.f32 %v3198, 1.0
        %v3254 = vadd.f32 %v3200, 1.0
        %v3255 = vadd.f32 %v3202, 1.0
        %v3256 = vadd.f32 %v3204, 1.0
        %v3257 = vadd.f32 %v3206, 1.0
        %v3258 = vadd.f32 %v3208, 1.0
        %v3259 = vadd.f32 %v3210, 1.0
        %v3260 = vadd.f32 %v3212, 1.0
        %v3261 = vadd.f32 %v3214, 1.0
        %v3262 = vadd.f32 %v3216, 1.0
        %v3263 = vadd.f32 %v3218, 1.0
        %v3264 = vadd.f32 %v3220, 1.0
        %v3265 = vadd.f32 %v3222, 1.0
        %v3266 = vadd.f32 %v3224, 1.0
        %v3267 = vadd.f32 %v3226, 1.0
        %v3268 = vadd.f32 %v3228, 1.0
        %v3269 = vadd.f32 %v3230, 1.0
        %v3270 = vadd.f32 %v3232, 1.0
        %v3271 = vadd.f32 %v3234, 1.0
        %v3272 = vadd.f32 %v3236, 1.0
        %v3273 = vadd.f32 %v3238, 1.0
        %v3274 = vadd.f32 %v3240, 1.0
        %v3275 = vadd.f32 %v3242, 1.0
        %v3276 = vadd.f32 %v3244, 1.0
        %v3277 = vrcp.pop %v3245
        %v3278 = vmul.f32 %v3245, %v3277
        %v3279 = vsub.f32 1.0, %v3278
        %v3280 = vmul.f32 %v3277, %v3279
        %v3281 = vadd.f32 %v3277, %v3280
        %vm3282 = vweird.f32 %v3245
        %vm3283 = vweird.f32 %v3277
        %vm3284 = vmor %vm3282, %vm3283
        %v3285 = vsel %vm3284, %v3277, %v3281
        %v3286 = vand.u32 2147483647, %v3245
        %vm3287 = vcmp.eq.f32.partialorder %v3286, 8.507059e+37
        %v3288 = vand.u32 %v3245, 2147483648
        %v3289 = vor.u32 1.1754944e-38, %v3288
        %v3290 = vsel %vm3287, %v3289, %v3285
        %v3291 = vmul.f32 1.0, %v3290
        %v3292 = vrcp.pop %v3246
        %v3293 = vmul.f32 %v3246, %v3292
        %v3294 = vsub.f32 1.0, %v3293
        %v3295 = vmul.f32 %v3292, %v3294
        %v3296 = vadd.f32 %v3292, %v3295
        %vm3297 = vweird.f32 %v3246
        %vm3298 = vweird.f32 %v3292
        %vm3299 = vmor %vm3297, %vm3298
        %v3300 = vsel %vm3299, %v3292, %v3296
        %v3301 = vand.u32 2147483647, %v3246
        %vm3302 = vcmp.eq.f32.partialorder %v3301, 8.507059e+37
        %v3303 = vand.u32 %v3246, 2147483648
        %v3304 = vor.u32 1.1754944e-38, %v3303
        %v3305 = vsel %vm3302, %v3304, %v3300
        %v3306 = vmul.f32 1.0, %v3305
        %v3307 = vrcp.pop %v3247
        %v3308 = vmul.f32 %v3247, %v3307
        %v3309 = vsub.f32 1.0, %v3308
        %v3310 = vmul.f32 %v3307, %v3309
        %v3311 = vadd.f32 %v3307, %v3310
        %vm3312 = vweird.f32 %v3247
        %vm3313 = vweird.f32 %v3307
        %vm3314 = vmor %vm3312, %vm3313
        %v3315 = vsel %vm3314, %v3307, %v3311
        %v3316 = vand.u32 2147483647, %v3247
        %vm3317 = vcmp.eq.f32.partialorder %v3316, 8.507059e+37
        %v3318 = vand.u32 %v3247, 2147483648
        %v3319 = vor.u32 1.1754944e-38, %v3318
        %v3320 = vsel %vm3317, %v3319, %v3315
        %v3321 = vmul.f32 1.0, %v3320
        %v3322 = vrcp.pop %v3248
        %v3323 = vmul.f32 %v3248, %v3322
        %v3324 = vsub.f32 1.0, %v3323
        %v3325 = vmul.f32 %v3322, %v3324
        %v3326 = vadd.f32 %v3322, %v3325
        %vm3327 = vweird.f32 %v3248
        %vm3328 = vweird.f32 %v3322
        %vm3329 = vmor %vm3327, %vm3328
        %v3330 = vsel %vm3329, %v3322, %v3326
        %v3331 = vand.u32 2147483647, %v3248
        %vm3332 = vcmp.eq.f32.partialorder %v3331, 8.507059e+37
        %v3333 = vand.u32 %v3248, 2147483648
        %v3334 = vor.u32 1.1754944e-38, %v3333
        %v3335 = vsel %vm3332, %v3334, %v3330
        %v3336 = vmul.f32 1.0, %v3335
        %v3337 = vrcp.pop %v3249
        %v3338 = vmul.f32 %v3249, %v3337
        %v3339 = vsub.f32 1.0, %v3338
        %v3340 = vmul.f32 %v3337, %v3339
        %v3341 = vadd.f32 %v3337, %v3340
        %vm3342 = vweird.f32 %v3249
        %vm3343 = vweird.f32 %v3337
        %vm3344 = vmor %vm3342, %vm3343
        %v3345 = vsel %vm3344, %v3337, %v3341
        %v3346 = vand.u32 2147483647, %v3249
        %vm3347 = vcmp.eq.f32.partialorder %v3346, 8.507059e+37
        %v3348 = vand.u32 %v3249, 2147483648
        %v3349 = vor.u32 1.1754944e-38, %v3348
        %v3350 = vsel %vm3347, %v3349, %v3345
        %v3351 = vmul.f32 1.0, %v3350
        %v3352 = vrcp.pop %v3250
        %v3353 = vmul.f32 %v3250, %v3352
        %v3354 = vsub.f32 1.0, %v3353
        %v3355 = vmul.f32 %v3352, %v3354
        %v3356 = vadd.f32 %v3352, %v3355
        %vm3357 = vweird.f32 %v3250
        %vm3358 = vweird.f32 %v3352
        %vm3359 = vmor %vm3357, %vm3358
        %v3360 = vsel %vm3359, %v3352, %v3356
        %v3361 = vand.u32 2147483647, %v3250
        %vm3362 = vcmp.eq.f32.partialorder %v3361, 8.507059e+37
        %v3363 = vand.u32 %v3250, 2147483648
        %v3364 = vor.u32 1.1754944e-38, %v3363
        %v3365 = vsel %vm3362, %v3364, %v3360
        %v3366 = vmul.f32 1.0, %v3365
        %v3367 = vrcp.pop %v3251
        %v3368 = vmul.f32 %v3251, %v3367
        %v3369 = vsub.f32 1.0, %v3368
        %v3370 = vmul.f32 %v3367, %v3369
        %v3371 = vadd.f32 %v3367, %v3370
        %vm3372 = vweird.f32 %v3251
        %vm3373 = vweird.f32 %v3367
        %vm3374 = vmor %vm3372, %vm3373
        %v3375 = vsel %vm3374, %v3367, %v3371
        %v3376 = vand.u32 2147483647, %v3251
        %vm3377 = vcmp.eq.f32.partialorder %v3376, 8.507059e+37
        %v3378 = vand.u32 %v3251, 2147483648
        %v3379 = vor.u32 1.1754944e-38, %v3378
        %v3380 = vsel %vm3377, %v3379, %v3375
        %v3381 = vmul.f32 1.0, %v3380
        %v3382 = vrcp.pop %v3252
        %v3383 = vmul.f32 %v3252, %v3382
        %v3384 = vsub.f32 1.0, %v3383
        %v3385 = vmul.f32 %v3382, %v3384
        %v3386 = vadd.f32 %v3382, %v3385
        %vm3387 = vweird.f32 %v3252
        %vm3388 = vweird.f32 %v3382
        %vm3389 = vmor %vm3387, %vm3388
        %v3390 = vsel %vm3389, %v3382, %v3386
        %v3391 = vand.u32 2147483647, %v3252
        %vm3392 = vcmp.eq.f32.partialorder %v3391, 8.507059e+37
        %v3393 = vand.u32 %v3252, 2147483648
        %v3394 = vor.u32 1.1754944e-38, %v3393
        %v3395 = vsel %vm3392, %v3394, %v3390
        %v3396 = vmul.f32 1.0, %v3395
        %v3397 = vrcp.pop %v3253
        %v3398 = vmul.f32 %v3253, %v3397
        %v3399 = vsub.f32 1.0, %v3398
        %v3400 = vmul.f32 %v3397, %v3399
        %v3401 = vadd.f32 %v3397, %v3400
        %vm3402 = vweird.f32 %v3253
        %vm3403 = vweird.f32 %v3397
        %vm3404 = vmor %vm3402, %vm3403
        %v3405 = vsel %vm3404, %v3397, %v3401
        %v3406 = vand.u32 2147483647, %v3253
        %vm3407 = vcmp.eq.f32.partialorder %v3406, 8.507059e+37
        %v3408 = vand.u32 %v3253, 2147483648
        %v3409 = vor.u32 1.1754944e-38, %v3408
        %v3410 = vsel %vm3407, %v3409, %v3405
        %v3411 = vmul.f32 1.0, %v3410
        %v3412 = vrcp.pop %v3254
        %v3413 = vmul.f32 %v3254, %v3412
        %v3414 = vsub.f32 1.0, %v3413
        %v3415 = vmul.f32 %v3412, %v3414
        %v3416 = vadd.f32 %v3412, %v3415
        %vm3417 = vweird.f32 %v3254
        %vm3418 = vweird.f32 %v3412
        %vm3419 = vmor %vm3417, %vm3418
        %v3420 = vsel %vm3419, %v3412, %v3416
        %v3421 = vand.u32 2147483647, %v3254
        %vm3422 = vcmp.eq.f32.partialorder %v3421, 8.507059e+37
        %v3423 = vand.u32 %v3254, 2147483648
        %v3424 = vor.u32 1.1754944e-38, %v3423
        %v3425 = vsel %vm3422, %v3424, %v3420
        %v3426 = vmul.f32 1.0, %v3425
        %v3427 = vrcp.pop %v3255
        %v3428 = vmul.f32 %v3255, %v3427
        %v3429 = vsub.f32 1.0, %v3428
        %v3430 = vmul.f32 %v3427, %v3429
        %v3431 = vadd.f32 %v3427, %v3430
        %vm3432 = vweird.f32 %v3255
        %vm3433 = vweird.f32 %v3427
        %vm3434 = vmor %vm3432, %vm3433
        %v3435 = vsel %vm3434, %v3427, %v3431
        %v3436 = vand.u32 2147483647, %v3255
        %vm3437 = vcmp.eq.f32.partialorder %v3436, 8.507059e+37
        %v3438 = vand.u32 %v3255, 2147483648
        %v3439 = vor.u32 1.1754944e-38, %v3438
        %v3440 = vsel %vm3437, %v3439, %v3435
        %v3441 = vmul.f32 1.0, %v3440
        %v3442 = vrcp.pop %v3256
        %v3443 = vmul.f32 %v3256, %v3442
        %v3444 = vsub.f32 1.0, %v3443
        %v3445 = vmul.f32 %v3442, %v3444
        %v3446 = vadd.f32 %v3442, %v3445
        %vm3447 = vweird.f32 %v3256
        %vm3448 = vweird.f32 %v3442
        %vm3449 = vmor %vm3447, %vm3448
        %v3450 = vsel %vm3449, %v3442, %v3446
        %v3451 = vand.u32 2147483647, %v3256
        %vm3452 = vcmp.eq.f32.partialorder %v3451, 8.507059e+37
        %v3453 = vand.u32 %v3256, 2147483648
        %v3454 = vor.u32 1.1754944e-38, %v3453
        %v3455 = vsel %vm3452, %v3454, %v3450
        %v3456 = vmul.f32 1.0, %v3455
        %v3457 = vrcp.pop %v3257
        %v3458 = vmul.f32 %v3257, %v3457
        %v3459 = vsub.f32 1.0, %v3458
        %v3460 = vmul.f32 %v3457, %v3459
        %v3461 = vadd.f32 %v3457, %v3460
        %vm3462 = vweird.f32 %v3257
        %vm3463 = vweird.f32 %v3457
        %vm3464 = vmor %vm3462, %vm3463
        %v3465 = vsel %vm3464, %v3457, %v3461
        %v3466 = vand.u32 2147483647, %v3257
        %vm3467 = vcmp.eq.f32.partialorder %v3466, 8.507059e+37
        %v3468 = vand.u32 %v3257, 2147483648
        %v3469 = vor.u32 1.1754944e-38, %v3468
        %v3470 = vsel %vm3467, %v3469, %v3465
        %v3471 = vmul.f32 1.0, %v3470
        %v3472 = vrcp.pop %v3258
        %v3473 = vmul.f32 %v3258, %v3472
        %v3474 = vsub.f32 1.0, %v3473
        %v3475 = vmul.f32 %v3472, %v3474
        %v3476 = vadd.f32 %v3472, %v3475
        %vm3477 = vweird.f32 %v3258
        %vm3478 = vweird.f32 %v3472
        %vm3479 = vmor %vm3477, %vm3478
        %v3480 = vsel %vm3479, %v3472, %v3476
        %v3481 = vand.u32 2147483647, %v3258
        %vm3482 = vcmp.eq.f32.partialorder %v3481, 8.507059e+37
        %v3483 = vand.u32 %v3258, 2147483648
        %v3484 = vor.u32 1.1754944e-38, %v3483
        %v3485 = vsel %vm3482, %v3484, %v3480
        %v3486 = vmul.f32 1.0, %v3485
        %v3487 = vrcp.pop %v3259
        %v3488 = vmul.f32 %v3259, %v3487
        %v3489 = vsub.f32 1.0, %v3488
        %v3490 = vmul.f32 %v3487, %v3489
        %v3491 = vadd.f32 %v3487, %v3490
        %vm3492 = vweird.f32 %v3259
        %vm3493 = vweird.f32 %v3487
        %vm3494 = vmor %vm3492, %vm3493
        %v3495 = vsel %vm3494, %v3487, %v3491
        %v3496 = vand.u32 2147483647, %v3259
        %vm3497 = vcmp.eq.f32.partialorder %v3496, 8.507059e+37
        %v3498 = vand.u32 %v3259, 2147483648
        %v3499 = vor.u32 1.1754944e-38, %v3498
        %v3500 = vsel %vm3497, %v3499, %v3495
        %v3501 = vmul.f32 1.0, %v3500
        %v3502 = vrcp.pop %v3260
        %v3503 = vmul.f32 %v3260, %v3502
        %v3504 = vsub.f32 1.0, %v3503
        %v3505 = vmul.f32 %v3502, %v3504
        %v3506 = vadd.f32 %v3502, %v3505
        %vm3507 = vweird.f32 %v3260
        %vm3508 = vweird.f32 %v3502
        %vm3509 = vmor %vm3507, %vm3508
        %v3510 = vsel %vm3509, %v3502, %v3506
        %v3511 = vand.u32 2147483647, %v3260
        %vm3512 = vcmp.eq.f32.partialorder %v3511, 8.507059e+37
        %v3513 = vand.u32 %v3260, 2147483648
        %v3514 = vor.u32 1.1754944e-38, %v3513
        %v3515 = vsel %vm3512, %v3514, %v3510
        %v3516 = vmul.f32 1.0, %v3515
        %v3517 = vrcp.pop %v3261
        %v3518 = vmul.f32 %v3261, %v3517
        %v3519 = vsub.f32 1.0, %v3518
        %v3520 = vmul.f32 %v3517, %v3519
        %v3521 = vadd.f32 %v3517, %v3520
        %vm3522 = vweird.f32 %v3261
        %vm3523 = vweird.f32 %v3517
        %vm3524 = vmor %vm3522, %vm3523
        %v3525 = vsel %vm3524, %v3517, %v3521
        %v3526 = vand.u32 2147483647, %v3261
        %vm3527 = vcmp.eq.f32.partialorder %v3526, 8.507059e+37
        %v3528 = vand.u32 %v3261, 2147483648
        %v3529 = vor.u32 1.1754944e-38, %v3528
        %v3530 = vsel %vm3527, %v3529, %v3525
        %v3531 = vmul.f32 1.0, %v3530
        %v3532 = vrcp.pop %v3262
        %v3533 = vmul.f32 %v3262, %v3532
        %v3534 = vsub.f32 1.0, %v3533
        %v3535 = vmul.f32 %v3532, %v3534
        %v3536 = vadd.f32 %v3532, %v3535
        %vm3537 = vweird.f32 %v3262
        %vm3538 = vweird.f32 %v3532
        %vm3539 = vmor %vm3537, %vm3538
        %v3540 = vsel %vm3539, %v3532, %v3536
        %v3541 = vand.u32 2147483647, %v3262
        %vm3542 = vcmp.eq.f32.partialorder %v3541, 8.507059e+37
        %v3543 = vand.u32 %v3262, 2147483648
        %v3544 = vor.u32 1.1754944e-38, %v3543
        %v3545 = vsel %vm3542, %v3544, %v3540
        %v3546 = vmul.f32 1.0, %v3545
        %v3547 = vrcp.pop %v3263
        %v3548 = vmul.f32 %v3263, %v3547
        %v3549 = vsub.f32 1.0, %v3548
        %v3550 = vmul.f32 %v3547, %v3549
        %v3551 = vadd.f32 %v3547, %v3550
        %vm3552 = vweird.f32 %v3263
        %vm3553 = vweird.f32 %v3547
        %vm3554 = vmor %vm3552, %vm3553
        %v3555 = vsel %vm3554, %v3547, %v3551
        %v3556 = vand.u32 2147483647, %v3263
        %vm3557 = vcmp.eq.f32.partialorder %v3556, 8.507059e+37
        %v3558 = vand.u32 %v3263, 2147483648
        %v3559 = vor.u32 1.1754944e-38, %v3558
        %v3560 = vsel %vm3557, %v3559, %v3555
        %v3561 = vmul.f32 1.0, %v3560
        %v3562 = vrcp.pop %v3264
        %v3563 = vmul.f32 %v3264, %v3562
        %v3564 = vsub.f32 1.0, %v3563
        %v3565 = vmul.f32 %v3562, %v3564
        %v3566 = vadd.f32 %v3562, %v3565
        %vm3567 = vweird.f32 %v3264
        %vm3568 = vweird.f32 %v3562
        %vm3569 = vmor %vm3567, %vm3568
        %v3570 = vsel %vm3569, %v3562, %v3566
        %v3571 = vand.u32 2147483647, %v3264
        %vm3572 = vcmp.eq.f32.partialorder %v3571, 8.507059e+37
        %v3573 = vand.u32 %v3264, 2147483648
        %v3574 = vor.u32 1.1754944e-38, %v3573
        %v3575 = vsel %vm3572, %v3574, %v3570
        %v3576 = vmul.f32 1.0, %v3575
        %v3577 = vrcp.pop %v3265
        %v3578 = vmul.f32 %v3265, %v3577
        %v3579 = vsub.f32 1.0, %v3578
        %v3580 = vmul.f32 %v3577, %v3579
        %v3581 = vadd.f32 %v3577, %v3580
        %vm3582 = vweird.f32 %v3265
        %vm3583 = vweird.f32 %v3577
        %vm3584 = vmor %vm3582, %vm3583
        %v3585 = vsel %vm3584, %v3577, %v3581
        %v3586 = vand.u32 2147483647, %v3265
        %vm3587 = vcmp.eq.f32.partialorder %v3586, 8.507059e+37
        %v3588 = vand.u32 %v3265, 2147483648
        %v3589 = vor.u32 1.1754944e-38, %v3588
        %v3590 = vsel %vm3587, %v3589, %v3585
        %v3591 = vmul.f32 1.0, %v3590
        %v3592 = vrcp.pop %v3266
        %v3593 = vmul.f32 %v3266, %v3592
        %v3594 = vsub.f32 1.0, %v3593
        %v3595 = vmul.f32 %v3592, %v3594
        %v3596 = vadd.f32 %v3592, %v3595
        %vm3597 = vweird.f32 %v3266
        %vm3598 = vweird.f32 %v3592
        %vm3599 = vmor %vm3597, %vm3598
        %v3600 = vsel %vm3599, %v3592, %v3596
        %v3601 = vand.u32 2147483647, %v3266
        %vm3602 = vcmp.eq.f32.partialorder %v3601, 8.507059e+37
        %v3603 = vand.u32 %v3266, 2147483648
        %v3604 = vor.u32 1.1754944e-38, %v3603
        %v3605 = vsel %vm3602, %v3604, %v3600
        %v3606 = vmul.f32 1.0, %v3605
        %v3607 = vrcp.pop %v3267
        %v3608 = vmul.f32 %v3267, %v3607
        %v3609 = vsub.f32 1.0, %v3608
        %v3610 = vmul.f32 %v3607, %v3609
        %v3611 = vadd.f32 %v3607, %v3610
        %vm3612 = vweird.f32 %v3267
        %vm3613 = vweird.f32 %v3607
        %vm3614 = vmor %vm3612, %vm3613
        %v3615 = vsel %vm3614, %v3607, %v3611
        %v3616 = vand.u32 2147483647, %v3267
        %vm3617 = vcmp.eq.f32.partialorder %v3616, 8.507059e+37
        %v3618 = vand.u32 %v3267, 2147483648
        %v3619 = vor.u32 1.1754944e-38, %v3618
        %v3620 = vsel %vm3617, %v3619, %v3615
        %v3621 = vmul.f32 1.0, %v3620
        %v3622 = vrcp.pop %v3268
        %v3623 = vmul.f32 %v3268, %v3622
        %v3624 = vsub.f32 1.0, %v3623
        %v3625 = vmul.f32 %v3622, %v3624
        %v3626 = vadd.f32 %v3622, %v3625
        %vm3627 = vweird.f32 %v3268
        %vm3628 = vweird.f32 %v3622
        %vm3629 = vmor %vm3627, %vm3628
        %v3630 = vsel %vm3629, %v3622, %v3626
        %v3631 = vand.u32 2147483647, %v3268
        %vm3632 = vcmp.eq.f32.partialorder %v3631, 8.507059e+37
        %v3633 = vand.u32 %v3268, 2147483648
        %v3634 = vor.u32 1.1754944e-38, %v3633
        %v3635 = vsel %vm3632, %v3634, %v3630
        %v3636 = vmul.f32 1.0, %v3635
        %v3637 = vrcp.pop %v3269
        %v3638 = vmul.f32 %v3269, %v3637
        %v3639 = vsub.f32 1.0, %v3638
        %v3640 = vmul.f32 %v3637, %v3639
        %v3641 = vadd.f32 %v3637, %v3640
        %vm3642 = vweird.f32 %v3269
        %vm3643 = vweird.f32 %v3637
        %vm3644 = vmor %vm3642, %vm3643
        %v3645 = vsel %vm3644, %v3637, %v3641
        %v3646 = vand.u32 2147483647, %v3269
        %vm3647 = vcmp.eq.f32.partialorder %v3646, 8.507059e+37
        %v3648 = vand.u32 %v3269, 2147483648
        %v3649 = vor.u32 1.1754944e-38, %v3648
        %v3650 = vsel %vm3647, %v3649, %v3645
        %v3651 = vmul.f32 1.0, %v3650
        %v3652 = vrcp.pop %v3270
        %v3653 = vmul.f32 %v3270, %v3652
        %v3654 = vsub.f32 1.0, %v3653
        %v3655 = vmul.f32 %v3652, %v3654
        %v3656 = vadd.f32 %v3652, %v3655
        %vm3657 = vweird.f32 %v3270
        %vm3658 = vweird.f32 %v3652
        %vm3659 = vmor %vm3657, %vm3658
        %v3660 = vsel %vm3659, %v3652, %v3656
        %v3661 = vand.u32 2147483647, %v3270
        %vm3662 = vcmp.eq.f32.partialorder %v3661, 8.507059e+37
        %v3663 = vand.u32 %v3270, 2147483648
        %v3664 = vor.u32 1.1754944e-38, %v3663
        %v3665 = vsel %vm3662, %v3664, %v3660
        %v3666 = vmul.f32 1.0, %v3665
        %v3667 = vrcp.pop %v3271
        %v3668 = vmul.f32 %v3271, %v3667
        %v3669 = vsub.f32 1.0, %v3668
        %v3670 = vmul.f32 %v3667, %v3669
        %v3671 = vadd.f32 %v3667, %v3670
        %vm3672 = vweird.f32 %v3271
        %vm3673 = vweird.f32 %v3667
        %vm3674 = vmor %vm3672, %vm3673
        %v3675 = vsel %vm3674, %v3667, %v3671
        %v3676 = vand.u32 2147483647, %v3271
        %vm3677 = vcmp.eq.f32.partialorder %v3676, 8.507059e+37
        %v3678 = vand.u32 %v3271, 2147483648
        %v3679 = vor.u32 1.1754944e-38, %v3678
        %v3680 = vsel %vm3677, %v3679, %v3675
        %v3681 = vmul.f32 1.0, %v3680
        %v3682 = vrcp.pop %v3272
        %v3683 = vmul.f32 %v3272, %v3682
        %v3684 = vsub.f32 1.0, %v3683
        %v3685 = vmul.f32 %v3682, %v3684
        %v3686 = vadd.f32 %v3682, %v3685
        %vm3687 = vweird.f32 %v3272
        %vm3688 = vweird.f32 %v3682
        %vm3689 = vmor %vm3687, %vm3688
        %v3690 = vsel %vm3689, %v3682, %v3686
        %v3691 = vand.u32 2147483647, %v3272
        %vm3692 = vcmp.eq.f32.partialorder %v3691, 8.507059e+37
        %v3693 = vand.u32 %v3272, 2147483648
        %v3694 = vor.u32 1.1754944e-38, %v3693
        %v3695 = vsel %vm3692, %v3694, %v3690
        %v3696 = vmul.f32 1.0, %v3695
        %v3697 = vrcp.pop %v3273
        %v3698 = vmul.f32 %v3273, %v3697
        %v3699 = vsub.f32 1.0, %v3698
        %v3700 = vmul.f32 %v3697, %v3699
        %v3701 = vadd.f32 %v3697, %v3700
        %vm3702 = vweird.f32 %v3273
        %vm3703 = vweird.f32 %v3697
        %vm3704 = vmor %vm3702, %vm3703
        %v3705 = vsel %vm3704, %v3697, %v3701
        %v3706 = vand.u32 2147483647, %v3273
        %vm3707 = vcmp.eq.f32.partialorder %v3706, 8.507059e+37
        %v3708 = vand.u32 %v3273, 2147483648
        %v3709 = vor.u32 1.1754944e-38, %v3708
        %v3710 = vsel %vm3707, %v3709, %v3705
        %v3711 = vmul.f32 1.0, %v3710
        %v3712 = vrcp.pop %v3274
        %v3713 = vmul.f32 %v3274, %v3712
        %v3714 = vsub.f32 1.0, %v3713
        %v3715 = vmul.f32 %v3712, %v3714
        %v3716 = vadd.f32 %v3712, %v3715
        %vm3717 = vweird.f32 %v3274
        %vm3718 = vweird.f32 %v3712
        %vm3719 = vmor %vm3717, %vm3718
        %v3720 = vsel %vm3719, %v3712, %v3716
        %v3721 = vand.u32 2147483647, %v3274
        %vm3722 = vcmp.eq.f32.partialorder %v3721, 8.507059e+37
        %v3723 = vand.u32 %v3274, 2147483648
        %v3724 = vor.u32 1.1754944e-38, %v3723
        %v3725 = vsel %vm3722, %v3724, %v3720
        %v3726 = vmul.f32 1.0, %v3725
        %v3727 = vrcp.pop %v3275
        %v3728 = vmul.f32 %v3275, %v3727
        %v3729 = vsub.f32 1.0, %v3728
        %v3730 = vmul.f32 %v3727, %v3729
        %v3731 = vadd.f32 %v3727, %v3730
        %vm3732 = vweird.f32 %v3275
        %vm3733 = vweird.f32 %v3727
        %vm3734 = vmor %vm3732, %vm3733
        %v3735 = vsel %vm3734, %v3727, %v3731
        %v3736 = vand.u32 2147483647, %v3275
        %vm3737 = vcmp.eq.f32.partialorder %v3736, 8.507059e+37
        %v3738 = vand.u32 %v3275, 2147483648
        %v3739 = vor.u32 1.1754944e-38, %v3738
        %v3740 = vsel %vm3737, %v3739, %v3735
        %v3741 = vmul.f32 1.0, %v3740
        %v3742 = vrcp.pop %v3276
        %v3743 = vmul.f32 %v3276, %v3742
        %v3744 = vsub.f32 1.0, %v3743
        %v3745 = vmul.f32 %v3742, %v3744
        %v3746 = vadd.f32 %v3742, %v3745
        %vm3747 = vweird.f32 %v3276
        %vm3748 = vweird.f32 %v3742
        %vm3749 = vmor %vm3747, %vm3748
        %v3750 = vsel %vm3749, %v3742, %v3746
        %v3751 = vand.u32 2147483647, %v3276
        %vm3752 = vcmp.eq.f32.partialorder %v3751, 8.507059e+37
        %v3753 = vand.u32 %v3276, 2147483648
        %v3754 = vor.u32 1.1754944e-38, %v3753
        %v3755 = vsel %vm3752, %v3754, %v3750
        %v3756 = vmul.f32 1.0, %v3755
        %3757 = vst [vmem:[%s433] sm:$0xff] %v3291
        %3758 = vst [vmem:[%s433 + $0x8] sm:$0xff] %v3306
        %3759 = vst [vmem:[%s433 + $0x10] sm:$0xff] %v3321
        %3760 = vst [vmem:[%s433 + $0x18] sm:$0xff] %v3336
        %3761 = vst [vmem:[%s433 + $0x20] sm:$0xff] %v3351
        %3762 = vst [vmem:[%s433 + $0x28] sm:$0xff] %v3366
        %3763 = vst [vmem:[%s433 + $0x30] sm:$0xff] %v3381
        %3764 = vst [vmem:[%s433 + $0x38] sm:$0xff] %v3396
        %3765 = vst [vmem:[%s433 + $0x40] sm:$0xff] %v3411
        %3766 = vst [vmem:[%s433 + $0x48] sm:$0xff] %v3426
        %3767 = vst [vmem:[%s433 + $0x50] sm:$0xff] %v3441
        %3768 = vst [vmem:[%s433 + $0x58] sm:$0xff] %v3456
        %3769 = vst [vmem:[%s433 + $0x60] sm:$0xff] %v3471
        %3770 = vst [vmem:[%s433 + $0x68] sm:$0xff] %v3486
        %3771 = vst [vmem:[%s433 + $0x70] sm:$0xff] %v3501
        %3772 = vst [vmem:[%s433 + $0x78] sm:$0xff] %v3516
        %3773 = vst [vmem:[%s433 + $0x80] sm:$0xff] %v3531
        %3774 = vst [vmem:[%s433 + $0x88] sm:$0xff] %v3546
        %3775 = vst [vmem:[%s433 + $0x90] sm:$0xff] %v3561
        %3776 = vst [vmem:[%s433 + $0x98] sm:$0xff] %v3576
        %3777 = vst [vmem:[%s433 + $0xa0] sm:$0xff] %v3591
        %3778 = vst [vmem:[%s433 + $0xa8] sm:$0xff] %v3606
        %3779 = vst [vmem:[%s433 + $0xb0] sm:$0xff] %v3621
        %3780 = vst [vmem:[%s433 + $0xb8] sm:$0xff] %v3636
        %3781 = vst [vmem:[%s433 + $0xc0] sm:$0xff] %v3651
        %3782 = vst [vmem:[%s433 + $0xc8] sm:$0xff] %v3666
        %3783 = vst [vmem:[%s433 + $0xd0] sm:$0xff] %v3681
        %3784 = vst [vmem:[%s433 + $0xd8] sm:$0xff] %v3696
        %3785 = vst [vmem:[%s433 + $0xe0] sm:$0xff] %v3711
        %3786 = vst [vmem:[%s433 + $0xe8] sm:$0xff] %v3726
        %3787 = vst [vmem:[%s433 + $0xf0] sm:$0xff] %v3741
        %3788 = vst [vmem:[%s433 + $0xf8] sm:$0xff] %v3756
        %vm3789 = vcmask 261120
        %3790 = vst.msk [vmem:[%s459] sm:$0xff] %vm3789, %v1809
        %3791 = vst.msk [vmem:[%s459 + $0x8] sm:$0xff] %vm3789, %v1811
        %3792 = vst.msk [vmem:[%s459 + $0x10] sm:$0xff] %vm3789, %v1814
        %3793 = vst.msk [vmem:[%s459 + $0x18] sm:$0xff] %vm3789, %v1816
        %3794 = vst.msk [vmem:[%s459 + $0x20] sm:$0xff] %vm3789, %v1819
        %3795 = vst.msk [vmem:[%s459 + $0x28] sm:$0xff] %vm3789, %v1821
        %3796 = vst.msk [vmem:[%s459 + $0x30] sm:$0xff] %vm3789, %v1824
        %3797 = vst.msk [vmem:[%s459 + $0x38] sm:$0xff] %vm3789, %v1826
        %3798 = vst.msk [vmem:[%s459 + $0x40] sm:$0xff] %vm3789, %v1829
        %3799 = vst.msk [vmem:[%s459 + $0x48] sm:$0xff] %vm3789, %v1831
        %3800 = vst.msk [vmem:[%s459 + $0x50] sm:$0xff] %vm3789, %v1834
        %3801 = vst.msk [vmem:[%s459 + $0x58] sm:$0xff] %vm3789, %v1836
        %3802 = vst.msk [vmem:[%s459 + $0x60] sm:$0xff] %vm3789, %v1839
        %3803 = vst.msk [vmem:[%s459 + $0x68] sm:$0xff] %vm3789, %v1841
        %3804 = vst.msk [vmem:[%s459 + $0x70] sm:$0xff] %vm3789, %v1844
        %3805 = vst.msk [vmem:[%s459 + $0x78] sm:$0xff] %vm3789, %v1846
        %s3806 = sand.u32 %s256, 1
        %s3807 = scalar_lea.sflag [#allocation4], %s3806
        %s3808 = sand.u32 %s256, 1
        %s3809 = smul.addr %s3808, 256
        %s3810 = scalar_lea.vmem [#allocation7], %s3809
        %s3811 = smul.u32 16, %s28
        %p3812 = scmp.lt.s32.totalorder %s3811, 31
        %s3813 = scalar_select %p3812, %s3811, 31
        %s3814 = smul.addr %s3813, 8
        %s3815 = scalar_lea.vmem %s11, %s3814
        // Predicated region
        $region69: #{tpu_custom_call.1} parent=59 // pred_check
          %p3816 = pneg %p266
        $region70: #{tpu_custom_call.1} parent=59 // pred_check_branch
          %3818 = sbr.rel (%p3816) target = $region72
        $region71: #{tpu_custom_call.1} parent=59 // pred_region
          %s3819 = smul.u32 16, %s28
          %3821 = vsyncadd %s3807, 0
          %s3822 = smul.addr %s3819, 2
          %s3823 = smul.addr %s3822, 8
          %s3824 = scalar_lea.hbm %s10, %s3823
          %s3825 = sshll.u32 %s3810, 4
          %s3826 = int_to_ptr.vmem [resolvable:$true] %s3825
          %s3827 = sshll.u32 %s3824, 4
          %s3828 = int_to_ptr.hbm [resolvable:$true] %s3827
          %3833 = dma.vmem_to_hbm [thread:$0]  %s3826, 4096, %s3828, %s3807, 256, 256, 16
        $region72: #{tpu_custom_call.1} parent=59 // pred_fallthru
          _
        // Predicated region
        $region73: #{tpu_custom_call.1} parent=59 // pred_check
          %p3834 = pneg %p292
        $region74: #{tpu_custom_call.1} parent=59 // pred_check_branch
          %3836 = sbr.rel (%p3834) target = $region76
        $region75: #{tpu_custom_call.1} parent=59 // pred_region
          %s3837 = smul.u32 16, %s28
        $region76: #{tpu_custom_call.1} parent=59 // pred_fallthru
          _
      $region60: #{tpu_custom_call.1} parent=5 // pred_fallthru
        _
      %p3838 = scmp.le.s32.totalorder 2, %s23
      // Predicated region
      $region77: #{tpu_custom_call.1} parent=5 // pred_check
        %p3839 = pneg %p3838
      $region78: #{tpu_custom_call.1} parent=5 // pred_check_branch
        %3841 = sbr.rel (%p3839) target = $region80
      $region79: #{tpu_custom_call.1} parent=5 // pred_region
        %s3842 = ssub.s32 %s23, 2
        // Predicated region
        $region81: #{tpu_custom_call.1} parent=79 // pred_check
          %p3843 = pneg %p272
        $region82: #{tpu_custom_call.1} parent=79 // pred_check_branch
          %3845 = sbr.rel (%p3843) target = $region84
        $region83: #{tpu_custom_call.1} parent=79 // pred_region
          %s3846 = sand.u32 %s257, 1
          %s3847 = scalar_lea.sflag [#allocation4], %s3846
          %s3848 = sand.u32 %s257, 1
          %s3849 = smul.addr %s3848, 256
          %s3850 = scalar_lea.vmem [#allocation7], %s3849
          %3852 = dma.done %s3847, 4096
        $region84: #{tpu_custom_call.1} parent=79 // pred_fallthru
          _
        // Predicated region
        $region85: #{tpu_custom_call.1} parent=79 // pred_check
          %p3853 = pneg %p298
        $region86: #{tpu_custom_call.1} parent=79 // pred_check_branch
          %3855 = sbr.rel (%p3853) target = $region88
        $region87: #{tpu_custom_call.1} parent=79 // pred_region
          %s3856 = smul.u32 16, %s29
          %p3857 = scmp.lt.s32.totalorder %s3856, 31
          %s3858 = scalar_select %p3857, %s3856, 31
          %s3859 = smul.addr %s3858, 8
          %s3860 = scalar_lea.vmem %s11, %s3859
        $region88: #{tpu_custom_call.1} parent=79 // pred_fallthru
          _
      $region80: #{tpu_custom_call.1} parent=5 // pred_fallthru
        _
    $region6: #{tpu_custom_call.1} parent=1 // loop_footer
      %s27 = sadd.s32 1, %s23
    $region7: #{tpu_custom_call.1} parent=1 // loop_footer_branch
      %22 = sbr.rel target = $region3
    $region8: #{tpu_custom_call.1} parent=1 // loop_exit
      _
    %3861 = vsyncpa [#allocation3], 1
    %s3862 = scalar_lea.sflag [#allocation3], 1
    %3863 = vsyncpa %s3862, 1
    %3864 = vsyncpa [#allocation6], 1
    %3865 = vsyncpa [#allocation4], 1
    %s3866 = scalar_lea.sflag [#allocation4], 1
    %3867 = vsyncpa %s3866, 1

</llo_original>
